<compile_context>
chip_gen: v7x
topology: tpu7x:2x2x1
jax: 0.10.0
libtpu: 0.0.40
codegen_flags: <defaults>
</compile_context>

<pallas_src>
import functools

import numpy as np
import jax
import jax.numpy as jnp
from jax.experimental import pallas as pl
from jax.experimental.pallas import tpu as pltpu

_LANE = 128


def _round_up(x, m):
    return ((x + m - 1) // m) * m


def _apply_activation(x, name):
    if name == "linear":
        return x
    if name == "tanh":
        return jnp.tanh(x)
    if name == "relu":
        return jnp.maximum(x, 0.0)
    if name == "sigmoid":
        return jax.nn.sigmoid(x)
    if name == "elu":
        # clamp expm1 argument so the discarded branch never produces inf/NaN-grad
        return jnp.where(x > 0, x, jnp.expm1(jnp.minimum(x, 0.0)))
    # TODO(synk): 'prelu' (learnable slope) and 'rrelu' (random slope) not implemented.
    raise NotImplementedError(name)


# ------------------------------ fused kernel -------------------------------- #

def _fused_kernel(*refs, dir_specs, act_hyper):
    """One kernel: for each direction, hypernet MLP -> per-sample FC stack.

    refs = [h_ref, mu_ref,
            (w, b) * n_hyper for direction 0, (w, b) * n_hyper for direction 1, ...,
            out_ref per direction]
    """
    n_dirs = len(dir_specs)
    h_ref, mu_ref = refs[0], refs[1]
    pos = 2
    wb_per_dir = []
    for spec in dir_specs:
        n = spec["n_hyper"]
        wb_per_dir.append(refs[pos:pos + 2 * n])
        pos += 2 * n
    out_refs = refs[pos:pos + n_dirs]

    mu = mu_ref[...]
    h = h_ref[...]

    for di, spec in enumerate(dir_specs):
        wb = wb_per_dir[di]
        n = spec["n_hyper"]

        # Hypernetwork MLP on the MXU; params stay resident in VMEM/vregs.
        p = mu
        for i in range(n):
            w = wb[2 * i][...]          # (din, dout) == torch W.T (padded/permuted last layer)
            b = wb[2 * i + 1][...]      # (1, dout)
            p = jnp.dot(p, w, preferred_element_type=jnp.float32) + b
            if i < n - 1:
                p = _apply_activation(p, act_hyper)

        # Per-sample FC stack: lane-dense VPU FMAs, nout on lanes, loop over nin.
        for (nin, nout), (w_off, b_off), act in zip(
                spec["shapes"], spec["offsets"], spec["acts"]):
            y = p[:, b_off:b_off + nout]
            for b_in in range(nin):
                y = y + (p[:, w_off + b_in * nout: w_off + (b_in + 1) * nout]
                         * h[:, b_in:b_in + 1])
            h = _apply_activation(y, act)

        out_refs[di][...] = h


# --------------------------------- model ------------------------------------ #

def _init_linear(key, din, dout):
    kw, kb = jax.random.split(key)
    bound = 1.0 / jnp.sqrt(jnp.float32(din))
    w = jax.random.uniform(kw, (din, dout), jnp.float32, -bound, bound)   # torch W.T
    b = jax.random.uniform(kb, (1, dout), jnp.float32, -bound, bound)
    return w, b


class SparseAutoEncoderPallas:
    def __init__(self, layer_vec, activation, depth_hyper, width_hyper,
                 act_hyper, num_sensor, key):
        self.layer_vec = layer_vec
        self.activation = activation
        self.activation_vec = ["linear"] + (len(layer_vec) - 3) * [activation] + ["linear"]
        self.steps = len(layer_vec) - 1
        self.act_hyper = act_hyper

        self.en_shapes = [(layer_vec[k], layer_vec[k + 1]) for k in range(self.steps)]
        self.de_shapes = [(layer_vec[self.steps - k], layer_vec[self.steps - k - 1])
                          for k in range(self.steps)]
        self.en_param_sizes = [i * o + o for (i, o) in self.en_shapes]
        self.de_param_sizes = [i * o + o for (i, o) in self.de_shapes]
        self.en_param_size = int(sum(self.en_param_sizes))
        self.de_param_size = int(sum(self.de_param_sizes))

        # Lane-aligned kernel layout (padded/permuted) for the emitted param slabs.
        self.en_offsets, self.en_pad_size = self._make_layout(self.en_shapes)
        self.de_offsets, self.de_pad_size = self._make_layout(self.de_shapes)

        # Hypernetwork weights in the torch convention (used by the pure-JAX reference).
        en_dims = [num_sensor] + [width_hyper] * depth_hyper + [self.en_param_size]
        de_dims = [num_sensor] + [width_hyper] * depth_hyper + [self.de_param_size]
        n_en, n_de = len(en_dims) - 1, len(de_dims) - 1
        keys = jax.random.split(key, n_en + n_de)
        self.en_ws, self.en_bs = [], []
        for i in range(n_en):
            w, b = _init_linear(keys[i], en_dims[i], en_dims[i + 1])
            self.en_ws.append(w)
            self.en_bs.append(b)
        self.de_ws, self.de_bs = [], []
        for i in range(n_de):
            w, b = _init_linear(keys[n_en + i], de_dims[i], de_dims[i + 1])
            self.de_ws.append(w)
            self.de_bs.append(b)

        # Kernel-layout hypernet weights: final layer columns scattered into the
        # padded, (nin, nout)-ordered slab (free, done once at init).
        en_perm = self._perm_torch_to_kernel(self.en_shapes, self.en_offsets)
        de_perm = self._perm_torch_to_kernel(self.de_shapes, self.de_offsets)
        self.en_ws_k, self.en_bs_k = self._kernel_layout_hypernet(
            self.en_ws, self.en_bs, en_perm, self.en_pad_size)
        self.de_ws_k, self.de_bs_k = self._kernel_layout_hypernet(
            self.de_ws, self.de_bs, de_perm, self.de_pad_size)

        self.en_dir = dict(n_hyper=n_en, shapes=tuple(self.en_shapes),
                           offsets=tuple(self.en_offsets),
                           acts=tuple(self.activation_vec))
        self.de_dir = dict(n_hyper=n_de, shapes=tuple(self.de_shapes),
                           offsets=tuple(self.de_offsets),
                           acts=tuple(self.activation_vec))

    # ---- layout helpers ----
    @staticmethod
    def _make_layout(shapes):
        offsets, off = [], 0
        for (nin, nout) in shapes:
            w_off = off
            b_off = _round_up(w_off + nin * nout, _LANE)
            off = _round_up(b_off + nout, _LANE)
            offsets.append((w_off, b_off))
        return offsets, off

    @staticmethod
    def _perm_torch_to_kernel(shapes, offsets):
        """dst[torch_col] = kernel_col (weights re-ordered (nout,nin)->(nin,nout))."""
        segs = []
        for (nin, nout), (w_off, b_off) in zip(shapes, offsets):
            seg = np.empty(nin * nout + nout, dtype=np.int64)
            for c in range(nout):
                for b in range(nin):
                    seg[c * nin + b] = w_off + b * nout + c
            for c in range(nout):
                seg[nin * nout + c] = b_off + c
            segs.append(seg)
        return np.concatenate(segs)

    @staticmethod
    def _kernel_layout_hypernet(ws, bs, perm, pad_size):
        ws_k, bs_k = list(ws), list(bs)
        W, b = ws[-1], bs[-1]
        Wk = jnp.zeros((W.shape[0], pad_size), jnp.float32).at[:, perm].set(W)
        bk = jnp.zeros((1, pad_size), jnp.float32).at[:, perm].set(b)
        ws_k[-1], bs_k[-1] = Wk, bk
        return ws_k, bs_k

    # ---- fused pallas_call launcher ----
    def _run(self, h0, mu, dirs, dir_params, out_dims):
        if h0.ndim == 1:
            h0 = h0[None]
        if mu.ndim == 1:
            mu = mu[None]
        B = h0.shape[0]
        tB = B if B <= 256 else 256          # multiple of 8 (or == B) -> valid block
        grid = (pl.cdiv(B, tB),)

        row = lambda i: (i, 0)
        fixed = lambda i: (0, 0)

        args = [h0, mu]
        in_specs = [pl.BlockSpec((tB, h0.shape[1]), row),
                    pl.BlockSpec((tB, mu.shape[1]), row)]
        for ws, bs in dir_params:
            for w, b in zip(ws, bs):
                args += [w, b]
                in_specs += [pl.BlockSpec(w.shape, fixed),
                             pl.BlockSpec(b.shape, fixed)]
        out_specs = tuple(pl.BlockSpec((tB, d), row) for d in out_dims)
        out_shape = tuple(jax.ShapeDtypeStruct((B, d), jnp.float32) for d in out_dims)

        kernel = functools.partial(_fused_kernel, dir_specs=dirs,
                                   act_hyper=self.act_hyper)
        return pl.pallas_call(
            kernel,
            grid=grid,
            in_specs=in_specs,
            out_specs=out_specs,
            out_shape=out_shape,
            compiler_params=pltpu.CompilerParams(
                dimension_semantics=("parallel",)),
        )(*args)

    # ---- public API (matches torch module forward semantics) ----
    def encode(self, z, mu):
        (x,) = self._run(z, mu, (self.en_dir,),
                         [(self.en_ws_k, self.en_bs_k)],
                         (self.layer_vec[-1],))
        return x

    def decode(self, x, mu):
        (zr,) = self._run(x, mu, (self.de_dir,),
                          [(self.de_ws_k, self.de_bs_k)],
                          (self.layer_vec[0],))
        return zr

    def forward(self, z, mu):
        x, zr = self._run(z, mu, (self.en_dir, self.de_dir),
                          [(self.en_ws_k, self.en_bs_k),
                           (self.de_ws_k, self.de_bs_k)],
                          (self.layer_vec[-1], self.layer_vec[0]))
        return zr, x

    # ---- pure-JAX reference (torch convention) for validation ----
    def _ref_mlp(self, mu, ws, bs):
        h = mu
        for i, (w, b) in enumerate(zip(ws, bs)):
            h = h @ w + b
            if i < len(ws) - 1:
                h = _apply_activation(h, self.act_hyper)
        return h

    def _ref_stack(self, h, params, shapes, sizes):
        B = h.shape[0]
        cut = 0
        for k, (nin, nout) in enumerate(shapes):
            p = params[:, cut:cut + sizes[k]]
            w = p[:, :nout * nin].reshape(B, nout, nin)
            b = p[:, nout * nin:]
            h = jnp.einsum("ab,acb->ac", h, w) + b
            h = _apply_activation(h, self.activation_vec[k])
            cut += sizes[k]
        return h

    def reference_forward(self, z, mu):
        pe = self._ref_mlp(mu, self.en_ws, self.en_bs)
        x = self._ref_stack(z, pe, self.en_shapes, self.en_param_sizes)
        pd = self._ref_mlp(mu, self.de_ws, self.de_bs)
        zr = self._ref_stack(x, pd, self.de_shapes, self.de_param_sizes)
        return zr, x


# TODO(synk): jacobian_norm* methods (torch.func vmap/jacrev training diagnostics) are
# outside the forward pass and are not implemented as kernels.

if __name__ == "__main__":
    key = jax.random.PRNGKey(0)
    kparam, kz, kmu = jax.random.split(key, 3)

    layer_vec = [16, 32, 16, 8]     # encoder 16->32->16->8, decoder 8->16->32->16
    num_sensor = 4
    B = 2

    model = SparseAutoEncoderPallas(
        layer_vec, activation="tanh", depth_hyper=2, width_hyper=32,
        act_hyper="tanh", num_sensor=num_sensor, key=kparam)

    z = jax.random.normal(kz, (B, layer_vec[0]), jnp.float32)
    mu = jax.random.normal(kmu, (B, num_sensor), jnp.float32)

    # single fused kernel for the whole forward pass
    z_reconst, latent = model.forward(z, mu)
    jax.block_until_ready((z_reconst, latent))

    # standalone encode path (also a single fused kernel)
    latent_enc = model.encode(z, mu)
    jax.block_until_ready(latent_enc)

    zr_ref, lat_ref = model.reference_forward(z, mu)
    assert z_reconst.shape == (B, layer_vec[0]) and latent.shape == (B, layer_vec[-1])
    assert jnp.allclose(z_reconst, zr_ref, atol=1e-4, rtol=1e-4)
    assert jnp.allclose(latent, lat_ref, atol=1e-4, rtol=1e-4)
    assert jnp.allclose(latent_enc, lat_ref, atol=1e-4, rtol=1e-4)

    print("KERNEL_OK")
</pallas_src>

<mosaic_0001>
module attributes {stable_mosaic.version = 11 : i64} {
  func.func @_fused_kernel(%arg0: i32, %arg1: memref<2x16xf32, #tpu.memory_space<vmem>>, %arg2: memref<2x4xf32, #tpu.memory_space<vmem>>, %arg3: memref<4x32xf32, #tpu.memory_space<vmem>>, %arg4: memref<1x32xf32, #tpu.memory_space<vmem>>, %arg5: memref<32x32xf32, #tpu.memory_space<vmem>>, %arg6: memref<1x32xf32, #tpu.memory_space<vmem>>, %arg7: memref<32x1536xf32, #tpu.memory_space<vmem>>, %arg8: memref<1x1536xf32, #tpu.memory_space<vmem>>, %arg9: memref<4x32xf32, #tpu.memory_space<vmem>>, %arg10: memref<1x32xf32, #tpu.memory_space<vmem>>, %arg11: memref<32x32xf32, #tpu.memory_space<vmem>>, %arg12: memref<1x32xf32, #tpu.memory_space<vmem>>, %arg13: memref<32x1536xf32, #tpu.memory_space<vmem>>, %arg14: memref<1x1536xf32, #tpu.memory_space<vmem>>, %arg15: memref<2x8xf32, #tpu.memory_space<vmem>>, %arg16: memref<2x16xf32, #tpu.memory_space<vmem>>) attributes {dimension_semantics = [#tpu.dimension_semantics<parallel>], iteration_bounds = array<i64: 1>, scalar_prefetch = 0 : i64, scratch_operands = 0 : i64, tpu.core_type = #tpu.core_type<tc>, window_params = [{transform_indices = @transform_0, window_bounds = array<i64: 2, 16>}, {transform_indices = @transform_1, window_bounds = array<i64: 2, 4>}, {pipeline_mode = #tpu.pipeline_mode<synchronous>, transform_indices = @transform_2, window_bounds = array<i64: 4, 32>}, {pipeline_mode = #tpu.pipeline_mode<synchronous>, transform_indices = @transform_3, window_bounds = array<i64: 1, 32>}, {pipeline_mode = #tpu.pipeline_mode<synchronous>, transform_indices = @transform_4, window_bounds = array<i64: 32, 32>}, {pipeline_mode = #tpu.pipeline_mode<synchronous>, transform_indices = @transform_5, window_bounds = array<i64: 1, 32>}, {pipeline_mode = #tpu.pipeline_mode<synchronous>, transform_indices = @transform_6, window_bounds = array<i64: 32, 1536>}, {pipeline_mode = #tpu.pipeline_mode<synchronous>, transform_indices = @transform_7, window_bounds = array<i64: 1, 1536>}, {pipeline_mode = #tpu.pipeline_mode<synchronous>, transform_indices = @transform_8, window_bounds = array<i64: 4, 32>}, {pipeline_mode = #tpu.pipeline_mode<synchronous>, transform_indices = @transform_9, window_bounds = array<i64: 1, 32>}, {pipeline_mode = #tpu.pipeline_mode<synchronous>, transform_indices = @transform_10, window_bounds = array<i64: 32, 32>}, {pipeline_mode = #tpu.pipeline_mode<synchronous>, transform_indices = @transform_11, window_bounds = array<i64: 1, 32>}, {pipeline_mode = #tpu.pipeline_mode<synchronous>, transform_indices = @transform_12, window_bounds = array<i64: 32, 1536>}, {pipeline_mode = #tpu.pipeline_mode<synchronous>, transform_indices = @transform_13, window_bounds = array<i64: 1, 1536>}, {transform_indices = @transform_14, window_bounds = array<i64: 2, 8>}, {transform_indices = @transform_15, window_bounds = array<i64: 2, 16>}]} {
    %c0 = arith.constant 0 : index
    %c0_0 = arith.constant 0 : index
    %0 = vector.load %arg2[%c0, %c0_0] : memref<2x4xf32, #tpu.memory_space<vmem>>, vector<2x4xf32>
    %c0_1 = arith.constant 0 : index
    %c0_2 = arith.constant 0 : index
    %1 = vector.load %arg1[%c0_1, %c0_2] : memref<2x16xf32, #tpu.memory_space<vmem>>, vector<2x16xf32>
    %c0_3 = arith.constant 0 : index
    %c0_4 = arith.constant 0 : index
    %2 = vector.load %arg3[%c0_3, %c0_4] : memref<4x32xf32, #tpu.memory_space<vmem>>, vector<4x32xf32>
    %c0_5 = arith.constant 0 : index
    %c0_6 = arith.constant 0 : index
    %3 = vector.load %arg4[%c0_5, %c0_6] : memref<1x32xf32, #tpu.memory_space<vmem>>, vector<1x32xf32>
    %cst = arith.constant dense<0.000000e+00> : vector<2x32xf32>
    %4 = tpu.matmul %0, %2, %cst {dimension_numbers = #tpu.dot_dimension_numbers<[1], [0], [0], [1], [0, 0, 1, 1], [], []>} : vector<2x4xf32>, vector<4x32xf32>, vector<2x32xf32> -> vector<2x32xf32>
    %5 = vector.broadcast %3 : vector<1x32xf32> to vector<2x32xf32>
    %6 = arith.addf %4, %5 : vector<2x32xf32>
    %7 = math.tanh %6 : vector<2x32xf32>
    %c0_7 = arith.constant 0 : index
    %c0_8 = arith.constant 0 : index
    %8 = vector.load %arg5[%c0_7, %c0_8] : memref<32x32xf32, #tpu.memory_space<vmem>>, vector<32x32xf32>
    %c0_9 = arith.constant 0 : index
    %c0_10 = arith.constant 0 : index
    %9 = vector.load %arg6[%c0_9, %c0_10] : memref<1x32xf32, #tpu.memory_space<vmem>>, vector<1x32xf32>
    %cst_11 = arith.constant dense<0.000000e+00> : vector<2x32xf32>
    %10 = tpu.matmul %7, %8, %cst_11 {dimension_numbers = #tpu.dot_dimension_numbers<[1], [0], [0], [1], [0, 0, 1, 1], [], []>} : vector<2x32xf32>, vector<32x32xf32>, vector<2x32xf32> -> vector<2x32xf32>
    %11 = vector.broadcast %9 : vector<1x32xf32> to vector<2x32xf32>
    %12 = arith.addf %10, %11 : vector<2x32xf32>
    %13 = math.tanh %12 : vector<2x32xf32>
    %c0_12 = arith.constant 0 : index
    %c0_13 = arith.constant 0 : index
    %14 = vector.load %arg7[%c0_12, %c0_13] : memref<32x1536xf32, #tpu.memory_space<vmem>>, vector<32x1536xf32>
    %c0_14 = arith.constant 0 : index
    %c0_15 = arith.constant 0 : index
    %15 = vector.load %arg8[%c0_14, %c0_15] : memref<1x1536xf32, #tpu.memory_space<vmem>>, vector<1x1536xf32>
    %cst_16 = arith.constant dense<0.000000e+00> : vector<2x1536xf32>
    %16 = tpu.matmul %13, %14, %cst_16 {dimension_numbers = #tpu.dot_dimension_numbers<[1], [0], [0], [1], [0, 0, 1, 1], [], []>} : vector<2x32xf32>, vector<32x1536xf32>, vector<2x1536xf32> -> vector<2x1536xf32>
    %17 = vector.broadcast %15 : vector<1x1536xf32> to vector<2x1536xf32>
    %18 = arith.addf %16, %17 : vector<2x1536xf32>
    %19 = vector.extract_strided_slice %18 {offsets = [0, 512], sizes = [2, 32], strides = [1, 1]} : vector<2x1536xf32> to vector<2x32xf32>
    %20 = vector.extract_strided_slice %18 {offsets = [0, 0], sizes = [2, 32], strides = [1, 1]} : vector<2x1536xf32> to vector<2x32xf32>
    %21 = vector.extract_strided_slice %1 {offsets = [0, 0], sizes = [2, 1], strides = [1, 1]} : vector<2x16xf32> to vector<2x1xf32>
    %22 = vector.broadcast %21 : vector<2x1xf32> to vector<2x32xf32>
    %23 = arith.mulf %20, %22 : vector<2x32xf32>
    %24 = arith.addf %19, %23 : vector<2x32xf32>
    %25 = vector.extract_strided_slice %18 {offsets = [0, 32], sizes = [2, 32], strides = [1, 1]} : vector<2x1536xf32> to vector<2x32xf32>
    %26 = vector.extract_strided_slice %1 {offsets = [0, 1], sizes = [2, 1], strides = [1, 1]} : vector<2x16xf32> to vector<2x1xf32>
    %27 = vector.broadcast %26 : vector<2x1xf32> to vector<2x32xf32>
    %28 = arith.mulf %25, %27 : vector<2x32xf32>
    %29 = arith.addf %24, %28 : vector<2x32xf32>
    %30 = vector.extract_strided_slice %18 {offsets = [0, 64], sizes = [2, 32], strides = [1, 1]} : vector<2x1536xf32> to vector<2x32xf32>
    %31 = vector.extract_strided_slice %1 {offsets = [0, 2], sizes = [2, 1], strides = [1, 1]} : vector<2x16xf32> to vector<2x1xf32>
    %32 = vector.broadcast %31 : vector<2x1xf32> to vector<2x32xf32>
    %33 = arith.mulf %30, %32 : vector<2x32xf32>
    %34 = arith.addf %29, %33 : vector<2x32xf32>
    %35 = vector.extract_strided_slice %18 {offsets = [0, 96], sizes = [2, 32], strides = [1, 1]} : vector<2x1536xf32> to vector<2x32xf32>
    %36 = vector.extract_strided_slice %1 {offsets = [0, 3], sizes = [2, 1], strides = [1, 1]} : vector<2x16xf32> to vector<2x1xf32>
    %37 = vector.broadcast %36 : vector<2x1xf32> to vector<2x32xf32>
    %38 = arith.mulf %35, %37 : vector<2x32xf32>
    %39 = arith.addf %34, %38 : vector<2x32xf32>
    %40 = vector.extract_strided_slice %18 {offsets = [0, 128], sizes = [2, 32], strides = [1, 1]} : vector<2x1536xf32> to vector<2x32xf32>
    %41 = vector.extract_strided_slice %1 {offsets = [0, 4], sizes = [2, 1], strides = [1, 1]} : vector<2x16xf32> to vector<2x1xf32>
    %42 = vector.broadcast %41 : vector<2x1xf32> to vector<2x32xf32>
    %43 = arith.mulf %40, %42 : vector<2x32xf32>
    %44 = arith.addf %39, %43 : vector<2x32xf32>
    %45 = vector.extract_strided_slice %18 {offsets = [0, 160], sizes = [2, 32], strides = [1, 1]} : vector<2x1536xf32> to vector<2x32xf32>
    %46 = vector.extract_strided_slice %1 {offsets = [0, 5], sizes = [2, 1], strides = [1, 1]} : vector<2x16xf32> to vector<2x1xf32>
    %47 = vector.broadcast %46 : vector<2x1xf32> to vector<2x32xf32>
    %48 = arith.mulf %45, %47 : vector<2x32xf32>
    %49 = arith.addf %44, %48 : vector<2x32xf32>
    %50 = vector.extract_strided_slice %18 {offsets = [0, 192], sizes = [2, 32], strides = [1, 1]} : vector<2x1536xf32> to vector<2x32xf32>
    %51 = vector.extract_strided_slice %1 {offsets = [0, 6], sizes = [2, 1], strides = [1, 1]} : vector<2x16xf32> to vector<2x1xf32>
    %52 = vector.broadcast %51 : vector<2x1xf32> to vector<2x32xf32>
    %53 = arith.mulf %50, %52 : vector<2x32xf32>
    %54 = arith.addf %49, %53 : vector<2x32xf32>
    %55 = vector.extract_strided_slice %18 {offsets = [0, 224], sizes = [2, 32], strides = [1, 1]} : vector<2x1536xf32> to vector<2x32xf32>
    %56 = vector.extract_strided_slice %1 {offsets = [0, 7], sizes = [2, 1], strides = [1, 1]} : vector<2x16xf32> to vector<2x1xf32>
    %57 = vector.broadcast %56 : vector<2x1xf32> to vector<2x32xf32>
    %58 = arith.mulf %55, %57 : vector<2x32xf32>
    %59 = arith.addf %54, %58 : vector<2x32xf32>
    %60 = vector.extract_strided_slice %18 {offsets = [0, 256], sizes = [2, 32], strides = [1, 1]} : vector<2x1536xf32> to vector<2x32xf32>
    %61 = vector.extract_strided_slice %1 {offsets = [0, 8], sizes = [2, 1], strides = [1, 1]} : vector<2x16xf32> to vector<2x1xf32>
    %62 = vector.broadcast %61 : vector<2x1xf32> to vector<2x32xf32>
    %63 = arith.mulf %60, %62 : vector<2x32xf32>
    %64 = arith.addf %59, %63 : vector<2x32xf32>
    %65 = vector.extract_strided_slice %18 {offsets = [0, 288], sizes = [2, 32], strides = [1, 1]} : vector<2x1536xf32> to vector<2x32xf32>
    %66 = vector.extract_strided_slice %1 {offsets = [0, 9], sizes = [2, 1], strides = [1, 1]} : vector<2x16xf32> to vector<2x1xf32>
    %67 = vector.broadcast %66 : vector<2x1xf32> to vector<2x32xf32>
    %68 = arith.mulf %65, %67 : vector<2x32xf32>
    %69 = arith.addf %64, %68 : vector<2x32xf32>
    %70 = vector.extract_strided_slice %18 {offsets = [0, 320], sizes = [2, 32], strides = [1, 1]} : vector<2x1536xf32> to vector<2x32xf32>
    %71 = vector.extract_strided_slice %1 {offsets = [0, 10], sizes = [2, 1], strides = [1, 1]} : vector<2x16xf32> to vector<2x1xf32>
    %72 = vector.broadcast %71 : vector<2x1xf32> to vector<2x32xf32>
    %73 = arith.mulf %70, %72 : vector<2x32xf32>
    %74 = arith.addf %69, %73 : vector<2x32xf32>
    %75 = vector.extract_strided_slice %18 {offsets = [0, 352], sizes = [2, 32], strides = [1, 1]} : vector<2x1536xf32> to vector<2x32xf32>
    %76 = vector.extract_strided_slice %1 {offsets = [0, 11], sizes = [2, 1], strides = [1, 1]} : vector<2x16xf32> to vector<2x1xf32>
    %77 = vector.broadcast %76 : vector<2x1xf32> to vector<2x32xf32>
    %78 = arith.mulf %75, %77 : vector<2x32xf32>
    %79 = arith.addf %74, %78 : vector<2x32xf32>
    %80 = vector.extract_strided_slice %18 {offsets = [0, 384], sizes = [2, 32], strides = [1, 1]} : vector<2x1536xf32> to vector<2x32xf32>
    %81 = vector.extract_strided_slice %1 {offsets = [0, 12], sizes = [2, 1], strides = [1, 1]} : vector<2x16xf32> to vector<2x1xf32>
    %82 = vector.broadcast %81 : vector<2x1xf32> to vector<2x32xf32>
    %83 = arith.mulf %80, %82 : vector<2x32xf32>
    %84 = arith.addf %79, %83 : vector<2x32xf32>
    %85 = vector.extract_strided_slice %18 {offsets = [0, 416], sizes = [2, 32], strides = [1, 1]} : vector<2x1536xf32> to vector<2x32xf32>
    %86 = vector.extract_strided_slice %1 {offsets = [0, 13], sizes = [2, 1], strides = [1, 1]} : vector<2x16xf32> to vector<2x1xf32>
    %87 = vector.broadcast %86 : vector<2x1xf32> to vector<2x32xf32>
    %88 = arith.mulf %85, %87 : vector<2x32xf32>
    %89 = arith.addf %84, %88 : vector<2x32xf32>
    %90 = vector.extract_strided_slice %18 {offsets = [0, 448], sizes = [2, 32], strides = [1, 1]} : vector<2x1536xf32> to vector<2x32xf32>
    %91 = vector.extract_strided_slice %1 {offsets = [0, 14], sizes = [2, 1], strides = [1, 1]} : vector<2x16xf32> to vector<2x1xf32>
    %92 = vector.broadcast %91 : vector<2x1xf32> to vector<2x32xf32>
    %93 = arith.mulf %90, %92 : vector<2x32xf32>
    %94 = arith.addf %89, %93 : vector<2x32xf32>
    %95 = vector.extract_strided_slice %18 {offsets = [0, 480], sizes = [2, 32], strides = [1, 1]} : vector<2x1536xf32> to vector<2x32xf32>
    %96 = vector.extract_strided_slice %1 {offsets = [0, 15], sizes = [2, 1], strides = [1, 1]} : vector<2x16xf32> to vector<2x1xf32>
    %97 = vector.broadcast %96 : vector<2x1xf32> to vector<2x32xf32>
    %98 = arith.mulf %95, %97 : vector<2x32xf32>
    %99 = arith.addf %94, %98 : vector<2x32xf32>
    %100 = vector.extract_strided_slice %18 {offsets = [0, 1152], sizes = [2, 16], strides = [1, 1]} : vector<2x1536xf32> to vector<2x16xf32>
    %101 = vector.extract_strided_slice %18 {offsets = [0, 640], sizes = [2, 16], strides = [1, 1]} : vector<2x1536xf32> to vector<2x16xf32>
    %102 = vector.extract_strided_slice %99 {offsets = [0, 0], sizes = [2, 1], strides = [1, 1]} : vector<2x32xf32> to vector<2x1xf32>
    %103 = vector.broadcast %102 : vector<2x1xf32> to vector<2x16xf32>
    %104 = arith.mulf %101, %103 : vector<2x16xf32>
    %105 = arith.addf %100, %104 : vector<2x16xf32>
    %106 = vector.extract_strided_slice %18 {offsets = [0, 656], sizes = [2, 16], strides = [1, 1]} : vector<2x1536xf32> to vector<2x16xf32>
    %107 = vector.extract_strided_slice %99 {offsets = [0, 1], sizes = [2, 1], strides = [1, 1]} : vector<2x32xf32> to vector<2x1xf32>
    %108 = vector.broadcast %107 : vector<2x1xf32> to vector<2x16xf32>
    %109 = arith.mulf %106, %108 : vector<2x16xf32>
    %110 = arith.addf %105, %109 : vector<2x16xf32>
    %111 = vector.extract_strided_slice %18 {offsets = [0, 672], sizes = [2, 16], strides = [1, 1]} : vector<2x1536xf32> to vector<2x16xf32>
    %112 = vector.extract_strided_slice %99 {offsets = [0, 2], sizes = [2, 1], strides = [1, 1]} : vector<2x32xf32> to vector<2x1xf32>
    %113 = vector.broadcast %112 : vector<2x1xf32> to vector<2x16xf32>
    %114 = arith.mulf %111, %113 : vector<2x16xf32>
    %115 = arith.addf %110, %114 : vector<2x16xf32>
    %116 = vector.extract_strided_slice %18 {offsets = [0, 688], sizes = [2, 16], strides = [1, 1]} : vector<2x1536xf32> to vector<2x16xf32>
    %117 = vector.extract_strided_slice %99 {offsets = [0, 3], sizes = [2, 1], strides = [1, 1]} : vector<2x32xf32> to vector<2x1xf32>
    %118 = vector.broadcast %117 : vector<2x1xf32> to vector<2x16xf32>
    %119 = arith.mulf %116, %118 : vector<2x16xf32>
    %120 = arith.addf %115, %119 : vector<2x16xf32>
    %121 = vector.extract_strided_slice %18 {offsets = [0, 704], sizes = [2, 16], strides = [1, 1]} : vector<2x1536xf32> to vector<2x16xf32>
    %122 = vector.extract_strided_slice %99 {offsets = [0, 4], sizes = [2, 1], strides = [1, 1]} : vector<2x32xf32> to vector<2x1xf32>
    %123 = vector.broadcast %122 : vector<2x1xf32> to vector<2x16xf32>
    %124 = arith.mulf %121, %123 : vector<2x16xf32>
    %125 = arith.addf %120, %124 : vector<2x16xf32>
    %126 = vector.extract_strided_slice %18 {offsets = [0, 720], sizes = [2, 16], strides = [1, 1]} : vector<2x1536xf32> to vector<2x16xf32>
    %127 = vector.extract_strided_slice %99 {offsets = [0, 5], sizes = [2, 1], strides = [1, 1]} : vector<2x32xf32> to vector<2x1xf32>
    %128 = vector.broadcast %127 : vector<2x1xf32> to vector<2x16xf32>
    %129 = arith.mulf %126, %128 : vector<2x16xf32>
    %130 = arith.addf %125, %129 : vector<2x16xf32>
    %131 = vector.extract_strided_slice %18 {offsets = [0, 736], sizes = [2, 16], strides = [1, 1]} : vector<2x1536xf32> to vector<2x16xf32>
    %132 = vector.extract_strided_slice %99 {offsets = [0, 6], sizes = [2, 1], strides = [1, 1]} : vector<2x32xf32> to vector<2x1xf32>
    %133 = vector.broadcast %132 : vector<2x1xf32> to vector<2x16xf32>
    %134 = arith.mulf %131, %133 : vector<2x16xf32>
    %135 = arith.addf %130, %134 : vector<2x16xf32>
    %136 = vector.extract_strided_slice %18 {offsets = [0, 752], sizes = [2, 16], strides = [1, 1]} : vector<2x1536xf32> to vector<2x16xf32>
    %137 = vector.extract_strided_slice %99 {offsets = [0, 7], sizes = [2, 1], strides = [1, 1]} : vector<2x32xf32> to vector<2x1xf32>
    %138 = vector.broadcast %137 : vector<2x1xf32> to vector<2x16xf32>
    %139 = arith.mulf %136, %138 : vector<2x16xf32>
    %140 = arith.addf %135, %139 : vector<2x16xf32>
    %141 = vector.extract_strided_slice %18 {offsets = [0, 768], sizes = [2, 16], strides = [1, 1]} : vector<2x1536xf32> to vector<2x16xf32>
    %142 = vector.extract_strided_slice %99 {offsets = [0, 8], sizes = [2, 1], strides = [1, 1]} : vector<2x32xf32> to vector<2x1xf32>
    %143 = vector.broadcast %142 : vector<2x1xf32> to vector<2x16xf32>
    %144 = arith.mulf %141, %143 : vector<2x16xf32>
    %145 = arith.addf %140, %144 : vector<2x16xf32>
    %146 = vector.extract_strided_slice %18 {offsets = [0, 784], sizes = [2, 16], strides = [1, 1]} : vector<2x1536xf32> to vector<2x16xf32>
    %147 = vector.extract_strided_slice %99 {offsets = [0, 9], sizes = [2, 1], strides = [1, 1]} : vector<2x32xf32> to vector<2x1xf32>
    %148 = vector.broadcast %147 : vector<2x1xf32> to vector<2x16xf32>
    %149 = arith.mulf %146, %148 : vector<2x16xf32>
    %150 = arith.addf %145, %149 : vector<2x16xf32>
    %151 = vector.extract_strided_slice %18 {offsets = [0, 800], sizes = [2, 16], strides = [1, 1]} : vector<2x1536xf32> to vector<2x16xf32>
    %152 = vector.extract_strided_slice %99 {offsets = [0, 10], sizes = [2, 1], strides = [1, 1]} : vector<2x32xf32> to vector<2x1xf32>
    %153 = vector.broadcast %152 : vector<2x1xf32> to vector<2x16xf32>
    %154 = arith.mulf %151, %153 : vector<2x16xf32>
    %155 = arith.addf %150, %154 : vector<2x16xf32>
    %156 = vector.extract_strided_slice %18 {offsets = [0, 816], sizes = [2, 16], strides = [1, 1]} : vector<2x1536xf32> to vector<2x16xf32>
    %157 = vector.extract_strided_slice %99 {offsets = [0, 11], sizes = [2, 1], strides = [1, 1]} : vector<2x32xf32> to vector<2x1xf32>
    %158 = vector.broadcast %157 : vector<2x1xf32> to vector<2x16xf32>
    %159 = arith.mulf %156, %158 : vector<2x16xf32>
    %160 = arith.addf %155, %159 : vector<2x16xf32>
    %161 = vector.extract_strided_slice %18 {offsets = [0, 832], sizes = [2, 16], strides = [1, 1]} : vector<2x1536xf32> to vector<2x16xf32>
    %162 = vector.extract_strided_slice %99 {offsets = [0, 12], sizes = [2, 1], strides = [1, 1]} : vector<2x32xf32> to vector<2x1xf32>
    %163 = vector.broadcast %162 : vector<2x1xf32> to vector<2x16xf32>
    %164 = arith.mulf %161, %163 : vector<2x16xf32>
    %165 = arith.addf %160, %164 : vector<2x16xf32>
    %166 = vector.extract_strided_slice %18 {offsets = [0, 848], sizes = [2, 16], strides = [1, 1]} : vector<2x1536xf32> to vector<2x16xf32>
    %167 = vector.extract_strided_slice %99 {offsets = [0, 13], sizes = [2, 1], strides = [1, 1]} : vector<2x32xf32> to vector<2x1xf32>
    %168 = vector.broadcast %167 : vector<2x1xf32> to vector<2x16xf32>
    %169 = arith.mulf %166, %168 : vector<2x16xf32>
    %170 = arith.addf %165, %169 : vector<2x16xf32>
    %171 = vector.extract_strided_slice %18 {offsets = [0, 864], sizes = [2, 16], strides = [1, 1]} : vector<2x1536xf32> to vector<2x16xf32>
    %172 = vector.extract_strided_slice %99 {offsets = [0, 14], sizes = [2, 1], strides = [1, 1]} : vector<2x32xf32> to vector<2x1xf32>
    %173 = vector.broadcast %172 : vector<2x1xf32> to vector<2x16xf32>
    %174 = arith.mulf %171, %173 : vector<2x16xf32>
    %175 = arith.addf %170, %174 : vector<2x16xf32>
    %176 = vector.extract_strided_slice %18 {offsets = [0, 880], sizes = [2, 16], strides = [1, 1]} : vector<2x1536xf32> to vector<2x16xf32>
    %177 = vector.extract_strided_slice %99 {offsets = [0, 15], sizes = [2, 1], strides = [1, 1]} : vector<2x32xf32> to vector<2x1xf32>
    %178 = vector.broadcast %177 : vector<2x1xf32> to vector<2x16xf32>
    %179 = arith.mulf %176, %178 : vector<2x16xf32>
    %180 = arith.addf %175, %179 : vector<2x16xf32>
    %181 = vector.extract_strided_slice %18 {offsets = [0, 896], sizes = [2, 16], strides = [1, 1]} : vector<2x1536xf32> to vector<2x16xf32>
    %182 = vector.extract_strided_slice %99 {offsets = [0, 16], sizes = [2, 1], strides = [1, 1]} : vector<2x32xf32> to vector<2x1xf32>
    %183 = vector.broadcast %182 : vector<2x1xf32> to vector<2x16xf32>
    %184 = arith.mulf %181, %183 : vector<2x16xf32>
    %185 = arith.addf %180, %184 : vector<2x16xf32>
    %186 = vector.extract_strided_slice %18 {offsets = [0, 912], sizes = [2, 16], strides = [1, 1]} : vector<2x1536xf32> to vector<2x16xf32>
    %187 = vector.extract_strided_slice %99 {offsets = [0, 17], sizes = [2, 1], strides = [1, 1]} : vector<2x32xf32> to vector<2x1xf32>
    %188 = vector.broadcast %187 : vector<2x1xf32> to vector<2x16xf32>
    %189 = arith.mulf %186, %188 : vector<2x16xf32>
    %190 = arith.addf %185, %189 : vector<2x16xf32>
    %191 = vector.extract_strided_slice %18 {offsets = [0, 928], sizes = [2, 16], strides = [1, 1]} : vector<2x1536xf32> to vector<2x16xf32>
    %192 = vector.extract_strided_slice %99 {offsets = [0, 18], sizes = [2, 1], strides = [1, 1]} : vector<2x32xf32> to vector<2x1xf32>
    %193 = vector.broadcast %192 : vector<2x1xf32> to vector<2x16xf32>
    %194 = arith.mulf %191, %193 : vector<2x16xf32>
    %195 = arith.addf %190, %194 : vector<2x16xf32>
    %196 = vector.extract_strided_slice %18 {offsets = [0, 944], sizes = [2, 16], strides = [1, 1]} : vector<2x1536xf32> to vector<2x16xf32>
    %197 = vector.extract_strided_slice %99 {offsets = [0, 19], sizes = [2, 1], strides = [1, 1]} : vector<2x32xf32> to vector<2x1xf32>
    %198 = vector.broadcast %197 : vector<2x1xf32> to vector<2x16xf32>
    %199 = arith.mulf %196, %198 : vector<2x16xf32>
    %200 = arith.addf %195, %199 : vector<2x16xf32>
    %201 = vector.extract_strided_slice %18 {offsets = [0, 960], sizes = [2, 16], strides = [1, 1]} : vector<2x1536xf32> to vector<2x16xf32>
    %202 = vector.extract_strided_slice %99 {offsets = [0, 20], sizes = [2, 1], strides = [1, 1]} : vector<2x32xf32> to vector<2x1xf32>
    %203 = vector.broadcast %202 : vector<2x1xf32> to vector<2x16xf32>
    %204 = arith.mulf %201, %203 : vector<2x16xf32>
    %205 = arith.addf %200, %204 : vector<2x16xf32>
    %206 = vector.extract_strided_slice %18 {offsets = [0, 976], sizes = [2, 16], strides = [1, 1]} : vector<2x1536xf32> to vector<2x16xf32>
    %207 = vector.extract_strided_slice %99 {offsets = [0, 21], sizes = [2, 1], strides = [1, 1]} : vector<2x32xf32> to vector<2x1xf32>
    %208 = vector.broadcast %207 : vector<2x1xf32> to vector<2x16xf32>
    %209 = arith.mulf %206, %208 : vector<2x16xf32>
    %210 = arith.addf %205, %209 : vector<2x16xf32>
    %211 = vector.extract_strided_slice %18 {offsets = [0, 992], sizes = [2, 16], strides = [1, 1]} : vector<2x1536xf32> to vector<2x16xf32>
    %212 = vector.extract_strided_slice %99 {offsets = [0, 22], sizes = [2, 1], strides = [1, 1]} : vector<2x32xf32> to vector<2x1xf32>
    %213 = vector.broadcast %212 : vector<2x1xf32> to vector<2x16xf32>
    %214 = arith.mulf %211, %213 : vector<2x16xf32>
    %215 = arith.addf %210, %214 : vector<2x16xf32>
    %216 = vector.extract_strided_slice %18 {offsets = [0, 1008], sizes = [2, 16], strides = [1, 1]} : vector<2x1536xf32> to vector<2x16xf32>
    %217 = vector.extract_strided_slice %99 {offsets = [0, 23], sizes = [2, 1], strides = [1, 1]} : vector<2x32xf32> to vector<2x1xf32>
    %218 = vector.broadcast %217 : vector<2x1xf32> to vector<2x16xf32>
    %219 = arith.mulf %216, %218 : vector<2x16xf32>
    %220 = arith.addf %215, %219 : vector<2x16xf32>
    %221 = vector.extract_strided_slice %18 {offsets = [0, 1024], sizes = [2, 16], strides = [1, 1]} : vector<2x1536xf32> to vector<2x16xf32>
    %222 = vector.extract_strided_slice %99 {offsets = [0, 24], sizes = [2, 1], strides = [1, 1]} : vector<2x32xf32> to vector<2x1xf32>
    %223 = vector.broadcast %222 : vector<2x1xf32> to vector<2x16xf32>
    %224 = arith.mulf %221, %223 : vector<2x16xf32>
    %225 = arith.addf %220, %224 : vector<2x16xf32>
    %226 = vector.extract_strided_slice %18 {offsets = [0, 1040], sizes = [2, 16], strides = [1, 1]} : vector<2x1536xf32> to vector<2x16xf32>
    %227 = vector.extract_strided_slice %99 {offsets = [0, 25], sizes = [2, 1], strides = [1, 1]} : vector<2x32xf32> to vector<2x1xf32>
    %228 = vector.broadcast %227 : vector<2x1xf32> to vector<2x16xf32>
    %229 = arith.mulf %226, %228 : vector<2x16xf32>
    %230 = arith.addf %225, %229 : vector<2x16xf32>
    %231 = vector.extract_strided_slice %18 {offsets = [0, 1056], sizes = [2, 16], strides = [1, 1]} : vector<2x1536xf32> to vector<2x16xf32>
    %232 = vector.extract_strided_slice %99 {offsets = [0, 26], sizes = [2, 1], strides = [1, 1]} : vector<2x32xf32> to vector<2x1xf32>
    %233 = vector.broadcast %232 : vector<2x1xf32> to vector<2x16xf32>
    %234 = arith.mulf %231, %233 : vector<2x16xf32>
    %235 = arith.addf %230, %234 : vector<2x16xf32>
    %236 = vector.extract_strided_slice %18 {offsets = [0, 1072], sizes = [2, 16], strides = [1, 1]} : vector<2x1536xf32> to vector<2x16xf32>
    %237 = vector.extract_strided_slice %99 {offsets = [0, 27], sizes = [2, 1], strides = [1, 1]} : vector<2x32xf32> to vector<2x1xf32>
    %238 = vector.broadcast %237 : vector<2x1xf32> to vector<2x16xf32>
    %239 = arith.mulf %236, %238 : vector<2x16xf32>
    %240 = arith.addf %235, %239 : vector<2x16xf32>
    %241 = vector.extract_strided_slice %18 {offsets = [0, 1088], sizes = [2, 16], strides = [1, 1]} : vector<2x1536xf32> to vector<2x16xf32>
    %242 = vector.extract_strided_slice %99 {offsets = [0, 28], sizes = [2, 1], strides = [1, 1]} : vector<2x32xf32> to vector<2x1xf32>
    %243 = vector.broadcast %242 : vector<2x1xf32> to vector<2x16xf32>
    %244 = arith.mulf %241, %243 : vector<2x16xf32>
    %245 = arith.addf %240, %244 : vector<2x16xf32>
    %246 = vector.extract_strided_slice %18 {offsets = [0, 1104], sizes = [2, 16], strides = [1, 1]} : vector<2x1536xf32> to vector<2x16xf32>
    %247 = vector.extract_strided_slice %99 {offsets = [0, 29], sizes = [2, 1], strides = [1, 1]} : vector<2x32xf32> to vector<2x1xf32>
    %248 = vector.broadcast %247 : vector<2x1xf32> to vector<2x16xf32>
    %249 = arith.mulf %246, %248 : vector<2x16xf32>
    %250 = arith.addf %245, %249 : vector<2x16xf32>
    %251 = vector.extract_strided_slice %18 {offsets = [0, 1120], sizes = [2, 16], strides = [1, 1]} : vector<2x1536xf32> to vector<2x16xf32>
    %252 = vector.extract_strided_slice %99 {offsets = [0, 30], sizes = [2, 1], strides = [1, 1]} : vector<2x32xf32> to vector<2x1xf32>
    %253 = vector.broadcast %252 : vector<2x1xf32> to vector<2x16xf32>
    %254 = arith.mulf %251, %253 : vector<2x16xf32>
    %255 = arith.addf %250, %254 : vector<2x16xf32>
    %256 = vector.extract_strided_slice %18 {offsets = [0, 1136], sizes = [2, 16], strides = [1, 1]} : vector<2x1536xf32> to vector<2x16xf32>
    %257 = vector.extract_strided_slice %99 {offsets = [0, 31], sizes = [2, 1], strides = [1, 1]} : vector<2x32xf32> to vector<2x1xf32>
    %258 = vector.broadcast %257 : vector<2x1xf32> to vector<2x16xf32>
    %259 = arith.mulf %256, %258 : vector<2x16xf32>
    %260 = arith.addf %255, %259 : vector<2x16xf32>
    %261 = math.tanh %260 : vector<2x16xf32>
    %262 = vector.extract_strided_slice %18 {offsets = [0, 1408], sizes = [2, 8], strides = [1, 1]} : vector<2x1536xf32> to vector<2x8xf32>
    %263 = vector.extract_strided_slice %18 {offsets = [0, 1280], sizes = [2, 8], strides = [1, 1]} : vector<2x1536xf32> to vector<2x8xf32>
    %264 = vector.extract_strided_slice %261 {offsets = [0, 0], sizes = [2, 1], strides = [1, 1]} : vector<2x16xf32> to vector<2x1xf32>
    %265 = vector.broadcast %264 : vector<2x1xf32> to vector<2x8xf32>
    %266 = arith.mulf %263, %265 : vector<2x8xf32>
    %267 = arith.addf %262, %266 : vector<2x8xf32>
    %268 = vector.extract_strided_slice %18 {offsets = [0, 1288], sizes = [2, 8], strides = [1, 1]} : vector<2x1536xf32> to vector<2x8xf32>
    %269 = vector.extract_strided_slice %261 {offsets = [0, 1], sizes = [2, 1], strides = [1, 1]} : vector<2x16xf32> to vector<2x1xf32>
    %270 = vector.broadcast %269 : vector<2x1xf32> to vector<2x8xf32>
    %271 = arith.mulf %268, %270 : vector<2x8xf32>
    %272 = arith.addf %267, %271 : vector<2x8xf32>
    %273 = vector.extract_strided_slice %18 {offsets = [0, 1296], sizes = [2, 8], strides = [1, 1]} : vector<2x1536xf32> to vector<2x8xf32>
    %274 = vector.extract_strided_slice %261 {offsets = [0, 2], sizes = [2, 1], strides = [1, 1]} : vector<2x16xf32> to vector<2x1xf32>
    %275 = vector.broadcast %274 : vector<2x1xf32> to vector<2x8xf32>
    %276 = arith.mulf %273, %275 : vector<2x8xf32>
    %277 = arith.addf %272, %276 : vector<2x8xf32>
    %278 = vector.extract_strided_slice %18 {offsets = [0, 1304], sizes = [2, 8], strides = [1, 1]} : vector<2x1536xf32> to vector<2x8xf32>
    %279 = vector.extract_strided_slice %261 {offsets = [0, 3], sizes = [2, 1], strides = [1, 1]} : vector<2x16xf32> to vector<2x1xf32>
    %280 = vector.broadcast %279 : vector<2x1xf32> to vector<2x8xf32>
    %281 = arith.mulf %278, %280 : vector<2x8xf32>
    %282 = arith.addf %277, %281 : vector<2x8xf32>
    %283 = vector.extract_strided_slice %18 {offsets = [0, 1312], sizes = [2, 8], strides = [1, 1]} : vector<2x1536xf32> to vector<2x8xf32>
    %284 = vector.extract_strided_slice %261 {offsets = [0, 4], sizes = [2, 1], strides = [1, 1]} : vector<2x16xf32> to vector<2x1xf32>
    %285 = vector.broadcast %284 : vector<2x1xf32> to vector<2x8xf32>
    %286 = arith.mulf %283, %285 : vector<2x8xf32>
    %287 = arith.addf %282, %286 : vector<2x8xf32>
    %288 = vector.extract_strided_slice %18 {offsets = [0, 1320], sizes = [2, 8], strides = [1, 1]} : vector<2x1536xf32> to vector<2x8xf32>
    %289 = vector.extract_strided_slice %261 {offsets = [0, 5], sizes = [2, 1], strides = [1, 1]} : vector<2x16xf32> to vector<2x1xf32>
    %290 = vector.broadcast %289 : vector<2x1xf32> to vector<2x8xf32>
    %291 = arith.mulf %288, %290 : vector<2x8xf32>
    %292 = arith.addf %287, %291 : vector<2x8xf32>
    %293 = vector.extract_strided_slice %18 {offsets = [0, 1328], sizes = [2, 8], strides = [1, 1]} : vector<2x1536xf32> to vector<2x8xf32>
    %294 = vector.extract_strided_slice %261 {offsets = [0, 6], sizes = [2, 1], strides = [1, 1]} : vector<2x16xf32> to vector<2x1xf32>
    %295 = vector.broadcast %294 : vector<2x1xf32> to vector<2x8xf32>
    %296 = arith.mulf %293, %295 : vector<2x8xf32>
    %297 = arith.addf %292, %296 : vector<2x8xf32>
    %298 = vector.extract_strided_slice %18 {offsets = [0, 1336], sizes = [2, 8], strides = [1, 1]} : vector<2x1536xf32> to vector<2x8xf32>
    %299 = vector.extract_strided_slice %261 {offsets = [0, 7], sizes = [2, 1], strides = [1, 1]} : vector<2x16xf32> to vector<2x1xf32>
    %300 = vector.broadcast %299 : vector<2x1xf32> to vector<2x8xf32>
    %301 = arith.mulf %298, %300 : vector<2x8xf32>
    %302 = arith.addf %297, %301 : vector<2x8xf32>
    %303 = vector.extract_strided_slice %18 {offsets = [0, 1344], sizes = [2, 8], strides = [1, 1]} : vector<2x1536xf32> to vector<2x8xf32>
    %304 = vector.extract_strided_slice %261 {offsets = [0, 8], sizes = [2, 1], strides = [1, 1]} : vector<2x16xf32> to vector<2x1xf32>
    %305 = vector.broadcast %304 : vector<2x1xf32> to vector<2x8xf32>
    %306 = arith.mulf %303, %305 : vector<2x8xf32>
    %307 = arith.addf %302, %306 : vector<2x8xf32>
    %308 = vector.extract_strided_slice %18 {offsets = [0, 1352], sizes = [2, 8], strides = [1, 1]} : vector<2x1536xf32> to vector<2x8xf32>
    %309 = vector.extract_strided_slice %261 {offsets = [0, 9], sizes = [2, 1], strides = [1, 1]} : vector<2x16xf32> to vector<2x1xf32>
    %310 = vector.broadcast %309 : vector<2x1xf32> to vector<2x8xf32>
    %311 = arith.mulf %308, %310 : vector<2x8xf32>
    %312 = arith.addf %307, %311 : vector<2x8xf32>
    %313 = vector.extract_strided_slice %18 {offsets = [0, 1360], sizes = [2, 8], strides = [1, 1]} : vector<2x1536xf32> to vector<2x8xf32>
    %314 = vector.extract_strided_slice %261 {offsets = [0, 10], sizes = [2, 1], strides = [1, 1]} : vector<2x16xf32> to vector<2x1xf32>
    %315 = vector.broadcast %314 : vector<2x1xf32> to vector<2x8xf32>
    %316 = arith.mulf %313, %315 : vector<2x8xf32>
    %317 = arith.addf %312, %316 : vector<2x8xf32>
    %318 = vector.extract_strided_slice %18 {offsets = [0, 1368], sizes = [2, 8], strides = [1, 1]} : vector<2x1536xf32> to vector<2x8xf32>
    %319 = vector.extract_strided_slice %261 {offsets = [0, 11], sizes = [2, 1], strides = [1, 1]} : vector<2x16xf32> to vector<2x1xf32>
    %320 = vector.broadcast %319 : vector<2x1xf32> to vector<2x8xf32>
    %321 = arith.mulf %318, %320 : vector<2x8xf32>
    %322 = arith.addf %317, %321 : vector<2x8xf32>
    %323 = vector.extract_strided_slice %18 {offsets = [0, 1376], sizes = [2, 8], strides = [1, 1]} : vector<2x1536xf32> to vector<2x8xf32>
    %324 = vector.extract_strided_slice %261 {offsets = [0, 12], sizes = [2, 1], strides = [1, 1]} : vector<2x16xf32> to vector<2x1xf32>
    %325 = vector.broadcast %324 : vector<2x1xf32> to vector<2x8xf32>
    %326 = arith.mulf %323, %325 : vector<2x8xf32>
    %327 = arith.addf %322, %326 : vector<2x8xf32>
    %328 = vector.extract_strided_slice %18 {offsets = [0, 1384], sizes = [2, 8], strides = [1, 1]} : vector<2x1536xf32> to vector<2x8xf32>
    %329 = vector.extract_strided_slice %261 {offsets = [0, 13], sizes = [2, 1], strides = [1, 1]} : vector<2x16xf32> to vector<2x1xf32>
    %330 = vector.broadcast %329 : vector<2x1xf32> to vector<2x8xf32>
    %331 = arith.mulf %328, %330 : vector<2x8xf32>
    %332 = arith.addf %327, %331 : vector<2x8xf32>
    %333 = vector.extract_strided_slice %18 {offsets = [0, 1392], sizes = [2, 8], strides = [1, 1]} : vector<2x1536xf32> to vector<2x8xf32>
    %334 = vector.extract_strided_slice %261 {offsets = [0, 14], sizes = [2, 1], strides = [1, 1]} : vector<2x16xf32> to vector<2x1xf32>
    %335 = vector.broadcast %334 : vector<2x1xf32> to vector<2x8xf32>
    %336 = arith.mulf %333, %335 : vector<2x8xf32>
    %337 = arith.addf %332, %336 : vector<2x8xf32>
    %338 = vector.extract_strided_slice %18 {offsets = [0, 1400], sizes = [2, 8], strides = [1, 1]} : vector<2x1536xf32> to vector<2x8xf32>
    %339 = vector.extract_strided_slice %261 {offsets = [0, 15], sizes = [2, 1], strides = [1, 1]} : vector<2x16xf32> to vector<2x1xf32>
    %340 = vector.broadcast %339 : vector<2x1xf32> to vector<2x8xf32>
    %341 = arith.mulf %338, %340 : vector<2x8xf32>
    %342 = arith.addf %337, %341 : vector<2x8xf32>
    %c0_17 = arith.constant 0 : index
    %c0_18 = arith.constant 0 : index
    %343 = vector.load %arg15[%c0_17, %c0_18] : memref<2x8xf32, #tpu.memory_space<vmem>>, vector<2x8xf32>
    tpu.vector_store %arg15[%c0_17, %c0_18], %342 {strides = array<i32>} : memref<2x8xf32, #tpu.memory_space<vmem>>, vector<2x8xf32>,
    %c0_19 = arith.constant 0 : index
    %c0_20 = arith.constant 0 : index
    %344 = vector.load %arg9[%c0_19, %c0_20] : memref<4x32xf32, #tpu.memory_space<vmem>>, vector<4x32xf32>
    %c0_21 = arith.constant 0 : index
    %c0_22 = arith.constant 0 : index
    %345 = vector.load %arg10[%c0_21, %c0_22] : memref<1x32xf32, #tpu.memory_space<vmem>>, vector<1x32xf32>
    %cst_23 = arith.constant dense<0.000000e+00> : vector<2x32xf32>
    %346 = tpu.matmul %0, %344, %cst_23 {dimension_numbers = #tpu.dot_dimension_numbers<[1], [0], [0], [1], [0, 0, 1, 1], [], []>} : vector<2x4xf32>, vector<4x32xf32>, vector<2x32xf32> -> vector<2x32xf32>
    %347 = vector.broadcast %345 : vector<1x32xf32> to vector<2x32xf32>
    %348 = arith.addf %346, %347 : vector<2x32xf32>
    %349 = math.tanh %348 : vector<2x32xf32>
    %c0_24 = arith.constant 0 : index
    %c0_25 = arith.constant 0 : index
    %350 = vector.load %arg11[%c0_24, %c0_25] : memref<32x32xf32, #tpu.memory_space<vmem>>, vector<32x32xf32>
    %c0_26 = arith.constant 0 : index
    %c0_27 = arith.constant 0 : index
    %351 = vector.load %arg12[%c0_26, %c0_27] : memref<1x32xf32, #tpu.memory_space<vmem>>, vector<1x32xf32>
    %cst_28 = arith.constant dense<0.000000e+00> : vector<2x32xf32>
    %352 = tpu.matmul %349, %350, %cst_28 {dimension_numbers = #tpu.dot_dimension_numbers<[1], [0], [0], [1], [0, 0, 1, 1], [], []>} : vector<2x32xf32>, vector<32x32xf32>, vector<2x32xf32> -> vector<2x32xf32>
    %353 = vector.broadcast %351 : vector<1x32xf32> to vector<2x32xf32>
    %354 = arith.addf %352, %353 : vector<2x32xf32>
    %355 = math.tanh %354 : vector<2x32xf32>
    %c0_29 = arith.constant 0 : index
    %c0_30 = arith.constant 0 : index
    %356 = vector.load %arg13[%c0_29, %c0_30] : memref<32x1536xf32, #tpu.memory_space<vmem>>, vector<32x1536xf32>
    %c0_31 = arith.constant 0 : index
    %c0_32 = arith.constant 0 : index
    %357 = vector.load %arg14[%c0_31, %c0_32] : memref<1x1536xf32, #tpu.memory_space<vmem>>, vector<1x1536xf32>
    %cst_33 = arith.constant dense<0.000000e+00> : vector<2x1536xf32>
    %358 = tpu.matmul %355, %356, %cst_33 {dimension_numbers = #tpu.dot_dimension_numbers<[1], [0], [0], [1], [0, 0, 1, 1], [], []>} : vector<2x32xf32>, vector<32x1536xf32>, vector<2x1536xf32> -> vector<2x1536xf32>
    %359 = vector.broadcast %357 : vector<1x1536xf32> to vector<2x1536xf32>
    %360 = arith.addf %358, %359 : vector<2x1536xf32>
    %361 = vector.extract_strided_slice %360 {offsets = [0, 128], sizes = [2, 16], strides = [1, 1]} : vector<2x1536xf32> to vector<2x16xf32>
    %362 = vector.extract_strided_slice %360 {offsets = [0, 0], sizes = [2, 16], strides = [1, 1]} : vector<2x1536xf32> to vector<2x16xf32>
    %363 = vector.extract_strided_slice %342 {offsets = [0, 0], sizes = [2, 1], strides = [1, 1]} : vector<2x8xf32> to vector<2x1xf32>
    %364 = vector.broadcast %363 : vector<2x1xf32> to vector<2x16xf32>
    %365 = arith.mulf %362, %364 : vector<2x16xf32>
    %366 = arith.addf %361, %365 : vector<2x16xf32>
    %367 = vector.extract_strided_slice %360 {offsets = [0, 16], sizes = [2, 16], strides = [1, 1]} : vector<2x1536xf32> to vector<2x16xf32>
    %368 = vector.extract_strided_slice %342 {offsets = [0, 1], sizes = [2, 1], strides = [1, 1]} : vector<2x8xf32> to vector<2x1xf32>
    %369 = vector.broadcast %368 : vector<2x1xf32> to vector<2x16xf32>
    %370 = arith.mulf %367, %369 : vector<2x16xf32>
    %371 = arith.addf %366, %370 : vector<2x16xf32>
    %372 = vector.extract_strided_slice %360 {offsets = [0, 32], sizes = [2, 16], strides = [1, 1]} : vector<2x1536xf32> to vector<2x16xf32>
    %373 = vector.extract_strided_slice %342 {offsets = [0, 2], sizes = [2, 1], strides = [1, 1]} : vector<2x8xf32> to vector<2x1xf32>
    %374 = vector.broadcast %373 : vector<2x1xf32> to vector<2x16xf32>
    %375 = arith.mulf %372, %374 : vector<2x16xf32>
    %376 = arith.addf %371, %375 : vector<2x16xf32>
    %377 = vector.extract_strided_slice %360 {offsets = [0, 48], sizes = [2, 16], strides = [1, 1]} : vector<2x1536xf32> to vector<2x16xf32>
    %378 = vector.extract_strided_slice %342 {offsets = [0, 3], sizes = [2, 1], strides = [1, 1]} : vector<2x8xf32> to vector<2x1xf32>
    %379 = vector.broadcast %378 : vector<2x1xf32> to vector<2x16xf32>
    %380 = arith.mulf %377, %379 : vector<2x16xf32>
    %381 = arith.addf %376, %380 : vector<2x16xf32>
    %382 = vector.extract_strided_slice %360 {offsets = [0, 64], sizes = [2, 16], strides = [1, 1]} : vector<2x1536xf32> to vector<2x16xf32>
    %383 = vector.extract_strided_slice %342 {offsets = [0, 4], sizes = [2, 1], strides = [1, 1]} : vector<2x8xf32> to vector<2x1xf32>
    %384 = vector.broadcast %383 : vector<2x1xf32> to vector<2x16xf32>
    %385 = arith.mulf %382, %384 : vector<2x16xf32>
    %386 = arith.addf %381, %385 : vector<2x16xf32>
    %387 = vector.extract_strided_slice %360 {offsets = [0, 80], sizes = [2, 16], strides = [1, 1]} : vector<2x1536xf32> to vector<2x16xf32>
    %388 = vector.extract_strided_slice %342 {offsets = [0, 5], sizes = [2, 1], strides = [1, 1]} : vector<2x8xf32> to vector<2x1xf32>
    %389 = vector.broadcast %388 : vector<2x1xf32> to vector<2x16xf32>
    %390 = arith.mulf %387, %389 : vector<2x16xf32>
    %391 = arith.addf %386, %390 : vector<2x16xf32>
    %392 = vector.extract_strided_slice %360 {offsets = [0, 96], sizes = [2, 16], strides = [1, 1]} : vector<2x1536xf32> to vector<2x16xf32>
    %393 = vector.extract_strided_slice %342 {offsets = [0, 6], sizes = [2, 1], strides = [1, 1]} : vector<2x8xf32> to vector<2x1xf32>
    %394 = vector.broadcast %393 : vector<2x1xf32> to vector<2x16xf32>
    %395 = arith.mulf %392, %394 : vector<2x16xf32>
    %396 = arith.addf %391, %395 : vector<2x16xf32>
    %397 = vector.extract_strided_slice %360 {offsets = [0, 112], sizes = [2, 16], strides = [1, 1]} : vector<2x1536xf32> to vector<2x16xf32>
    %398 = vector.extract_strided_slice %342 {offsets = [0, 7], sizes = [2, 1], strides = [1, 1]} : vector<2x8xf32> to vector<2x1xf32>
    %399 = vector.broadcast %398 : vector<2x1xf32> to vector<2x16xf32>
    %400 = arith.mulf %397, %399 : vector<2x16xf32>
    %401 = arith.addf %396, %400 : vector<2x16xf32>
    %402 = vector.extract_strided_slice %360 {offsets = [0, 768], sizes = [2, 32], strides = [1, 1]} : vector<2x1536xf32> to vector<2x32xf32>
    %403 = vector.extract_strided_slice %360 {offsets = [0, 256], sizes = [2, 32], strides = [1, 1]} : vector<2x1536xf32> to vector<2x32xf32>
    %404 = vector.extract_strided_slice %401 {offsets = [0, 0], sizes = [2, 1], strides = [1, 1]} : vector<2x16xf32> to vector<2x1xf32>
    %405 = vector.broadcast %404 : vector<2x1xf32> to vector<2x32xf32>
    %406 = arith.mulf %403, %405 : vector<2x32xf32>
    %407 = arith.addf %402, %406 : vector<2x32xf32>
    %408 = vector.extract_strided_slice %360 {offsets = [0, 288], sizes = [2, 32], strides = [1, 1]} : vector<2x1536xf32> to vector<2x32xf32>
    %409 = vector.extract_strided_slice %401 {offsets = [0, 1], sizes = [2, 1], strides = [1, 1]} : vector<2x16xf32> to vector<2x1xf32>
    %410 = vector.broadcast %409 : vector<2x1xf32> to vector<2x32xf32>
    %411 = arith.mulf %408, %410 : vector<2x32xf32>
    %412 = arith.addf %407, %411 : vector<2x32xf32>
    %413 = vector.extract_strided_slice %360 {offsets = [0, 320], sizes = [2, 32], strides = [1, 1]} : vector<2x1536xf32> to vector<2x32xf32>
    %414 = vector.extract_strided_slice %401 {offsets = [0, 2], sizes = [2, 1], strides = [1, 1]} : vector<2x16xf32> to vector<2x1xf32>
    %415 = vector.broadcast %414 : vector<2x1xf32> to vector<2x32xf32>
    %416 = arith.mulf %413, %415 : vector<2x32xf32>
    %417 = arith.addf %412, %416 : vector<2x32xf32>
    %418 = vector.extract_strided_slice %360 {offsets = [0, 352], sizes = [2, 32], strides = [1, 1]} : vector<2x1536xf32> to vector<2x32xf32>
    %419 = vector.extract_strided_slice %401 {offsets = [0, 3], sizes = [2, 1], strides = [1, 1]} : vector<2x16xf32> to vector<2x1xf32>
    %420 = vector.broadcast %419 : vector<2x1xf32> to vector<2x32xf32>
    %421 = arith.mulf %418, %420 : vector<2x32xf32>
    %422 = arith.addf %417, %421 : vector<2x32xf32>
    %423 = vector.extract_strided_slice %360 {offsets = [0, 384], sizes = [2, 32], strides = [1, 1]} : vector<2x1536xf32> to vector<2x32xf32>
    %424 = vector.extract_strided_slice %401 {offsets = [0, 4], sizes = [2, 1], strides = [1, 1]} : vector<2x16xf32> to vector<2x1xf32>
    %425 = vector.broadcast %424 : vector<2x1xf32> to vector<2x32xf32>
    %426 = arith.mulf %423, %425 : vector<2x32xf32>
    %427 = arith.addf %422, %426 : vector<2x32xf32>
    %428 = vector.extract_strided_slice %360 {offsets = [0, 416], sizes = [2, 32], strides = [1, 1]} : vector<2x1536xf32> to vector<2x32xf32>
    %429 = vector.extract_strided_slice %401 {offsets = [0, 5], sizes = [2, 1], strides = [1, 1]} : vector<2x16xf32> to vector<2x1xf32>
    %430 = vector.broadcast %429 : vector<2x1xf32> to vector<2x32xf32>
    %431 = arith.mulf %428, %430 : vector<2x32xf32>
    %432 = arith.addf %427, %431 : vector<2x32xf32>
    %433 = vector.extract_strided_slice %360 {offsets = [0, 448], sizes = [2, 32], strides = [1, 1]} : vector<2x1536xf32> to vector<2x32xf32>
    %434 = vector.extract_strided_slice %401 {offsets = [0, 6], sizes = [2, 1], strides = [1, 1]} : vector<2x16xf32> to vector<2x1xf32>
    %435 = vector.broadcast %434 : vector<2x1xf32> to vector<2x32xf32>
    %436 = arith.mulf %433, %435 : vector<2x32xf32>
    %437 = arith.addf %432, %436 : vector<2x32xf32>
    %438 = vector.extract_strided_slice %360 {offsets = [0, 480], sizes = [2, 32], strides = [1, 1]} : vector<2x1536xf32> to vector<2x32xf32>
    %439 = vector.extract_strided_slice %401 {offsets = [0, 7], sizes = [2, 1], strides = [1, 1]} : vector<2x16xf32> to vector<2x1xf32>
    %440 = vector.broadcast %439 : vector<2x1xf32> to vector<2x32xf32>
    %441 = arith.mulf %438, %440 : vector<2x32xf32>
    %442 = arith.addf %437, %441 : vector<2x32xf32>
    %443 = vector.extract_strided_slice %360 {offsets = [0, 512], sizes = [2, 32], strides = [1, 1]} : vector<2x1536xf32> to vector<2x32xf32>
    %444 = vector.extract_strided_slice %401 {offsets = [0, 8], sizes = [2, 1], strides = [1, 1]} : vector<2x16xf32> to vector<2x1xf32>
    %445 = vector.broadcast %444 : vector<2x1xf32> to vector<2x32xf32>
    %446 = arith.mulf %443, %445 : vector<2x32xf32>
    %447 = arith.addf %442, %446 : vector<2x32xf32>
    %448 = vector.extract_strided_slice %360 {offsets = [0, 544], sizes = [2, 32], strides = [1, 1]} : vector<2x1536xf32> to vector<2x32xf32>
    %449 = vector.extract_strided_slice %401 {offsets = [0, 9], sizes = [2, 1], strides = [1, 1]} : vector<2x16xf32> to vector<2x1xf32>
    %450 = vector.broadcast %449 : vector<2x1xf32> to vector<2x32xf32>
    %451 = arith.mulf %448, %450 : vector<2x32xf32>
    %452 = arith.addf %447, %451 : vector<2x32xf32>
    %453 = vector.extract_strided_slice %360 {offsets = [0, 576], sizes = [2, 32], strides = [1, 1]} : vector<2x1536xf32> to vector<2x32xf32>
    %454 = vector.extract_strided_slice %401 {offsets = [0, 10], sizes = [2, 1], strides = [1, 1]} : vector<2x16xf32> to vector<2x1xf32>
    %455 = vector.broadcast %454 : vector<2x1xf32> to vector<2x32xf32>
    %456 = arith.mulf %453, %455 : vector<2x32xf32>
    %457 = arith.addf %452, %456 : vector<2x32xf32>
    %458 = vector.extract_strided_slice %360 {offsets = [0, 608], sizes = [2, 32], strides = [1, 1]} : vector<2x1536xf32> to vector<2x32xf32>
    %459 = vector.extract_strided_slice %401 {offsets = [0, 11], sizes = [2, 1], strides = [1, 1]} : vector<2x16xf32> to vector<2x1xf32>
    %460 = vector.broadcast %459 : vector<2x1xf32> to vector<2x32xf32>
    %461 = arith.mulf %458, %460 : vector<2x32xf32>
    %462 = arith.addf %457, %461 : vector<2x32xf32>
    %463 = vector.extract_strided_slice %360 {offsets = [0, 640], sizes = [2, 32], strides = [1, 1]} : vector<2x1536xf32> to vector<2x32xf32>
    %464 = vector.extract_strided_slice %401 {offsets = [0, 12], sizes = [2, 1], strides = [1, 1]} : vector<2x16xf32> to vector<2x1xf32>
    %465 = vector.broadcast %464 : vector<2x1xf32> to vector<2x32xf32>
    %466 = arith.mulf %463, %465 : vector<2x32xf32>
    %467 = arith.addf %462, %466 : vector<2x32xf32>
    %468 = vector.extract_strided_slice %360 {offsets = [0, 672], sizes = [2, 32], strides = [1, 1]} : vector<2x1536xf32> to vector<2x32xf32>
    %469 = vector.extract_strided_slice %401 {offsets = [0, 13], sizes = [2, 1], strides = [1, 1]} : vector<2x16xf32> to vector<2x1xf32>
    %470 = vector.broadcast %469 : vector<2x1xf32> to vector<2x32xf32>
    %471 = arith.mulf %468, %470 : vector<2x32xf32>
    %472 = arith.addf %467, %471 : vector<2x32xf32>
    %473 = vector.extract_strided_slice %360 {offsets = [0, 704], sizes = [2, 32], strides = [1, 1]} : vector<2x1536xf32> to vector<2x32xf32>
    %474 = vector.extract_strided_slice %401 {offsets = [0, 14], sizes = [2, 1], strides = [1, 1]} : vector<2x16xf32> to vector<2x1xf32>
    %475 = vector.broadcast %474 : vector<2x1xf32> to vector<2x32xf32>
    %476 = arith.mulf %473, %475 : vector<2x32xf32>
    %477 = arith.addf %472, %476 : vector<2x32xf32>
    %478 = vector.extract_strided_slice %360 {offsets = [0, 736], sizes = [2, 32], strides = [1, 1]} : vector<2x1536xf32> to vector<2x32xf32>
    %479 = vector.extract_strided_slice %401 {offsets = [0, 15], sizes = [2, 1], strides = [1, 1]} : vector<2x16xf32> to vector<2x1xf32>
    %480 = vector.broadcast %479 : vector<2x1xf32> to vector<2x32xf32>
    %481 = arith.mulf %478, %480 : vector<2x32xf32>
    %482 = arith.addf %477, %481 : vector<2x32xf32>
    %483 = math.tanh %482 : vector<2x32xf32>
    %484 = vector.extract_strided_slice %360 {offsets = [0, 1408], sizes = [2, 16], strides = [1, 1]} : vector<2x1536xf32> to vector<2x16xf32>
    %485 = vector.extract_strided_slice %360 {offsets = [0, 896], sizes = [2, 16], strides = [1, 1]} : vector<2x1536xf32> to vector<2x16xf32>
    %486 = vector.extract_strided_slice %483 {offsets = [0, 0], sizes = [2, 1], strides = [1, 1]} : vector<2x32xf32> to vector<2x1xf32>
    %487 = vector.broadcast %486 : vector<2x1xf32> to vector<2x16xf32>
    %488 = arith.mulf %485, %487 : vector<2x16xf32>
    %489 = arith.addf %484, %488 : vector<2x16xf32>
    %490 = vector.extract_strided_slice %360 {offsets = [0, 912], sizes = [2, 16], strides = [1, 1]} : vector<2x1536xf32> to vector<2x16xf32>
    %491 = vector.extract_strided_slice %483 {offsets = [0, 1], sizes = [2, 1], strides = [1, 1]} : vector<2x32xf32> to vector<2x1xf32>
    %492 = vector.broadcast %491 : vector<2x1xf32> to vector<2x16xf32>
    %493 = arith.mulf %490, %492 : vector<2x16xf32>
    %494 = arith.addf %489, %493 : vector<2x16xf32>
    %495 = vector.extract_strided_slice %360 {offsets = [0, 928], sizes = [2, 16], strides = [1, 1]} : vector<2x1536xf32> to vector<2x16xf32>
    %496 = vector.extract_strided_slice %483 {offsets = [0, 2], sizes = [2, 1], strides = [1, 1]} : vector<2x32xf32> to vector<2x1xf32>
    %497 = vector.broadcast %496 : vector<2x1xf32> to vector<2x16xf32>
    %498 = arith.mulf %495, %497 : vector<2x16xf32>
    %499 = arith.addf %494, %498 : vector<2x16xf32>
    %500 = vector.extract_strided_slice %360 {offsets = [0, 944], sizes = [2, 16], strides = [1, 1]} : vector<2x1536xf32> to vector<2x16xf32>
    %501 = vector.extract_strided_slice %483 {offsets = [0, 3], sizes = [2, 1], strides = [1, 1]} : vector<2x32xf32> to vector<2x1xf32>
    %502 = vector.broadcast %501 : vector<2x1xf32> to vector<2x16xf32>
    %503 = arith.mulf %500, %502 : vector<2x16xf32>
    %504 = arith.addf %499, %503 : vector<2x16xf32>
    %505 = vector.extract_strided_slice %360 {offsets = [0, 960], sizes = [2, 16], strides = [1, 1]} : vector<2x1536xf32> to vector<2x16xf32>
    %506 = vector.extract_strided_slice %483 {offsets = [0, 4], sizes = [2, 1], strides = [1, 1]} : vector<2x32xf32> to vector<2x1xf32>
    %507 = vector.broadcast %506 : vector<2x1xf32> to vector<2x16xf32>
    %508 = arith.mulf %505, %507 : vector<2x16xf32>
    %509 = arith.addf %504, %508 : vector<2x16xf32>
    %510 = vector.extract_strided_slice %360 {offsets = [0, 976], sizes = [2, 16], strides = [1, 1]} : vector<2x1536xf32> to vector<2x16xf32>
    %511 = vector.extract_strided_slice %483 {offsets = [0, 5], sizes = [2, 1], strides = [1, 1]} : vector<2x32xf32> to vector<2x1xf32>
    %512 = vector.broadcast %511 : vector<2x1xf32> to vector<2x16xf32>
    %513 = arith.mulf %510, %512 : vector<2x16xf32>
    %514 = arith.addf %509, %513 : vector<2x16xf32>
    %515 = vector.extract_strided_slice %360 {offsets = [0, 992], sizes = [2, 16], strides = [1, 1]} : vector<2x1536xf32> to vector<2x16xf32>
    %516 = vector.extract_strided_slice %483 {offsets = [0, 6], sizes = [2, 1], strides = [1, 1]} : vector<2x32xf32> to vector<2x1xf32>
    %517 = vector.broadcast %516 : vector<2x1xf32> to vector<2x16xf32>
    %518 = arith.mulf %515, %517 : vector<2x16xf32>
    %519 = arith.addf %514, %518 : vector<2x16xf32>
    %520 = vector.extract_strided_slice %360 {offsets = [0, 1008], sizes = [2, 16], strides = [1, 1]} : vector<2x1536xf32> to vector<2x16xf32>
    %521 = vector.extract_strided_slice %483 {offsets = [0, 7], sizes = [2, 1], strides = [1, 1]} : vector<2x32xf32> to vector<2x1xf32>
    %522 = vector.broadcast %521 : vector<2x1xf32> to vector<2x16xf32>
    %523 = arith.mulf %520, %522 : vector<2x16xf32>
    %524 = arith.addf %519, %523 : vector<2x16xf32>
    %525 = vector.extract_strided_slice %360 {offsets = [0, 1024], sizes = [2, 16], strides = [1, 1]} : vector<2x1536xf32> to vector<2x16xf32>
    %526 = vector.extract_strided_slice %483 {offsets = [0, 8], sizes = [2, 1], strides = [1, 1]} : vector<2x32xf32> to vector<2x1xf32>
    %527 = vector.broadcast %526 : vector<2x1xf32> to vector<2x16xf32>
    %528 = arith.mulf %525, %527 : vector<2x16xf32>
    %529 = arith.addf %524, %528 : vector<2x16xf32>
    %530 = vector.extract_strided_slice %360 {offsets = [0, 1040], sizes = [2, 16], strides = [1, 1]} : vector<2x1536xf32> to vector<2x16xf32>
    %531 = vector.extract_strided_slice %483 {offsets = [0, 9], sizes = [2, 1], strides = [1, 1]} : vector<2x32xf32> to vector<2x1xf32>
    %532 = vector.broadcast %531 : vector<2x1xf32> to vector<2x16xf32>
    %533 = arith.mulf %530, %532 : vector<2x16xf32>
    %534 = arith.addf %529, %533 : vector<2x16xf32>
    %535 = vector.extract_strided_slice %360 {offsets = [0, 1056], sizes = [2, 16], strides = [1, 1]} : vector<2x1536xf32> to vector<2x16xf32>
    %536 = vector.extract_strided_slice %483 {offsets = [0, 10], sizes = [2, 1], strides = [1, 1]} : vector<2x32xf32> to vector<2x1xf32>
    %537 = vector.broadcast %536 : vector<2x1xf32> to vector<2x16xf32>
    %538 = arith.mulf %535, %537 : vector<2x16xf32>
    %539 = arith.addf %534, %538 : vector<2x16xf32>
    %540 = vector.extract_strided_slice %360 {offsets = [0, 1072], sizes = [2, 16], strides = [1, 1]} : vector<2x1536xf32> to vector<2x16xf32>
    %541 = vector.extract_strided_slice %483 {offsets = [0, 11], sizes = [2, 1], strides = [1, 1]} : vector<2x32xf32> to vector<2x1xf32>
    %542 = vector.broadcast %541 : vector<2x1xf32> to vector<2x16xf32>
    %543 = arith.mulf %540, %542 : vector<2x16xf32>
    %544 = arith.addf %539, %543 : vector<2x16xf32>
    %545 = vector.extract_strided_slice %360 {offsets = [0, 1088], sizes = [2, 16], strides = [1, 1]} : vector<2x1536xf32> to vector<2x16xf32>
    %546 = vector.extract_strided_slice %483 {offsets = [0, 12], sizes = [2, 1], strides = [1, 1]} : vector<2x32xf32> to vector<2x1xf32>
    %547 = vector.broadcast %546 : vector<2x1xf32> to vector<2x16xf32>
    %548 = arith.mulf %545, %547 : vector<2x16xf32>
    %549 = arith.addf %544, %548 : vector<2x16xf32>
    %550 = vector.extract_strided_slice %360 {offsets = [0, 1104], sizes = [2, 16], strides = [1, 1]} : vector<2x1536xf32> to vector<2x16xf32>
    %551 = vector.extract_strided_slice %483 {offsets = [0, 13], sizes = [2, 1], strides = [1, 1]} : vector<2x32xf32> to vector<2x1xf32>
    %552 = vector.broadcast %551 : vector<2x1xf32> to vector<2x16xf32>
    %553 = arith.mulf %550, %552 : vector<2x16xf32>
    %554 = arith.addf %549, %553 : vector<2x16xf32>
    %555 = vector.extract_strided_slice %360 {offsets = [0, 1120], sizes = [2, 16], strides = [1, 1]} : vector<2x1536xf32> to vector<2x16xf32>
    %556 = vector.extract_strided_slice %483 {offsets = [0, 14], sizes = [2, 1], strides = [1, 1]} : vector<2x32xf32> to vector<2x1xf32>
    %557 = vector.broadcast %556 : vector<2x1xf32> to vector<2x16xf32>
    %558 = arith.mulf %555, %557 : vector<2x16xf32>
    %559 = arith.addf %554, %558 : vector<2x16xf32>
    %560 = vector.extract_strided_slice %360 {offsets = [0, 1136], sizes = [2, 16], strides = [1, 1]} : vector<2x1536xf32> to vector<2x16xf32>
    %561 = vector.extract_strided_slice %483 {offsets = [0, 15], sizes = [2, 1], strides = [1, 1]} : vector<2x32xf32> to vector<2x1xf32>
    %562 = vector.broadcast %561 : vector<2x1xf32> to vector<2x16xf32>
    %563 = arith.mulf %560, %562 : vector<2x16xf32>
    %564 = arith.addf %559, %563 : vector<2x16xf32>
    %565 = vector.extract_strided_slice %360 {offsets = [0, 1152], sizes = [2, 16], strides = [1, 1]} : vector<2x1536xf32> to vector<2x16xf32>
    %566 = vector.extract_strided_slice %483 {offsets = [0, 16], sizes = [2, 1], strides = [1, 1]} : vector<2x32xf32> to vector<2x1xf32>
    %567 = vector.broadcast %566 : vector<2x1xf32> to vector<2x16xf32>
    %568 = arith.mulf %565, %567 : vector<2x16xf32>
    %569 = arith.addf %564, %568 : vector<2x16xf32>
    %570 = vector.extract_strided_slice %360 {offsets = [0, 1168], sizes = [2, 16], strides = [1, 1]} : vector<2x1536xf32> to vector<2x16xf32>
    %571 = vector.extract_strided_slice %483 {offsets = [0, 17], sizes = [2, 1], strides = [1, 1]} : vector<2x32xf32> to vector<2x1xf32>
    %572 = vector.broadcast %571 : vector<2x1xf32> to vector<2x16xf32>
    %573 = arith.mulf %570, %572 : vector<2x16xf32>
    %574 = arith.addf %569, %573 : vector<2x16xf32>
    %575 = vector.extract_strided_slice %360 {offsets = [0, 1184], sizes = [2, 16], strides = [1, 1]} : vector<2x1536xf32> to vector<2x16xf32>
    %576 = vector.extract_strided_slice %483 {offsets = [0, 18], sizes = [2, 1], strides = [1, 1]} : vector<2x32xf32> to vector<2x1xf32>
    %577 = vector.broadcast %576 : vector<2x1xf32> to vector<2x16xf32>
    %578 = arith.mulf %575, %577 : vector<2x16xf32>
    %579 = arith.addf %574, %578 : vector<2x16xf32>
    %580 = vector.extract_strided_slice %360 {offsets = [0, 1200], sizes = [2, 16], strides = [1, 1]} : vector<2x1536xf32> to vector<2x16xf32>
    %581 = vector.extract_strided_slice %483 {offsets = [0, 19], sizes = [2, 1], strides = [1, 1]} : vector<2x32xf32> to vector<2x1xf32>
    %582 = vector.broadcast %581 : vector<2x1xf32> to vector<2x16xf32>
    %583 = arith.mulf %580, %582 : vector<2x16xf32>
    %584 = arith.addf %579, %583 : vector<2x16xf32>
    %585 = vector.extract_strided_slice %360 {offsets = [0, 1216], sizes = [2, 16], strides = [1, 1]} : vector<2x1536xf32> to vector<2x16xf32>
    %586 = vector.extract_strided_slice %483 {offsets = [0, 20], sizes = [2, 1], strides = [1, 1]} : vector<2x32xf32> to vector<2x1xf32>
    %587 = vector.broadcast %586 : vector<2x1xf32> to vector<2x16xf32>
    %588 = arith.mulf %585, %587 : vector<2x16xf32>
    %589 = arith.addf %584, %588 : vector<2x16xf32>
    %590 = vector.extract_strided_slice %360 {offsets = [0, 1232], sizes = [2, 16], strides = [1, 1]} : vector<2x1536xf32> to vector<2x16xf32>
    %591 = vector.extract_strided_slice %483 {offsets = [0, 21], sizes = [2, 1], strides = [1, 1]} : vector<2x32xf32> to vector<2x1xf32>
    %592 = vector.broadcast %591 : vector<2x1xf32> to vector<2x16xf32>
    %593 = arith.mulf %590, %592 : vector<2x16xf32>
    %594 = arith.addf %589, %593 : vector<2x16xf32>
    %595 = vector.extract_strided_slice %360 {offsets = [0, 1248], sizes = [2, 16], strides = [1, 1]} : vector<2x1536xf32> to vector<2x16xf32>
    %596 = vector.extract_strided_slice %483 {offsets = [0, 22], sizes = [2, 1], strides = [1, 1]} : vector<2x32xf32> to vector<2x1xf32>
    %597 = vector.broadcast %596 : vector<2x1xf32> to vector<2x16xf32>
    %598 = arith.mulf %595, %597 : vector<2x16xf32>
    %599 = arith.addf %594, %598 : vector<2x16xf32>
    %600 = vector.extract_strided_slice %360 {offsets = [0, 1264], sizes = [2, 16], strides = [1, 1]} : vector<2x1536xf32> to vector<2x16xf32>
    %601 = vector.extract_strided_slice %483 {offsets = [0, 23], sizes = [2, 1], strides = [1, 1]} : vector<2x32xf32> to vector<2x1xf32>
    %602 = vector.broadcast %601 : vector<2x1xf32> to vector<2x16xf32>
    %603 = arith.mulf %600, %602 : vector<2x16xf32>
    %604 = arith.addf %599, %603 : vector<2x16xf32>
    %605 = vector.extract_strided_slice %360 {offsets = [0, 1280], sizes = [2, 16], strides = [1, 1]} : vector<2x1536xf32> to vector<2x16xf32>
    %606 = vector.extract_strided_slice %483 {offsets = [0, 24], sizes = [2, 1], strides = [1, 1]} : vector<2x32xf32> to vector<2x1xf32>
    %607 = vector.broadcast %606 : vector<2x1xf32> to vector<2x16xf32>
    %608 = arith.mulf %605, %607 : vector<2x16xf32>
    %609 = arith.addf %604, %608 : vector<2x16xf32>
    %610 = vector.extract_strided_slice %360 {offsets = [0, 1296], sizes = [2, 16], strides = [1, 1]} : vector<2x1536xf32> to vector<2x16xf32>
    %611 = vector.extract_strided_slice %483 {offsets = [0, 25], sizes = [2, 1], strides = [1, 1]} : vector<2x32xf32> to vector<2x1xf32>
    %612 = vector.broadcast %611 : vector<2x1xf32> to vector<2x16xf32>
    %613 = arith.mulf %610, %612 : vector<2x16xf32>
    %614 = arith.addf %609, %613 : vector<2x16xf32>
    %615 = vector.extract_strided_slice %360 {offsets = [0, 1312], sizes = [2, 16], strides = [1, 1]} : vector<2x1536xf32> to vector<2x16xf32>
    %616 = vector.extract_strided_slice %483 {offsets = [0, 26], sizes = [2, 1], strides = [1, 1]} : vector<2x32xf32> to vector<2x1xf32>
    %617 = vector.broadcast %616 : vector<2x1xf32> to vector<2x16xf32>
    %618 = arith.mulf %615, %617 : vector<2x16xf32>
    %619 = arith.addf %614, %618 : vector<2x16xf32>
    %620 = vector.extract_strided_slice %360 {offsets = [0, 1328], sizes = [2, 16], strides = [1, 1]} : vector<2x1536xf32> to vector<2x16xf32>
    %621 = vector.extract_strided_slice %483 {offsets = [0, 27], sizes = [2, 1], strides = [1, 1]} : vector<2x32xf32> to vector<2x1xf32>
    %622 = vector.broadcast %621 : vector<2x1xf32> to vector<2x16xf32>
    %623 = arith.mulf %620, %622 : vector<2x16xf32>
    %624 = arith.addf %619, %623 : vector<2x16xf32>
    %625 = vector.extract_strided_slice %360 {offsets = [0, 1344], sizes = [2, 16], strides = [1, 1]} : vector<2x1536xf32> to vector<2x16xf32>
    %626 = vector.extract_strided_slice %483 {offsets = [0, 28], sizes = [2, 1], strides = [1, 1]} : vector<2x32xf32> to vector<2x1xf32>
    %627 = vector.broadcast %626 : vector<2x1xf32> to vector<2x16xf32>
    %628 = arith.mulf %625, %627 : vector<2x16xf32>
    %629 = arith.addf %624, %628 : vector<2x16xf32>
    %630 = vector.extract_strided_slice %360 {offsets = [0, 1360], sizes = [2, 16], strides = [1, 1]} : vector<2x1536xf32> to vector<2x16xf32>
    %631 = vector.extract_strided_slice %483 {offsets = [0, 29], sizes = [2, 1], strides = [1, 1]} : vector<2x32xf32> to vector<2x1xf32>
    %632 = vector.broadcast %631 : vector<2x1xf32> to vector<2x16xf32>
    %633 = arith.mulf %630, %632 : vector<2x16xf32>
    %634 = arith.addf %629, %633 : vector<2x16xf32>
    %635 = vector.extract_strided_slice %360 {offsets = [0, 1376], sizes = [2, 16], strides = [1, 1]} : vector<2x1536xf32> to vector<2x16xf32>
    %636 = vector.extract_strided_slice %483 {offsets = [0, 30], sizes = [2, 1], strides = [1, 1]} : vector<2x32xf32> to vector<2x1xf32>
    %637 = vector.broadcast %636 : vector<2x1xf32> to vector<2x16xf32>
    %638 = arith.mulf %635, %637 : vector<2x16xf32>
    %639 = arith.addf %634, %638 : vector<2x16xf32>
    %640 = vector.extract_strided_slice %360 {offsets = [0, 1392], sizes = [2, 16], strides = [1, 1]} : vector<2x1536xf32> to vector<2x16xf32>
    %641 = vector.extract_strided_slice %483 {offsets = [0, 31], sizes = [2, 1], strides = [1, 1]} : vector<2x32xf32> to vector<2x1xf32>
    %642 = vector.broadcast %641 : vector<2x1xf32> to vector<2x16xf32>
    %643 = arith.mulf %640, %642 : vector<2x16xf32>
    %644 = arith.addf %639, %643 : vector<2x16xf32>
    %c0_34 = arith.constant 0 : index
    %c0_35 = arith.constant 0 : index
    %645 = vector.load %arg16[%c0_34, %c0_35] : memref<2x16xf32, #tpu.memory_space<vmem>>, vector<2x16xf32>
    tpu.vector_store %arg16[%c0_34, %c0_35], %644 {strides = array<i32>} : memref<2x16xf32, #tpu.memory_space<vmem>>, vector<2x16xf32>,
    return
  }
  func.func @transform_0(%arg0: i32) -> (i32, i32) {
    %c0_i32 = arith.constant 0 : i32
    %c0_i32_0 = arith.constant 0 : i32
    return %arg0, %c0_i32 : i32, i32
  }
  func.func @transform_1(%arg0: i32) -> (i32, i32) {
    %c0_i32 = arith.constant 0 : i32
    %c0_i32_0 = arith.constant 0 : i32
    return %arg0, %c0_i32 : i32, i32
  }
  func.func @transform_2(%arg0: i32) -> (i32, i32) {
    %c0_i32 = arith.constant 0 : i32
    %c0_i32_0 = arith.constant 0 : i32
    %c0_i32_1 = arith.constant 0 : i32
    return %c0_i32, %c0_i32_0 : i32, i32
  }
  func.func @transform_3(%arg0: i32) -> (i32, i32) {
    %c0_i32 = arith.constant 0 : i32
    %c0_i32_0 = arith.constant 0 : i32
    %c0_i32_1 = arith.constant 0 : i32
    return %c0_i32, %c0_i32_0 : i32, i32
  }
  func.func @transform_4(%arg0: i32) -> (i32, i32) {
    %c0_i32 = arith.constant 0 : i32
    %c0_i32_0 = arith.constant 0 : i32
    %c0_i32_1 = arith.constant 0 : i32
    return %c0_i32, %c0_i32_0 : i32, i32
  }
  func.func @transform_5(%arg0: i32) -> (i32, i32) {
    %c0_i32 = arith.constant 0 : i32
    %c0_i32_0 = arith.constant 0 : i32
    %c0_i32_1 = arith.constant 0 : i32
    return %c0_i32, %c0_i32_0 : i32, i32
  }
  func.func @transform_6(%arg0: i32) -> (i32, i32) {
    %c0_i32 = arith.constant 0 : i32
    %c0_i32_0 = arith.constant 0 : i32
    %c0_i32_1 = arith.constant 0 : i32
    return %c0_i32, %c0_i32_0 : i32, i32
  }
  func.func @transform_7(%arg0: i32) -> (i32, i32) {
    %c0_i32 = arith.constant 0 : i32
    %c0_i32_0 = arith.constant 0 : i32
    %c0_i32_1 = arith.constant 0 : i32
    return %c0_i32, %c0_i32_0 : i32, i32
  }
  func.func @transform_8(%arg0: i32) -> (i32, i32) {
    %c0_i32 = arith.constant 0 : i32
    %c0_i32_0 = arith.constant 0 : i32
    %c0_i32_1 = arith.constant 0 : i32
    return %c0_i32, %c0_i32_0 : i32, i32
  }
  func.func @transform_9(%arg0: i32) -> (i32, i32) {
    %c0_i32 = arith.constant 0 : i32
    %c0_i32_0 = arith.constant 0 : i32
    %c0_i32_1 = arith.constant 0 : i32
    return %c0_i32, %c0_i32_0 : i32, i32
  }
  func.func @transform_10(%arg0: i32) -> (i32, i32) {
    %c0_i32 = arith.constant 0 : i32
    %c0_i32_0 = arith.constant 0 : i32
    %c0_i32_1 = arith.constant 0 : i32
    return %c0_i32, %c0_i32_0 : i32, i32
  }
  func.func @transform_11(%arg0: i32) -> (i32, i32) {
    %c0_i32 = arith.constant 0 : i32
    %c0_i32_0 = arith.constant 0 : i32
    %c0_i32_1 = arith.constant 0 : i32
    return %c0_i32, %c0_i32_0 : i32, i32
  }
  func.func @transform_12(%arg0: i32) -> (i32, i32) {
    %c0_i32 = arith.constant 0 : i32
    %c0_i32_0 = arith.constant 0 : i32
    %c0_i32_1 = arith.constant 0 : i32
    return %c0_i32, %c0_i32_0 : i32, i32
  }
  func.func @transform_13(%arg0: i32) -> (i32, i32) {
    %c0_i32 = arith.constant 0 : i32
    %c0_i32_0 = arith.constant 0 : i32
    %c0_i32_1 = arith.constant 0 : i32
    return %c0_i32, %c0_i32_0 : i32, i32
  }
  func.func @transform_14(%arg0: i32) -> (i32, i32) {
    %c0_i32 = arith.constant 0 : i32
    %c0_i32_0 = arith.constant 0 : i32
    return %arg0, %c0_i32 : i32, i32
  }
  func.func @transform_15(%arg0: i32) -> (i32, i32) {
    %c0_i32 = arith.constant 0 : i32
    %c0_i32_0 = arith.constant 0 : i32
    return %arg0, %c0_i32 : i32, i32
  }
}

</mosaic_0001>

<llo_original>
// kernel: tpu_custom_call.1
$region0: #{tpu_custom_call.1}
  #allocation0 [shape = 'u32[]', space=smem, size = 0x4, offset = 0x4, fixed_abs, tag = 'smem constant byte address 0x4 - core index']
  #allocation1 [shape = 'u32[144,128]{1,0:T(1,128)}', space=vmem, size = 0x12000, scoped, tag = 'internal scratch']
  %s0 = inlined_call_operand.hbm [shape: f32[2,16], index: 0, kind: input, shape index: {}]
  %s1 = inlined_call_operand.hbm [shape: f32[2,4], index: 1, kind: input, shape index: {}]
  %s2 = inlined_call_operand.hbm [shape: f32[4,32], index: 2, kind: input, shape index: {}]
  %s3 = inlined_call_operand.vmem [shape: f32[1,32], index: 3, kind: input, shape index: {}]
  %s4 = inlined_call_operand.hbm [shape: f32[32,32], index: 4, kind: input, shape index: {}]
  %s5 = inlined_call_operand.hbm [shape: f32[1,32], index: 5, kind: input, shape index: {}]
  %s6 = inlined_call_operand.hbm [shape: f32[32,1536], index: 6, kind: input, shape index: {}]
  %s7 = inlined_call_operand.hbm [shape: f32[1,1536], index: 7, kind: input, shape index: {}]
  %s8 = inlined_call_operand.hbm [shape: f32[4,32], index: 8, kind: input, shape index: {}]
  %s9 = inlined_call_operand.hbm [shape: f32[1,32], index: 9, kind: input, shape index: {}]
  %s10 = inlined_call_operand.vmem [shape: f32[32,32], index: 10, kind: input, shape index: {}]
  %s11 = inlined_call_operand.hbm [shape: f32[1,32], index: 11, kind: input, shape index: {}]
  %s12 = inlined_call_operand.hbm [shape: f32[32,1536], index: 12, kind: input, shape index: {}]
  %s13 = inlined_call_operand.vmem [shape: f32[1,1536], index: 13, kind: input, shape index: {}]
  %s14 = inlined_call_operand.hbm [shape: f32[2,8], index: 14, kind: output, shape index: {0}]
  %s15 = inlined_call_operand.hbm [shape: f32[2,16], index: 15, kind: output, shape index: {1}]
  %16 = xla_tuple %s14, %s15
  %s17 = sld [smem:[#allocation0]]
  $region118: #{tpu_custom_call.1} parent=0
    _
  %s19 = ssub.s32 1, %s17
  %s20 = scalar_select 0, %s19, %s17
  $region1: #{tpu_custom_call.1} parent=0
    #allocation2 [shape = 'u8[1024]{0}', space=vmem, size = 0x400, scoped, tag = 'input window, operand 0, single buffered']
    #allocation3 [shape = 's32[1]{0}', space=sflag, size = 0x4, scoped, tag = 'scoped memory for tpu_custom_call.1']
    #allocation4 [shape = 's32[1]{0}', space=sflag, size = 0x4, scoped, tag = 'scoped memory for tpu_custom_call.1']
    #allocation5 [shape = 'u8[1024]{0}', space=vmem, size = 0x400, scoped, tag = 'input window, operand 1, single buffered']
    #allocation6 [shape = 's32[1]{0}', space=sflag, size = 0x4, scoped, tag = 'scoped memory for tpu_custom_call.1']
    #allocation7 [shape = 'u8[2048]{0}', space=vmem, size = 0x800, scoped, tag = 'input window, operand 2, single buffered']
    #allocation8 [shape = 'u8[16384]{0}', space=vmem, size = 0x4000, scoped, tag = 'input window, operand 4, single buffered']
    #allocation9 [shape = 's32[1]{0}', space=sflag, size = 0x4, scoped, tag = 'scoped memory for tpu_custom_call.1']
    #allocation10 [shape = 'u8[512]{0}', space=vmem, size = 0x400, scoped, tag = 'input window, operand 5, single buffered']
    #allocation11 [shape = 'u8[196608]{0}', space=vmem, size = 0x30000, scoped, tag = 'input window, operand 6, single buffered']
    #allocation12 [shape = 's32[1]{0}', space=sflag, size = 0x4, scoped, tag = 'scoped memory for tpu_custom_call.1']
    #allocation13 [shape = 'u8[6144]{0}', space=vmem, size = 0x1800, scoped, tag = 'input window, operand 7, single buffered']
    #allocation14 [shape = 'u8[2048]{0}', space=vmem, size = 0x800, scoped, tag = 'input window, operand 8, single buffered']
    #allocation15 [shape = 's32[1]{0}', space=sflag, size = 0x4, scoped, tag = 'scoped memory for tpu_custom_call.1']
    #allocation16 [shape = 'u8[512]{0}', space=vmem, size = 0x400, scoped, tag = 'input window, operand 9, single buffered']
    #allocation17 [shape = 'u8[512]{0}', space=vmem, size = 0x400, scoped, tag = 'input window, operand 11, single buffered']
    #allocation18 [shape = 's32[1]{0}', space=sflag, size = 0x4, scoped, tag = 'scoped memory for tpu_custom_call.1']
    #allocation19 [shape = 'u8[196608]{0}', space=vmem, size = 0x30000, scoped, tag = 'input window, operand 12, single buffered']
    #allocation20 [shape = 'u8[1024]{0}', space=vmem, size = 0x400, scoped, tag = 'output window, operand 0, single buffered']
    #allocation21 [shape = 'u8[1024]{0}', space=vmem, size = 0x400, scoped, tag = 'output window, operand 1, single buffered']
    #allocation22 [shape = 's32[1]{0}', space=sflag, size = 0x4, scoped, tag = 'scoped memory for tpu_custom_call.1']
    %21 = vsyncpa [#allocation3], 0
    %22 = vsyncpa [#allocation6], 0
    %23 = vsyncpa [#allocation9], 0
    %24 = vsyncpa [#allocation12], 0
    %25 = vsyncpa [#allocation15], 0
    %26 = vsyncpa [#allocation18], 0
    %27 = vsyncpa [#allocation4], 0
    %28 = vsyncpa [#allocation22], 0
    // Predicated region
    $region2: #{tpu_custom_call.1} parent=1 // pred_check
      _
    $region3: #{tpu_custom_call.1} parent=1 // pred_check_branch
      %30 = sbr.rel (0) target = $region5
    $region4: #{tpu_custom_call.1} parent=1 // pred_region
      %s32 = ssub.s32 32, 32
      %33 = vsyncadd [#allocation3], %s32
      %s35 = sshll.u32 [#allocation2], 4
      %s36 = int_to_ptr.vmem [resolvable:$true] %s35
      %38 = dma.hbm_to_vmem [thread:$0]  %s0, 32, %s36, [#allocation3]
    $region5: #{tpu_custom_call.1} parent=1 // pred_fallthru
      _
    // Predicated region
    $region6: #{tpu_custom_call.1} parent=1 // pred_check
      _
    $region7: #{tpu_custom_call.1} parent=1 // pred_check_branch
      %40 = sbr.rel (0) target = $region9
    $region8: #{tpu_custom_call.1} parent=1 // pred_region
      %s42 = ssub.s32 32, 32
      %43 = vsyncadd [#allocation6], %s42
      %s45 = sshll.u32 [#allocation5], 4
      %s46 = int_to_ptr.vmem [resolvable:$true] %s45
      %48 = dma.hbm_to_vmem [thread:$0]  %s1, 32, %s46, [#allocation6]
    $region9: #{tpu_custom_call.1} parent=1 // pred_fallthru
      _
    // Predicated region
    $region10: #{tpu_custom_call.1} parent=1 // pred_check
      _
    $region11: #{tpu_custom_call.1} parent=1 // pred_check_branch
      %50 = sbr.rel (0) target = $region13
    $region12: #{tpu_custom_call.1} parent=1 // pred_region
      %s52 = ssub.s32 64, 64
      %53 = vsyncadd [#allocation6], %s52
      %s55 = sshll.u32 [#allocation7], 4
      %s56 = int_to_ptr.vmem [resolvable:$true] %s55
      %58 = dma.hbm_to_vmem [thread:$0]  %s2, 64, %s56, [#allocation6]
    $region13: #{tpu_custom_call.1} parent=1 // pred_fallthru
      _
    // Predicated region
    $region14: #{tpu_custom_call.1} parent=1 // pred_check
      _
    $region15: #{tpu_custom_call.1} parent=1 // pred_check_branch
      %60 = sbr.rel (0) target = $region17
    $region16: #{tpu_custom_call.1} parent=1 // pred_region
      _
    $region17: #{tpu_custom_call.1} parent=1 // pred_fallthru
      _
    // Predicated region
    $region18: #{tpu_custom_call.1} parent=1 // pred_check
      _
    $region19: #{tpu_custom_call.1} parent=1 // pred_check_branch
      %62 = sbr.rel (0) target = $region21
    $region20: #{tpu_custom_call.1} parent=1 // pred_region
      %s64 = ssub.s32 512, 512
      %65 = vsyncadd [#allocation9], %s64
      %s66 = sshll.u32 [#allocation8], 4
      %s67 = int_to_ptr.vmem [resolvable:$true] %s66
      %72 = dma.hbm_to_vmem [thread:$0]  %s4, 512, %s67, [#allocation9], 128, 128, 8
    $region21: #{tpu_custom_call.1} parent=1 // pred_fallthru
      _
    // Predicated region
    $region22: #{tpu_custom_call.1} parent=1 // pred_check
      _
    $region23: #{tpu_custom_call.1} parent=1 // pred_check_branch
      %74 = sbr.rel (0) target = $region25
    $region24: #{tpu_custom_call.1} parent=1 // pred_region
      %s76 = ssub.s32 16, 16
      %77 = vsyncadd [#allocation9], %s76
      %s79 = sshll.u32 [#allocation10], 4
      %s80 = int_to_ptr.vmem [resolvable:$true] %s79
      %82 = dma.hbm_to_vmem [thread:$0]  %s5, 16, %s80, [#allocation9]
    $region25: #{tpu_custom_call.1} parent=1 // pred_fallthru
      _
    // Predicated region
    $region26: #{tpu_custom_call.1} parent=1 // pred_check
      _
    $region27: #{tpu_custom_call.1} parent=1 // pred_check_branch
      %84 = sbr.rel (0) target = $region29
    $region28: #{tpu_custom_call.1} parent=1 // pred_region
      %s86 = ssub.s32 6144, 6144
      %87 = vsyncadd [#allocation12], %s86
      %s88 = sshll.u32 [#allocation11], 4
      %s89 = int_to_ptr.vmem [resolvable:$true] %s88
      %94 = dma.hbm_to_vmem [thread:$0]  %s6, 6144, %s89, [#allocation12], 1536, 1536, 96
    $region29: #{tpu_custom_call.1} parent=1 // pred_fallthru
      _
    // Predicated region
    $region30: #{tpu_custom_call.1} parent=1 // pred_check
      _
    $region31: #{tpu_custom_call.1} parent=1 // pred_check_branch
      %96 = sbr.rel (0) target = $region33
    $region32: #{tpu_custom_call.1} parent=1 // pred_region
      %s98 = ssub.s32 192, 192
      %99 = vsyncadd [#allocation12], %s98
      %s101 = sshll.u32 [#allocation13], 4
      %s102 = int_to_ptr.vmem [resolvable:$true] %s101
      %104 = dma.hbm_to_vmem [thread:$0]  %s7, 192, %s102, [#allocation12]
    $region33: #{tpu_custom_call.1} parent=1 // pred_fallthru
      _
    // Predicated region
    $region34: #{tpu_custom_call.1} parent=1 // pred_check
      _
    $region35: #{tpu_custom_call.1} parent=1 // pred_check_branch
      %106 = sbr.rel (0) target = $region37
    $region36: #{tpu_custom_call.1} parent=1 // pred_region
      %s108 = ssub.s32 64, 64
      %109 = vsyncadd [#allocation15], %s108
      %s111 = sshll.u32 [#allocation14], 4
      %s112 = int_to_ptr.vmem [resolvable:$true] %s111
      %114 = dma.hbm_to_vmem [thread:$0]  %s8, 64, %s112, [#allocation15]
    $region37: #{tpu_custom_call.1} parent=1 // pred_fallthru
      _
    // Predicated region
    $region38: #{tpu_custom_call.1} parent=1 // pred_check
      _
    $region39: #{tpu_custom_call.1} parent=1 // pred_check_branch
      %116 = sbr.rel (0) target = $region41
    $region40: #{tpu_custom_call.1} parent=1 // pred_region
      %s118 = ssub.s32 16, 16
      %119 = vsyncadd [#allocation15], %s118
      %s121 = sshll.u32 [#allocation16], 4
      %s122 = int_to_ptr.vmem [resolvable:$true] %s121
      %124 = dma.hbm_to_vmem [thread:$0]  %s9, 16, %s122, [#allocation15]
    $region41: #{tpu_custom_call.1} parent=1 // pred_fallthru
      _
    // Predicated region
    $region42: #{tpu_custom_call.1} parent=1 // pred_check
      _
    $region43: #{tpu_custom_call.1} parent=1 // pred_check_branch
      %126 = sbr.rel (0) target = $region45
    $region44: #{tpu_custom_call.1} parent=1 // pred_region
      _
    $region45: #{tpu_custom_call.1} parent=1 // pred_fallthru
      _
    // Predicated region
    $region46: #{tpu_custom_call.1} parent=1 // pred_check
      _
    $region47: #{tpu_custom_call.1} parent=1 // pred_check_branch
      %128 = sbr.rel (0) target = $region49
    $region48: #{tpu_custom_call.1} parent=1 // pred_region
      %s130 = ssub.s32 16, 16
      %131 = vsyncadd [#allocation18], %s130
      %s133 = sshll.u32 [#allocation17], 4
      %s134 = int_to_ptr.vmem [resolvable:$true] %s133
      %136 = dma.hbm_to_vmem [thread:$0]  %s11, 16, %s134, [#allocation18]
    $region49: #{tpu_custom_call.1} parent=1 // pred_fallthru
      _
    // Predicated region
    $region50: #{tpu_custom_call.1} parent=1 // pred_check
      _
    $region51: #{tpu_custom_call.1} parent=1 // pred_check_branch
      %138 = sbr.rel (0) target = $region53
    $region52: #{tpu_custom_call.1} parent=1 // pred_region
      %s140 = ssub.s32 6144, 6144
      %141 = vsyncadd [#allocation18], %s140
      %s142 = sshll.u32 [#allocation19], 4
      %s143 = int_to_ptr.vmem [resolvable:$true] %s142
      %148 = dma.hbm_to_vmem [thread:$0]  %s12, 6144, %s143, [#allocation18], 1536, 1536, 96
    $region53: #{tpu_custom_call.1} parent=1 // pred_fallthru
      _
    // Predicated region
    $region54: #{tpu_custom_call.1} parent=1 // pred_check
      _
    $region55: #{tpu_custom_call.1} parent=1 // pred_check_branch
      %150 = sbr.rel (0) target = $region57
    $region56: #{tpu_custom_call.1} parent=1 // pred_region
      _
    $region57: #{tpu_custom_call.1} parent=1 // pred_fallthru
      _
    // Predicated region
    $region58: #{tpu_custom_call.1} parent=1 // pred_check
      _
    $region59: #{tpu_custom_call.1} parent=1 // pred_check_branch
      %152 = sbr.rel (0) target = $region61
    $region60: #{tpu_custom_call.1} parent=1 // pred_region
      %153 = dma.done [#allocation3], 32
    $region61: #{tpu_custom_call.1} parent=1 // pred_fallthru
      _
    // Predicated region
    $region62: #{tpu_custom_call.1} parent=1 // pred_check
      _
    $region63: #{tpu_custom_call.1} parent=1 // pred_check_branch
      %155 = sbr.rel (0) target = $region65
    $region64: #{tpu_custom_call.1} parent=1 // pred_region
      %156 = dma.done [#allocation6], 32
    $region65: #{tpu_custom_call.1} parent=1 // pred_fallthru
      _
    // Predicated region
    $region66: #{tpu_custom_call.1} parent=1 // pred_check
      _
    $region67: #{tpu_custom_call.1} parent=1 // pred_check_branch
      %158 = sbr.rel (0) target = $region69
    $region68: #{tpu_custom_call.1} parent=1 // pred_region
      %159 = dma.done [#allocation6], 64
    $region69: #{tpu_custom_call.1} parent=1 // pred_fallthru
      _
    // Predicated region
    $region70: #{tpu_custom_call.1} parent=1 // pred_check
      _
    $region71: #{tpu_custom_call.1} parent=1 // pred_check_branch
      %161 = sbr.rel (0) target = $region73
    $region72: #{tpu_custom_call.1} parent=1 // pred_region
      %162 = dma.done [#allocation9], 512
    $region73: #{tpu_custom_call.1} parent=1 // pred_fallthru
      _
    // Predicated region
    $region74: #{tpu_custom_call.1} parent=1 // pred_check
      _
    $region75: #{tpu_custom_call.1} parent=1 // pred_check_branch
      %164 = sbr.rel (0) target = $region77
    $region76: #{tpu_custom_call.1} parent=1 // pred_region
      %165 = dma.done [#allocation9], 16
    $region77: #{tpu_custom_call.1} parent=1 // pred_fallthru
      _
    // Predicated region
    $region78: #{tpu_custom_call.1} parent=1 // pred_check
      _
    $region79: #{tpu_custom_call.1} parent=1 // pred_check_branch
      %167 = sbr.rel (0) target = $region81
    $region80: #{tpu_custom_call.1} parent=1 // pred_region
      %168 = dma.done [#allocation12], 6144
    $region81: #{tpu_custom_call.1} parent=1 // pred_fallthru
      _
    // Predicated region
    $region82: #{tpu_custom_call.1} parent=1 // pred_check
      _
    $region83: #{tpu_custom_call.1} parent=1 // pred_check_branch
      %170 = sbr.rel (0) target = $region85
    $region84: #{tpu_custom_call.1} parent=1 // pred_region
      %171 = dma.done [#allocation12], 192
    $region85: #{tpu_custom_call.1} parent=1 // pred_fallthru
      _
    // Predicated region
    $region86: #{tpu_custom_call.1} parent=1 // pred_check
      _
    $region87: #{tpu_custom_call.1} parent=1 // pred_check_branch
      %173 = sbr.rel (0) target = $region89
    $region88: #{tpu_custom_call.1} parent=1 // pred_region
      %174 = dma.done [#allocation15], 64
    $region89: #{tpu_custom_call.1} parent=1 // pred_fallthru
      _
    // Predicated region
    $region90: #{tpu_custom_call.1} parent=1 // pred_check
      _
    $region91: #{tpu_custom_call.1} parent=1 // pred_check_branch
      %176 = sbr.rel (0) target = $region93
    $region92: #{tpu_custom_call.1} parent=1 // pred_region
      %177 = dma.done [#allocation15], 16
    $region93: #{tpu_custom_call.1} parent=1 // pred_fallthru
      _
    // Predicated region
    $region94: #{tpu_custom_call.1} parent=1 // pred_check
      _
    $region95: #{tpu_custom_call.1} parent=1 // pred_check_branch
      %179 = sbr.rel (0) target = $region97
    $region96: #{tpu_custom_call.1} parent=1 // pred_region
      %180 = dma.done [#allocation18], 16
    $region97: #{tpu_custom_call.1} parent=1 // pred_fallthru
      _
    // Predicated region
    $region98: #{tpu_custom_call.1} parent=1 // pred_check
      _
    $region99: #{tpu_custom_call.1} parent=1 // pred_check_branch
      %182 = sbr.rel (0) target = $region101
    $region100: #{tpu_custom_call.1} parent=1 // pred_region
      %183 = dma.done [#allocation18], 6144
    $region101: #{tpu_custom_call.1} parent=1 // pred_fallthru
      _
    %v184 = vld [vmem:[#allocation5] sm:$0x3]
    %v185 = vld [vmem:[#allocation2] sm:$0x3]
    %v186 = vld [vmem:[#allocation7] sm:$0xf]
    %v187 = vld [vmem:[%s3] sm:$0x1]
    %v189 = vlaneseq
    %v190 = vshrl.u32 %v189, 7
    %v191 = vsub.s32 0, %v190
    %v192 = vrot.slane %v187, %v191
    %vm194 = vcmask 31744
    %v196 = vsel %vm194, %v184, 0
    %vm198 = vcmask 1043456
    %v200 = vsel %vm198, %v186, 0
    %202 = vmatprep.subr.mxu0 0.0
    %203 = vmatpush1.msra.mxu0 %v200
    %204 = vmatprep.subr.mxu0 0.0
    %205 = vmatpush1.msra.mxu0 0.0
    %206 = vmatprep.subr.mxu0 0.0
    %207 = vmatpush1.msra.mxu0 0.0
    %208 = vmatprep.subr.mxu0 0.0
    %209 = vmatpush1.msra.mxu0 0.0
    %210 = vmatprep.subr.mxu0 0.0
    %211 = vmatpush1.msra.mxu0 0.0
    %212 = vmatprep.subr.mxu0 0.0
    %213 = vmatpush1.msra.mxu0 0.0
    %214 = vmatprep.subr.mxu0 0.0
    %215 = vmatpush1.msra.mxu0 0.0
    %216 = vmatprep.subr.mxu0 0.0
    %217 = vmatpush1.msra.mxu0 0.0
    %218 = vmatprep.subr.mxu0 0.0
    %219 = vmatpush1.msra.mxu0 0.0
    %220 = vmatprep.subr.mxu0 0.0
    %221 = vmatpush1.msra.mxu0 0.0
    %222 = vmatprep.subr.mxu0 0.0
    %223 = vmatpush1.msra.mxu0 0.0
    %224 = vmatprep.subr.mxu0 0.0
    %225 = vmatpush1.msra.mxu0 0.0
    %226 = vmatprep.subr.mxu0 0.0
    %227 = vmatpush1.msra.mxu0 0.0
    %228 = vmatprep.subr.mxu0 0.0
    %229 = vmatpush1.msra.mxu0 0.0
    %230 = vmatprep.subr.mxu0 0.0
    %231 = vmatpush1.msra.mxu0 0.0
    %232 = vmatprep.subr.mxu0 0.0
    %233 = vmatpush1.msra.mxu0 0.0
    %234 = vmatprep.subr.mxu0 0.0
    %235 = vmatpush1.msra.mxu0 0.0
    %236 = vmatprep.subr.mxu0 0.0
    %237 = vmatpush1.msra.mxu0 0.0
    %238 = vmatprep.subr.mxu0 0.0
    %239 = vmatpush1.msra.mxu0 0.0
    %240 = vmatprep.subr.mxu0 0.0
    %241 = vmatpush1.msra.mxu0 0.0
    %242 = vmatprep.subr.mxu0 0.0
    %243 = vmatpush1.msra.mxu0 0.0
    %244 = vmatprep.subr.mxu0 0.0
    %245 = vmatpush1.msra.mxu0 0.0
    %246 = vmatprep.subr.mxu0 0.0
    %247 = vmatpush1.msra.mxu0 0.0
    %248 = vmatprep.subr.mxu0 0.0
    %249 = vmatpush1.msra.mxu0 0.0
    %250 = vmatprep.subr.mxu0 0.0
    %251 = vmatpush1.msra.mxu0 0.0
    %252 = vmatprep.subr.mxu0 0.0
    %253 = vmatpush1.msra.mxu0 0.0
    %254 = vmatprep.subr.mxu0 0.0
    %255 = vmatpush1.msra.mxu0 0.0
    %256 = vmatprep.subr.mxu0 0.0
    %257 = vmatpush1.msra.mxu0 0.0
    %258 = vmatprep.subr.mxu0 0.0
    %259 = vmatpush1.msra.mxu0 0.0
    %260 = vmatprep.subr.mxu0 0.0
    %261 = vmatpush1.msra.mxu0 0.0
    %262 = vmatprep.subr.mxu0 0.0
    %263 = vmatpush1.msra.mxu0 0.0
    %264 = vmatprep.subr.mxu0 0.0
    %265 = vmatpush1.msra.mxu0 0.0
    %266 = vmatprep.mubr.f32.mxu0 0.0
    %267 = vmatmul.mubr.f32.gmra.mrb[0].mxu0 %v196
    %v268 = vpop.f32.mrb[0].mxu0
    %v269 = vadd.f32 %v192, %v268
    %v270 = vpop.f32.mrb[0].mxu0
    %271 = vdwg.mxu0
    %v272 = vtanh.pop %v269
    %v273 = vld [vmem:[#allocation8] sm:$0xff]
    %v274 = vld [vmem:[#allocation8 + $0x8] sm:$0xff]
    %v275 = vld [vmem:[#allocation8 + $0x10] sm:$0xff]
    %v276 = vld [vmem:[#allocation8 + $0x18] sm:$0xff]
    %v277 = vld [vmem:[#allocation10] sm:$0x1]
    %v279 = vlaneseq
    %v280 = vshrl.u32 %v279, 7
    %v281 = vsub.s32 0, %v280
    %v282 = vrot.slane %v277, %v281
    %vm284 = vcmask 261120
    %v286 = vsel %vm284, %v272, 0
    %288 = vmatprep.subr.mxu0 0.0
    %289 = vmatpush1.msra.mxu0 %v273
    %290 = vmatprep.subr.mxu0 0.0
    %291 = vmatpush1.msra.mxu0 %v274
    %292 = vmatprep.subr.mxu0 0.0
    %293 = vmatpush1.msra.mxu0 %v275
    %294 = vmatprep.subr.mxu0 0.0
    %295 = vmatpush1.msra.mxu0 %v276
    %296 = vmatprep.subr.mxu0 0.0
    %297 = vmatpush1.msra.mxu0 0.0
    %298 = vmatprep.subr.mxu0 0.0
    %299 = vmatpush1.msra.mxu0 0.0
    %300 = vmatprep.subr.mxu0 0.0
    %301 = vmatpush1.msra.mxu0 0.0
    %302 = vmatprep.subr.mxu0 0.0
    %303 = vmatpush1.msra.mxu0 0.0
    %304 = vmatprep.subr.mxu0 0.0
    %305 = vmatpush1.msra.mxu0 0.0
    %306 = vmatprep.subr.mxu0 0.0
    %307 = vmatpush1.msra.mxu0 0.0
    %308 = vmatprep.subr.mxu0 0.0
    %309 = vmatpush1.msra.mxu0 0.0
    %310 = vmatprep.subr.mxu0 0.0
    %311 = vmatpush1.msra.mxu0 0.0
    %312 = vmatprep.subr.mxu0 0.0
    %313 = vmatpush1.msra.mxu0 0.0
    %314 = vmatprep.subr.mxu0 0.0
    %315 = vmatpush1.msra.mxu0 0.0
    %316 = vmatprep.subr.mxu0 0.0
    %317 = vmatpush1.msra.mxu0 0.0
    %318 = vmatprep.subr.mxu0 0.0
    %319 = vmatpush1.msra.mxu0 0.0
    %320 = vmatprep.subr.mxu0 0.0
    %321 = vmatpush1.msra.mxu0 0.0
    %322 = vmatprep.subr.mxu0 0.0
    %323 = vmatpush1.msra.mxu0 0.0
    %324 = vmatprep.subr.mxu0 0.0
    %325 = vmatpush1.msra.mxu0 0.0
    %326 = vmatprep.subr.mxu0 0.0
    %327 = vmatpush1.msra.mxu0 0.0
    %328 = vmatprep.subr.mxu0 0.0
    %329 = vmatpush1.msra.mxu0 0.0
    %330 = vmatprep.subr.mxu0 0.0
    %331 = vmatpush1.msra.mxu0 0.0
    %332 = vmatprep.subr.mxu0 0.0
    %333 = vmatpush1.msra.mxu0 0.0
    %334 = vmatprep.subr.mxu0 0.0
    %335 = vmatpush1.msra.mxu0 0.0
    %336 = vmatprep.subr.mxu0 0.0
    %337 = vmatpush1.msra.mxu0 0.0
    %338 = vmatprep.subr.mxu0 0.0
    %339 = vmatpush1.msra.mxu0 0.0
    %340 = vmatprep.subr.mxu0 0.0
    %341 = vmatpush1.msra.mxu0 0.0
    %342 = vmatprep.subr.mxu0 0.0
    %343 = vmatpush1.msra.mxu0 0.0
    %344 = vmatprep.subr.mxu0 0.0
    %345 = vmatpush1.msra.mxu0 0.0
    %346 = vmatprep.subr.mxu0 0.0
    %347 = vmatpush1.msra.mxu0 0.0
    %348 = vmatprep.subr.mxu0 0.0
    %349 = vmatpush1.msra.mxu0 0.0
    %350 = vmatprep.subr.mxu0 0.0
    %351 = vmatpush1.msra.mxu0 0.0
    %352 = vmatprep.mubr.f32.mxu0 0.0
    %353 = vmatmul.mubr.f32.gmra.mrb[0].mxu0 %v286
    %v354 = vpop.f32.mrb[0].mxu0
    %v355 = vadd.f32 %v282, %v354
    %v356 = vpop.f32.mrb[0].mxu0
    %357 = vdwg.mxu0
    %v358 = vtanh.pop %v355
    %v359 = vld [vmem:[#allocation11] sm:$0xff]
    %v360 = vld [vmem:[#allocation11 + $0x8] sm:$0xff]
    %v361 = vld [vmem:[#allocation11 + $0x10] sm:$0xff]
    %v362 = vld [vmem:[#allocation11 + $0x18] sm:$0xff]
    %v363 = vld [vmem:[#allocation11 + $0x20] sm:$0xff]
    %v364 = vld [vmem:[#allocation11 + $0x28] sm:$0xff]
    %v365 = vld [vmem:[#allocation11 + $0x30] sm:$0xff]
    %v366 = vld [vmem:[#allocation11 + $0x38] sm:$0xff]
    %v367 = vld [vmem:[#allocation11 + $0x40] sm:$0xff]
    %v368 = vld [vmem:[#allocation11 + $0x48] sm:$0xff]
    %v369 = vld [vmem:[#allocation11 + $0x50] sm:$0xff]
    %v370 = vld [vmem:[#allocation11 + $0x58] sm:$0xff]
    %v371 = vld [vmem:[#allocation11 + $0x60] sm:$0xff]
    %v372 = vld [vmem:[#allocation11 + $0x68] sm:$0xff]
    %v373 = vld [vmem:[#allocation11 + $0x70] sm:$0xff]
    %v374 = vld [vmem:[#allocation11 + $0x78] sm:$0xff]
    %v375 = vld [vmem:[#allocation11 + $0x80] sm:$0xff]
    %v376 = vld [vmem:[#allocation11 + $0x88] sm:$0xff]
    %v377 = vld [vmem:[#allocation11 + $0x90] sm:$0xff]
    %v378 = vld [vmem:[#allocation11 + $0x98] sm:$0xff]
    %v379 = vld [vmem:[#allocation11 + $0xa0] sm:$0xff]
    %v380 = vld [vmem:[#allocation11 + $0xa8] sm:$0xff]
    %v381 = vld [vmem:[#allocation11 + $0xb0] sm:$0xff]
    %v382 = vld [vmem:[#allocation11 + $0xb8] sm:$0xff]
    %v383 = vld [vmem:[#allocation11 + $0xc0] sm:$0xff]
    %v384 = vld [vmem:[#allocation11 + $0xc8] sm:$0xff]
    %v385 = vld [vmem:[#allocation11 + $0xd0] sm:$0xff]
    %v386 = vld [vmem:[#allocation11 + $0xd8] sm:$0xff]
    %v387 = vld [vmem:[#allocation11 + $0xe0] sm:$0xff]
    %v388 = vld [vmem:[#allocation11 + $0xe8] sm:$0xff]
    %v389 = vld [vmem:[#allocation11 + $0xf0] sm:$0xff]
    %v390 = vld [vmem:[#allocation11 + $0xf8] sm:$0xff]
    %v391 = vld [vmem:[#allocation11 + $0x100] sm:$0xff]
    %v392 = vld [vmem:[#allocation11 + $0x108] sm:$0xff]
    %v393 = vld [vmem:[#allocation11 + $0x110] sm:$0xff]
    %v394 = vld [vmem:[#allocation11 + $0x118] sm:$0xff]
    %v395 = vld [vmem:[#allocation11 + $0x120] sm:$0xff]
    %v396 = vld [vmem:[#allocation11 + $0x128] sm:$0xff]
    %v397 = vld [vmem:[#allocation11 + $0x130] sm:$0xff]
    %v398 = vld [vmem:[#allocation11 + $0x138] sm:$0xff]
    %v399 = vld [vmem:[#allocation11 + $0x140] sm:$0xff]
    %v400 = vld [vmem:[#allocation11 + $0x148] sm:$0xff]
    %v401 = vld [vmem:[#allocation11 + $0x150] sm:$0xff]
    %v402 = vld [vmem:[#allocation11 + $0x158] sm:$0xff]
    %v403 = vld [vmem:[#allocation11 + $0x160] sm:$0xff]
    %v404 = vld [vmem:[#allocation11 + $0x168] sm:$0xff]
    %v405 = vld [vmem:[#allocation11 + $0x170] sm:$0xff]
    %v406 = vld [vmem:[#allocation11 + $0x178] sm:$0xff]
    %v407 = vld [vmem:[#allocation13] sm:$0xff]
    %v408 = vld [vmem:[#allocation13 + $0x8] sm:$0xf]
    %v411 = vlaneseq
    %v412 = vshrl.u32 %v411, 7
    %v413 = vsub.s32 0, %v412
    %v414 = vrot.slane %v407, %v413
    %v415 = vlaneseq
    %v416 = vshrl.u32 %v415, 7
    %v417 = vsub.s32 1, %v416
    %v418 = vrot.slane %v407, %v417
    %v419 = vlaneseq
    %v420 = vshrl.u32 %v419, 7
    %v421 = vsub.s32 2, %v420
    %v422 = vrot.slane %v407, %v421
    %v423 = vlaneseq
    %v424 = vshrl.u32 %v423, 7
    %v425 = vsub.s32 3, %v424
    %v426 = vrot.slane %v407, %v425
    %v427 = vlaneseq
    %v428 = vshrl.u32 %v427, 7
    %v429 = vsub.s32 4, %v428
    %v430 = vrot.slane %v407, %v429
    %v431 = vlaneseq
    %v432 = vshrl.u32 %v431, 7
    %v433 = vsub.s32 5, %v432
    %v434 = vrot.slane %v407, %v433
    %v435 = vlaneseq
    %v436 = vshrl.u32 %v435, 7
    %v437 = vsub.s32 6, %v436
    %v438 = vrot.slane %v407, %v437
    %v439 = vlaneseq
    %v440 = vshrl.u32 %v439, 7
    %v441 = vsub.s32 7, %v440
    %v442 = vrot.slane %v407, %v441
    %v443 = vlaneseq
    %v444 = vshrl.u32 %v443, 7
    %v445 = vsub.s32 0, %v444
    %v446 = vrot.slane %v408, %v445
    %v447 = vlaneseq
    %v448 = vshrl.u32 %v447, 7
    %v449 = vsub.s32 1, %v448
    %v450 = vrot.slane %v408, %v449
    %v451 = vlaneseq
    %v452 = vshrl.u32 %v451, 7
    %v453 = vsub.s32 2, %v452
    %v454 = vrot.slane %v408, %v453
    %v455 = vlaneseq
    %v456 = vshrl.u32 %v455, 7
    %v457 = vsub.s32 3, %v456
    %v458 = vrot.slane %v408, %v457
    %v472 = vsel %vm284, %v358, 0
    %474 = vmatprep.subr.mxu0 %v360
    %475 = vmatpush1.msra.mxu0 %v359
    %476 = vmatprep.subr.mxu0 %v372
    %477 = vmatpush1.msra.mxu0 %v371
    %478 = vmatprep.subr.mxu0 %v384
    %479 = vmatpush1.msra.mxu0 %v383
    %480 = vmatprep.subr.mxu0 %v396
    %481 = vmatpush1.msra.mxu0 %v395
    %482 = vmatprep.subr.mxu0 0.0
    %483 = vmatpush1.msra.mxu0 0.0
    %484 = vmatprep.subr.mxu0 0.0
    %485 = vmatpush1.msra.mxu0 0.0
    %486 = vmatprep.subr.mxu0 0.0
    %487 = vmatpush1.msra.mxu0 0.0
    %488 = vmatprep.subr.mxu0 0.0
    %489 = vmatpush1.msra.mxu0 0.0
    %490 = vmatprep.subr.mxu0 0.0
    %491 = vmatpush1.msra.mxu0 0.0
    %492 = vmatprep.subr.mxu0 0.0
    %493 = vmatpush1.msra.mxu0 0.0
    %494 = vmatprep.subr.mxu0 0.0
    %495 = vmatpush1.msra.mxu0 0.0
    %496 = vmatprep.subr.mxu0 0.0
    %497 = vmatpush1.msra.mxu0 0.0
    %498 = vmatprep.subr.mxu0 0.0
    %499 = vmatpush1.msra.mxu0 0.0
    %500 = vmatprep.subr.mxu0 0.0
    %501 = vmatpush1.msra.mxu0 0.0
    %502 = vmatprep.subr.mxu0 0.0
    %503 = vmatpush1.msra.mxu0 0.0
    %504 = vmatprep.subr.mxu0 0.0
    %505 = vmatpush1.msra.mxu0 0.0
    %506 = vmatprep.subr.mxu0 0.0
    %507 = vmatpush1.msra.mxu0 0.0
    %508 = vmatprep.subr.mxu0 0.0
    %509 = vmatpush1.msra.mxu0 0.0
    %510 = vmatprep.subr.mxu0 0.0
    %511 = vmatpush1.msra.mxu0 0.0
    %512 = vmatprep.subr.mxu0 0.0
    %513 = vmatpush1.msra.mxu0 0.0
    %514 = vmatprep.subr.mxu0 0.0
    %515 = vmatpush1.msra.mxu0 0.0
    %516 = vmatprep.subr.mxu0 0.0
    %517 = vmatpush1.msra.mxu0 0.0
    %518 = vmatprep.subr.mxu0 0.0
    %519 = vmatpush1.msra.mxu0 0.0
    %520 = vmatprep.subr.mxu0 0.0
    %521 = vmatpush1.msra.mxu0 0.0
    %522 = vmatprep.subr.mxu0 0.0
    %523 = vmatpush1.msra.mxu0 0.0
    %524 = vmatprep.subr.mxu0 0.0
    %525 = vmatpush1.msra.mxu0 0.0
    %526 = vmatprep.subr.mxu0 0.0
    %527 = vmatpush1.msra.mxu0 0.0
    %528 = vmatprep.subr.mxu0 0.0
    %529 = vmatpush1.msra.mxu0 0.0
    %530 = vmatprep.subr.mxu0 0.0
    %531 = vmatpush1.msra.mxu0 0.0
    %532 = vmatprep.subr.mxu0 0.0
    %533 = vmatpush1.msra.mxu0 0.0
    %534 = vmatprep.subr.mxu0 0.0
    %535 = vmatpush1.msra.mxu0 0.0
    %536 = vmatprep.subr.mxu0 0.0
    %537 = vmatpush1.msra.mxu0 0.0
    %538 = vmatprep.mubr.f32.mxu0 0.0
    %539 = vmatmul.mubr.f32.gmra.mrb[0].mxu0 %v472
    %v540 = vpop.f32.mrb[0].mxu0
    %v541 = vadd.f32 %v414, %v540
    %v542 = vpop.f32.mrb[0].mxu0
    %v543 = vadd.f32 %v418, %v542
    %544 = vdwg.mxu0
    %545 = vmatprep.subr.mxu0 %v362
    %546 = vmatpush1.msra.mxu0 %v361
    %547 = vmatprep.subr.mxu0 %v374
    %548 = vmatpush1.msra.mxu0 %v373
    %549 = vmatprep.subr.mxu0 %v386
    %550 = vmatpush1.msra.mxu0 %v385
    %551 = vmatprep.subr.mxu0 %v398
    %552 = vmatpush1.msra.mxu0 %v397
    %553 = vmatprep.subr.mxu0 0.0
    %554 = vmatpush1.msra.mxu0 0.0
    %555 = vmatprep.subr.mxu0 0.0
    %556 = vmatpush1.msra.mxu0 0.0
    %557 = vmatprep.subr.mxu0 0.0
    %558 = vmatpush1.msra.mxu0 0.0
    %559 = vmatprep.subr.mxu0 0.0
    %560 = vmatpush1.msra.mxu0 0.0
    %561 = vmatprep.subr.mxu0 0.0
    %562 = vmatpush1.msra.mxu0 0.0
    %563 = vmatprep.subr.mxu0 0.0
    %564 = vmatpush1.msra.mxu0 0.0
    %565 = vmatprep.subr.mxu0 0.0
    %566 = vmatpush1.msra.mxu0 0.0
    %567 = vmatprep.subr.mxu0 0.0
    %568 = vmatpush1.msra.mxu0 0.0
    %569 = vmatprep.subr.mxu0 0.0
    %570 = vmatpush1.msra.mxu0 0.0
    %571 = vmatprep.subr.mxu0 0.0
    %572 = vmatpush1.msra.mxu0 0.0
    %573 = vmatprep.subr.mxu0 0.0
    %574 = vmatpush1.msra.mxu0 0.0
    %575 = vmatprep.subr.mxu0 0.0
    %576 = vmatpush1.msra.mxu0 0.0
    %577 = vmatprep.subr.mxu0 0.0
    %578 = vmatpush1.msra.mxu0 0.0
    %579 = vmatprep.subr.mxu0 0.0
    %580 = vmatpush1.msra.mxu0 0.0
    %581 = vmatprep.subr.mxu0 0.0
    %582 = vmatpush1.msra.mxu0 0.0
    %583 = vmatprep.subr.mxu0 0.0
    %584 = vmatpush1.msra.mxu0 0.0
    %585 = vmatprep.subr.mxu0 0.0
    %586 = vmatpush1.msra.mxu0 0.0
    %587 = vmatprep.subr.mxu0 0.0
    %588 = vmatpush1.msra.mxu0 0.0
    %589 = vmatprep.subr.mxu0 0.0
    %590 = vmatpush1.msra.mxu0 0.0
    %591 = vmatprep.subr.mxu0 0.0
    %592 = vmatpush1.msra.mxu0 0.0
    %593 = vmatprep.subr.mxu0 0.0
    %594 = vmatpush1.msra.mxu0 0.0
    %595 = vmatprep.subr.mxu0 0.0
    %596 = vmatpush1.msra.mxu0 0.0
    %597 = vmatprep.subr.mxu0 0.0
    %598 = vmatpush1.msra.mxu0 0.0
    %599 = vmatprep.subr.mxu0 0.0
    %600 = vmatpush1.msra.mxu0 0.0
    %601 = vmatprep.subr.mxu0 0.0
    %602 = vmatpush1.msra.mxu0 0.0
    %603 = vmatprep.subr.mxu0 0.0
    %604 = vmatpush1.msra.mxu0 0.0
    %605 = vmatprep.subr.mxu0 0.0
    %606 = vmatpush1.msra.mxu0 0.0
    %607 = vmatprep.subr.mxu0 0.0
    %608 = vmatpush1.msra.mxu0 0.0
    %609 = vmatprep.mubr.f32.mxu0 0.0
    %610 = vmatmul.mubr.f32.gmra.mrb[0].mxu0 %v472
    %v611 = vpop.f32.mrb[0].mxu0
    %v612 = vadd.f32 %v422, %v611
    %v613 = vpop.f32.mrb[0].mxu0
    %v614 = vadd.f32 %v426, %v613
    %615 = vdwg.mxu0
    %616 = vmatprep.subr.mxu0 %v364
    %617 = vmatpush1.msra.mxu0 %v363
    %618 = vmatprep.subr.mxu0 %v376
    %619 = vmatpush1.msra.mxu0 %v375
    %620 = vmatprep.subr.mxu0 %v388
    %621 = vmatpush1.msra.mxu0 %v387
    %622 = vmatprep.subr.mxu0 %v400
    %623 = vmatpush1.msra.mxu0 %v399
    %624 = vmatprep.subr.mxu0 0.0
    %625 = vmatpush1.msra.mxu0 0.0
    %626 = vmatprep.subr.mxu0 0.0
    %627 = vmatpush1.msra.mxu0 0.0
    %628 = vmatprep.subr.mxu0 0.0
    %629 = vmatpush1.msra.mxu0 0.0
    %630 = vmatprep.subr.mxu0 0.0
    %631 = vmatpush1.msra.mxu0 0.0
    %632 = vmatprep.subr.mxu0 0.0
    %633 = vmatpush1.msra.mxu0 0.0
    %634 = vmatprep.subr.mxu0 0.0
    %635 = vmatpush1.msra.mxu0 0.0
    %636 = vmatprep.subr.mxu0 0.0
    %637 = vmatpush1.msra.mxu0 0.0
    %638 = vmatprep.subr.mxu0 0.0
    %639 = vmatpush1.msra.mxu0 0.0
    %640 = vmatprep.subr.mxu0 0.0
    %641 = vmatpush1.msra.mxu0 0.0
    %642 = vmatprep.subr.mxu0 0.0
    %643 = vmatpush1.msra.mxu0 0.0
    %644 = vmatprep.subr.mxu0 0.0
    %645 = vmatpush1.msra.mxu0 0.0
    %646 = vmatprep.subr.mxu0 0.0
    %647 = vmatpush1.msra.mxu0 0.0
    %648 = vmatprep.subr.mxu0 0.0
    %649 = vmatpush1.msra.mxu0 0.0
    %650 = vmatprep.subr.mxu0 0.0
    %651 = vmatpush1.msra.mxu0 0.0
    %652 = vmatprep.subr.mxu0 0.0
    %653 = vmatpush1.msra.mxu0 0.0
    %654 = vmatprep.subr.mxu0 0.0
    %655 = vmatpush1.msra.mxu0 0.0
    %656 = vmatprep.subr.mxu0 0.0
    %657 = vmatpush1.msra.mxu0 0.0
    %658 = vmatprep.subr.mxu0 0.0
    %659 = vmatpush1.msra.mxu0 0.0
    %660 = vmatprep.subr.mxu0 0.0
    %661 = vmatpush1.msra.mxu0 0.0
    %662 = vmatprep.subr.mxu0 0.0
    %663 = vmatpush1.msra.mxu0 0.0
    %664 = vmatprep.subr.mxu0 0.0
    %665 = vmatpush1.msra.mxu0 0.0
    %666 = vmatprep.subr.mxu0 0.0
    %667 = vmatpush1.msra.mxu0 0.0
    %668 = vmatprep.subr.mxu0 0.0
    %669 = vmatpush1.msra.mxu0 0.0
    %670 = vmatprep.subr.mxu0 0.0
    %671 = vmatpush1.msra.mxu0 0.0
    %672 = vmatprep.subr.mxu0 0.0
    %673 = vmatpush1.msra.mxu0 0.0
    %674 = vmatprep.subr.mxu0 0.0
    %675 = vmatpush1.msra.mxu0 0.0
    %676 = vmatprep.subr.mxu0 0.0
    %677 = vmatpush1.msra.mxu0 0.0
    %678 = vmatprep.subr.mxu0 0.0
    %679 = vmatpush1.msra.mxu0 0.0
    %680 = vmatprep.mubr.f32.mxu0 0.0
    %681 = vmatmul.mubr.f32.gmra.mrb[0].mxu0 %v472
    %v682 = vpop.f32.mrb[0].mxu0
    %v683 = vadd.f32 %v430, %v682
    %v684 = vpop.f32.mrb[0].mxu0
    %v685 = vadd.f32 %v434, %v684
    %686 = vdwg.mxu0
    %687 = vmatprep.subr.mxu0 %v366
    %688 = vmatpush1.msra.mxu0 %v365
    %689 = vmatprep.subr.mxu0 %v378
    %690 = vmatpush1.msra.mxu0 %v377
    %691 = vmatprep.subr.mxu0 %v390
    %692 = vmatpush1.msra.mxu0 %v389
    %693 = vmatprep.subr.mxu0 %v402
    %694 = vmatpush1.msra.mxu0 %v401
    %695 = vmatprep.subr.mxu0 0.0
    %696 = vmatpush1.msra.mxu0 0.0
    %697 = vmatprep.subr.mxu0 0.0
    %698 = vmatpush1.msra.mxu0 0.0
    %699 = vmatprep.subr.mxu0 0.0
    %700 = vmatpush1.msra.mxu0 0.0
    %701 = vmatprep.subr.mxu0 0.0
    %702 = vmatpush1.msra.mxu0 0.0
    %703 = vmatprep.subr.mxu0 0.0
    %704 = vmatpush1.msra.mxu0 0.0
    %705 = vmatprep.subr.mxu0 0.0
    %706 = vmatpush1.msra.mxu0 0.0
    %707 = vmatprep.subr.mxu0 0.0
    %708 = vmatpush1.msra.mxu0 0.0
    %709 = vmatprep.subr.mxu0 0.0
    %710 = vmatpush1.msra.mxu0 0.0
    %711 = vmatprep.subr.mxu0 0.0
    %712 = vmatpush1.msra.mxu0 0.0
    %713 = vmatprep.subr.mxu0 0.0
    %714 = vmatpush1.msra.mxu0 0.0
    %715 = vmatprep.subr.mxu0 0.0
    %716 = vmatpush1.msra.mxu0 0.0
    %717 = vmatprep.subr.mxu0 0.0
    %718 = vmatpush1.msra.mxu0 0.0
    %719 = vmatprep.subr.mxu0 0.0
    %720 = vmatpush1.msra.mxu0 0.0
    %721 = vmatprep.subr.mxu0 0.0
    %722 = vmatpush1.msra.mxu0 0.0
    %723 = vmatprep.subr.mxu0 0.0
    %724 = vmatpush1.msra.mxu0 0.0
    %725 = vmatprep.subr.mxu0 0.0
    %726 = vmatpush1.msra.mxu0 0.0
    %727 = vmatprep.subr.mxu0 0.0
    %728 = vmatpush1.msra.mxu0 0.0
    %729 = vmatprep.subr.mxu0 0.0
    %730 = vmatpush1.msra.mxu0 0.0
    %731 = vmatprep.subr.mxu0 0.0
    %732 = vmatpush1.msra.mxu0 0.0
    %733 = vmatprep.subr.mxu0 0.0
    %734 = vmatpush1.msra.mxu0 0.0
    %735 = vmatprep.subr.mxu0 0.0
    %736 = vmatpush1.msra.mxu0 0.0
    %737 = vmatprep.subr.mxu0 0.0
    %738 = vmatpush1.msra.mxu0 0.0
    %739 = vmatprep.subr.mxu0 0.0
    %740 = vmatpush1.msra.mxu0 0.0
    %741 = vmatprep.subr.mxu0 0.0
    %742 = vmatpush1.msra.mxu0 0.0
    %743 = vmatprep.subr.mxu0 0.0
    %744 = vmatpush1.msra.mxu0 0.0
    %745 = vmatprep.subr.mxu0 0.0
    %746 = vmatpush1.msra.mxu0 0.0
    %747 = vmatprep.subr.mxu0 0.0
    %748 = vmatpush1.msra.mxu0 0.0
    %749 = vmatprep.subr.mxu0 0.0
    %750 = vmatpush1.msra.mxu0 0.0
    %751 = vmatprep.mubr.f32.mxu0 0.0
    %752 = vmatmul.mubr.f32.gmra.mrb[0].mxu0 %v472
    %v753 = vpop.f32.mrb[0].mxu0
    %v754 = vadd.f32 %v438, %v753
    %v755 = vpop.f32.mrb[0].mxu0
    %v756 = vadd.f32 %v442, %v755
    %757 = vdwg.mxu0
    %758 = vmatprep.subr.mxu0 %v368
    %759 = vmatpush1.msra.mxu0 %v367
    %760 = vmatprep.subr.mxu0 %v380
    %761 = vmatpush1.msra.mxu0 %v379
    %762 = vmatprep.subr.mxu0 %v392
    %763 = vmatpush1.msra.mxu0 %v391
    %764 = vmatprep.subr.mxu0 %v404
    %765 = vmatpush1.msra.mxu0 %v403
    %766 = vmatprep.subr.mxu0 0.0
    %767 = vmatpush1.msra.mxu0 0.0
    %768 = vmatprep.subr.mxu0 0.0
    %769 = vmatpush1.msra.mxu0 0.0
    %770 = vmatprep.subr.mxu0 0.0
    %771 = vmatpush1.msra.mxu0 0.0
    %772 = vmatprep.subr.mxu0 0.0
    %773 = vmatpush1.msra.mxu0 0.0
    %774 = vmatprep.subr.mxu0 0.0
    %775 = vmatpush1.msra.mxu0 0.0
    %776 = vmatprep.subr.mxu0 0.0
    %777 = vmatpush1.msra.mxu0 0.0
    %778 = vmatprep.subr.mxu0 0.0
    %779 = vmatpush1.msra.mxu0 0.0
    %780 = vmatprep.subr.mxu0 0.0
    %781 = vmatpush1.msra.mxu0 0.0
    %782 = vmatprep.subr.mxu0 0.0
    %783 = vmatpush1.msra.mxu0 0.0
    %784 = vmatprep.subr.mxu0 0.0
    %785 = vmatpush1.msra.mxu0 0.0
    %786 = vmatprep.subr.mxu0 0.0
    %787 = vmatpush1.msra.mxu0 0.0
    %788 = vmatprep.subr.mxu0 0.0
    %789 = vmatpush1.msra.mxu0 0.0
    %790 = vmatprep.subr.mxu0 0.0
    %791 = vmatpush1.msra.mxu0 0.0
    %792 = vmatprep.subr.mxu0 0.0
    %793 = vmatpush1.msra.mxu0 0.0
    %794 = vmatprep.subr.mxu0 0.0
    %795 = vmatpush1.msra.mxu0 0.0
    %796 = vmatprep.subr.mxu0 0.0
    %797 = vmatpush1.msra.mxu0 0.0
    %798 = vmatprep.subr.mxu0 0.0
    %799 = vmatpush1.msra.mxu0 0.0
    %800 = vmatprep.subr.mxu0 0.0
    %801 = vmatpush1.msra.mxu0 0.0
    %802 = vmatprep.subr.mxu0 0.0
    %803 = vmatpush1.msra.mxu0 0.0
    %804 = vmatprep.subr.mxu0 0.0
    %805 = vmatpush1.msra.mxu0 0.0
    %806 = vmatprep.subr.mxu0 0.0
    %807 = vmatpush1.msra.mxu0 0.0
    %808 = vmatprep.subr.mxu0 0.0
    %809 = vmatpush1.msra.mxu0 0.0
    %810 = vmatprep.subr.mxu0 0.0
    %811 = vmatpush1.msra.mxu0 0.0
    %812 = vmatprep.subr.mxu0 0.0
    %813 = vmatpush1.msra.mxu0 0.0
    %814 = vmatprep.subr.mxu0 0.0
    %815 = vmatpush1.msra.mxu0 0.0
    %816 = vmatprep.subr.mxu0 0.0
    %817 = vmatpush1.msra.mxu0 0.0
    %818 = vmatprep.subr.mxu0 0.0
    %819 = vmatpush1.msra.mxu0 0.0
    %820 = vmatprep.subr.mxu0 0.0
    %821 = vmatpush1.msra.mxu0 0.0
    %822 = vmatprep.mubr.f32.mxu0 0.0
    %823 = vmatmul.mubr.f32.gmra.mrb[0].mxu0 %v472
    %v824 = vpop.f32.mrb[0].mxu0
    %v825 = vadd.f32 %v446, %v824
    %v826 = vpop.f32.mrb[0].mxu0
    %v827 = vadd.f32 %v450, %v826
    %828 = vdwg.mxu0
    %829 = vmatprep.subr.mxu0 %v370
    %830 = vmatpush1.msra.mxu0 %v369
    %831 = vmatprep.subr.mxu0 %v382
    %832 = vmatpush1.msra.mxu0 %v381
    %833 = vmatprep.subr.mxu0 %v394
    %834 = vmatpush1.msra.mxu0 %v393
    %835 = vmatprep.subr.mxu0 %v406
    %836 = vmatpush1.msra.mxu0 %v405
    %837 = vmatprep.subr.mxu0 0.0
    %838 = vmatpush1.msra.mxu0 0.0
    %839 = vmatprep.subr.mxu0 0.0
    %840 = vmatpush1.msra.mxu0 0.0
    %841 = vmatprep.subr.mxu0 0.0
    %842 = vmatpush1.msra.mxu0 0.0
    %843 = vmatprep.subr.mxu0 0.0
    %844 = vmatpush1.msra.mxu0 0.0
    %845 = vmatprep.subr.mxu0 0.0
    %846 = vmatpush1.msra.mxu0 0.0
    %847 = vmatprep.subr.mxu0 0.0
    %848 = vmatpush1.msra.mxu0 0.0
    %849 = vmatprep.subr.mxu0 0.0
    %850 = vmatpush1.msra.mxu0 0.0
    %851 = vmatprep.subr.mxu0 0.0
    %852 = vmatpush1.msra.mxu0 0.0
    %853 = vmatprep.subr.mxu0 0.0
    %854 = vmatpush1.msra.mxu0 0.0
    %855 = vmatprep.subr.mxu0 0.0
    %856 = vmatpush1.msra.mxu0 0.0
    %857 = vmatprep.subr.mxu0 0.0
    %858 = vmatpush1.msra.mxu0 0.0
    %859 = vmatprep.subr.mxu0 0.0
    %860 = vmatpush1.msra.mxu0 0.0
    %861 = vmatprep.subr.mxu0 0.0
    %862 = vmatpush1.msra.mxu0 0.0
    %863 = vmatprep.subr.mxu0 0.0
    %864 = vmatpush1.msra.mxu0 0.0
    %865 = vmatprep.subr.mxu0 0.0
    %866 = vmatpush1.msra.mxu0 0.0
    %867 = vmatprep.subr.mxu0 0.0
    %868 = vmatpush1.msra.mxu0 0.0
    %869 = vmatprep.subr.mxu0 0.0
    %870 = vmatpush1.msra.mxu0 0.0
    %871 = vmatprep.subr.mxu0 0.0
    %872 = vmatpush1.msra.mxu0 0.0
    %873 = vmatprep.subr.mxu0 0.0
    %874 = vmatpush1.msra.mxu0 0.0
    %875 = vmatprep.subr.mxu0 0.0
    %876 = vmatpush1.msra.mxu0 0.0
    %877 = vmatprep.subr.mxu0 0.0
    %878 = vmatpush1.msra.mxu0 0.0
    %879 = vmatprep.subr.mxu0 0.0
    %880 = vmatpush1.msra.mxu0 0.0
    %881 = vmatprep.subr.mxu0 0.0
    %882 = vmatpush1.msra.mxu0 0.0
    %883 = vmatprep.subr.mxu0 0.0
    %884 = vmatpush1.msra.mxu0 0.0
    %885 = vmatprep.subr.mxu0 0.0
    %886 = vmatpush1.msra.mxu0 0.0
    %887 = vmatprep.subr.mxu0 0.0
    %888 = vmatpush1.msra.mxu0 0.0
    %889 = vmatprep.subr.mxu0 0.0
    %890 = vmatpush1.msra.mxu0 0.0
    %891 = vmatprep.subr.mxu0 0.0
    %892 = vmatpush1.msra.mxu0 0.0
    %893 = vmatprep.mubr.f32.mxu0 0.0
    %894 = vmatmul.mubr.f32.gmra.mrb[0].mxu0 %v472
    %v895 = vpop.f32.mrb[0].mxu0
    %v896 = vadd.f32 %v454, %v895
    %v897 = vpop.f32.mrb[0].mxu0
    %v898 = vadd.f32 %v458, %v897
    %899 = vdwg.mxu0
    %901 = vset.pattern.permute.xlu0 0
    %902 = vperm.xlu0 %901, %v185
    %v903 = vpop.permute.xlu0 %902
    %v905 = vmul.f32 %v541, %v903
    %v906 = vadd.f32 %v683, %v905
    %907 = vset.pattern.permute.xlu0 1
    %908 = vperm.xlu0 %907, %v185
    %v909 = vpop.permute.xlu0 %908
    %v911 = vmul.f32 %v541, %v909
    %913 = vrot.lane.b32.xlu0 %v911, 96
    %v914 = vpop.permute.xlu0 %913
    %v916 = vadd.f32 %v906, %v914
    %917 = vset.pattern.permute.xlu0 2
    %918 = vperm.xlu0 %917, %v185
    %v919 = vpop.permute.xlu0 %918
    %v921 = vmul.f32 %v541, %v919
    %923 = vrot.lane.b32.xlu0 %v921, 64
    %v924 = vpop.permute.xlu0 %923
    %v926 = vadd.f32 %v916, %v924
    %927 = vset.pattern.permute.xlu0 3
    %928 = vperm.xlu0 %927, %v185
    %v929 = vpop.permute.xlu0 %928
    %v931 = vmul.f32 %v541, %v929
    %933 = vrot.lane.b32.xlu0 %v931, 32
    %v934 = vpop.permute.xlu0 %933
    %v936 = vadd.f32 %v926, %v934
    %937 = vset.pattern.permute.xlu0 4
    %938 = vperm.xlu0 %937, %v185
    %v939 = vpop.permute.xlu0 %938
    %v941 = vmul.f32 %v543, %v939
    %v942 = vadd.f32 %v936, %v941
    %943 = vset.pattern.permute.xlu0 5
    %944 = vperm.xlu0 %943, %v185
    %v945 = vpop.permute.xlu0 %944
    %v947 = vmul.f32 %v543, %v945
    %949 = vrot.lane.b32.xlu0 %v947, 96
    %v950 = vpop.permute.xlu0 %949
    %v952 = vadd.f32 %v942, %v950
    %953 = vset.pattern.permute.xlu0 6
    %954 = vperm.xlu0 %953, %v185
    %v955 = vpop.permute.xlu0 %954
    %v957 = vmul.f32 %v543, %v955
    %959 = vrot.lane.b32.xlu0 %v957, 64
    %v960 = vpop.permute.xlu0 %959
    %v962 = vadd.f32 %v952, %v960
    %963 = vset.pattern.permute.xlu0 7
    %964 = vperm.xlu0 %963, %v185
    %v965 = vpop.permute.xlu0 %964
    %v967 = vmul.f32 %v543, %v965
    %969 = vrot.lane.b32.xlu0 %v967, 32
    %v970 = vpop.permute.xlu0 %969
    %v972 = vadd.f32 %v962, %v970
    %973 = vset.pattern.permute.xlu0 8
    %974 = vperm.xlu0 %973, %v185
    %v975 = vpop.permute.xlu0 %974
    %v977 = vmul.f32 %v612, %v975
    %v978 = vadd.f32 %v972, %v977
    %979 = vset.pattern.permute.xlu0 9
    %980 = vperm.xlu0 %979, %v185
    %v981 = vpop.permute.xlu0 %980
    %v983 = vmul.f32 %v612, %v981
    %985 = vrot.lane.b32.xlu0 %v983, 96
    %v986 = vpop.permute.xlu0 %985
    %v988 = vadd.f32 %v978, %v986
    %989 = vset.pattern.permute.xlu0 10
    %990 = vperm.xlu0 %989, %v185
    %v991 = vpop.permute.xlu0 %990
    %v993 = vmul.f32 %v612, %v991
    %995 = vrot.lane.b32.xlu0 %v993, 64
    %v996 = vpop.permute.xlu0 %995
    %v998 = vadd.f32 %v988, %v996
    %999 = vset.pattern.permute.xlu0 11
    %1000 = vperm.xlu0 %999, %v185
    %v1001 = vpop.permute.xlu0 %1000
    %v1003 = vmul.f32 %v612, %v1001
    %1005 = vrot.lane.b32.xlu0 %v1003, 32
    %v1006 = vpop.permute.xlu0 %1005
    %v1008 = vadd.f32 %v998, %v1006
    %1009 = vset.pattern.permute.xlu0 12
    %1010 = vperm.xlu0 %1009, %v185
    %v1011 = vpop.permute.xlu0 %1010
    %v1013 = vmul.f32 %v614, %v1011
    %v1014 = vadd.f32 %v1008, %v1013
    %1015 = vset.pattern.permute.xlu0 13
    %1016 = vperm.xlu0 %1015, %v185
    %v1017 = vpop.permute.xlu0 %1016
    %v1019 = vmul.f32 %v614, %v1017
    %1021 = vrot.lane.b32.xlu0 %v1019, 96
    %v1022 = vpop.permute.xlu0 %1021
    %v1024 = vadd.f32 %v1014, %v1022
    %1025 = vset.pattern.permute.xlu0 14
    %1026 = vperm.xlu0 %1025, %v185
    %v1027 = vpop.permute.xlu0 %1026
    %v1029 = vmul.f32 %v614, %v1027
    %1031 = vrot.lane.b32.xlu0 %v1029, 64
    %v1032 = vpop.permute.xlu0 %1031
    %v1034 = vadd.f32 %v1024, %v1032
    %1035 = vset.pattern.permute.xlu0 15
    %1036 = vperm.xlu0 %1035, %v185
    %v1037 = vpop.permute.xlu0 %1036
    %v1039 = vmul.f32 %v614, %v1037
    %1041 = vrot.lane.b32.xlu0 %v1039, 32
    %v1042 = vpop.permute.xlu0 %1041
    %v1044 = vadd.f32 %v1034, %v1042
    %1046 = vset.pattern.permute.xlu0 0
    %1047 = vperm.xlu0 %1046, %v1044
    %v1048 = vpop.permute.xlu0 %1047
    %v1050 = vmul.f32 %v685, %v1048
    %v1051 = vadd.f32 %v827, %v1050
    %1052 = vset.pattern.permute.xlu0 1
    %1053 = vperm.xlu0 %1052, %v1044
    %v1054 = vpop.permute.xlu0 %1053
    %v1056 = vmul.f32 %v685, %v1054
    %1058 = vrot.lane.b32.xlu0 %v1056, 112
    %v1059 = vpop.permute.xlu0 %1058
    %v1061 = vadd.f32 %v1051, %v1059
    %1062 = vset.pattern.permute.xlu0 2
    %1063 = vperm.xlu0 %1062, %v1044
    %v1064 = vpop.permute.xlu0 %1063
    %v1066 = vmul.f32 %v685, %v1064
    %1068 = vrot.lane.b32.xlu0 %v1066, 96
    %v1069 = vpop.permute.xlu0 %1068
    %v1071 = vadd.f32 %v1061, %v1069
    %1072 = vset.pattern.permute.xlu0 3
    %1073 = vperm.xlu0 %1072, %v1044
    %v1074 = vpop.permute.xlu0 %1073
    %v1076 = vmul.f32 %v685, %v1074
    %1078 = vrot.lane.b32.xlu0 %v1076, 80
    %v1079 = vpop.permute.xlu0 %1078
    %v1081 = vadd.f32 %v1071, %v1079
    %1082 = vset.pattern.permute.xlu0 4
    %1083 = vperm.xlu0 %1082, %v1044
    %v1084 = vpop.permute.xlu0 %1083
    %v1086 = vmul.f32 %v685, %v1084
    %1088 = vrot.lane.b32.xlu0 %v1086, 64
    %v1089 = vpop.permute.xlu0 %1088
    %v1091 = vadd.f32 %v1081, %v1089
    %1092 = vset.pattern.permute.xlu0 5
    %1093 = vperm.xlu0 %1092, %v1044
    %v1094 = vpop.permute.xlu0 %1093
    %v1096 = vmul.f32 %v685, %v1094
    %1098 = vrot.lane.b32.xlu0 %v1096, 48
    %v1099 = vpop.permute.xlu0 %1098
    %v1101 = vadd.f32 %v1091, %v1099
    %1102 = vset.pattern.permute.xlu0 6
    %1103 = vperm.xlu0 %1102, %v1044
    %v1104 = vpop.permute.xlu0 %1103
    %v1106 = vmul.f32 %v685, %v1104
    %1108 = vrot.lane.b32.xlu0 %v1106, 32
    %v1109 = vpop.permute.xlu0 %1108
    %v1111 = vadd.f32 %v1101, %v1109
    %1112 = vset.pattern.permute.xlu0 7
    %1113 = vperm.xlu0 %1112, %v1044
    %v1114 = vpop.permute.xlu0 %1113
    %v1116 = vmul.f32 %v685, %v1114
    %1118 = vrot.lane.b32.xlu0 %v1116, 16
    %v1119 = vpop.permute.xlu0 %1118
    %v1121 = vadd.f32 %v1111, %v1119
    %1122 = vset.pattern.permute.xlu0 8
    %1123 = vperm.xlu0 %1122, %v1044
    %v1124 = vpop.permute.xlu0 %1123
    %v1126 = vmul.f32 %v754, %v1124
    %v1127 = vadd.f32 %v1121, %v1126
    %1128 = vset.pattern.permute.xlu0 9
    %1129 = vperm.xlu0 %1128, %v1044
    %v1130 = vpop.permute.xlu0 %1129
    %v1132 = vmul.f32 %v754, %v1130
    %1134 = vrot.lane.b32.xlu0 %v1132, 112
    %v1135 = vpop.permute.xlu0 %1134
    %v1137 = vadd.f32 %v1127, %v1135
    %1138 = vset.pattern.permute.xlu0 10
    %1139 = vperm.xlu0 %1138, %v1044
    %v1140 = vpop.permute.xlu0 %1139
    %v1142 = vmul.f32 %v754, %v1140
    %1144 = vrot.lane.b32.xlu0 %v1142, 96
    %v1145 = vpop.permute.xlu0 %1144
    %v1147 = vadd.f32 %v1137, %v1145
    %1148 = vset.pattern.permute.xlu0 11
    %1149 = vperm.xlu0 %1148, %v1044
    %v1150 = vpop.permute.xlu0 %1149
    %v1152 = vmul.f32 %v754, %v1150
    %1154 = vrot.lane.b32.xlu0 %v1152, 80
    %v1155 = vpop.permute.xlu0 %1154
    %v1157 = vadd.f32 %v1147, %v1155
    %1158 = vset.pattern.permute.xlu0 12
    %1159 = vperm.xlu0 %1158, %v1044
    %v1160 = vpop.permute.xlu0 %1159
    %v1162 = vmul.f32 %v754, %v1160
    %1164 = vrot.lane.b32.xlu0 %v1162, 64
    %v1165 = vpop.permute.xlu0 %1164
    %v1167 = vadd.f32 %v1157, %v1165
    %1168 = vset.pattern.permute.xlu0 13
    %1169 = vperm.xlu0 %1168, %v1044
    %v1170 = vpop.permute.xlu0 %1169
    %v1172 = vmul.f32 %v754, %v1170
    %1174 = vrot.lane.b32.xlu0 %v1172, 48
    %v1175 = vpop.permute.xlu0 %1174
    %v1177 = vadd.f32 %v1167, %v1175
    %1178 = vset.pattern.permute.xlu0 14
    %1179 = vperm.xlu0 %1178, %v1044
    %v1180 = vpop.permute.xlu0 %1179
    %v1182 = vmul.f32 %v754, %v1180
    %1184 = vrot.lane.b32.xlu0 %v1182, 32
    %v1185 = vpop.permute.xlu0 %1184
    %v1187 = vadd.f32 %v1177, %v1185
    %1188 = vset.pattern.permute.xlu0 15
    %1189 = vperm.xlu0 %1188, %v1044
    %v1190 = vpop.permute.xlu0 %1189
    %v1192 = vmul.f32 %v754, %v1190
    %1194 = vrot.lane.b32.xlu0 %v1192, 16
    %v1195 = vpop.permute.xlu0 %1194
    %v1197 = vadd.f32 %v1187, %v1195
    %1198 = vset.pattern.permute.xlu0 16
    %1199 = vperm.xlu0 %1198, %v1044
    %v1200 = vpop.permute.xlu0 %1199
    %v1202 = vmul.f32 %v756, %v1200
    %v1203 = vadd.f32 %v1197, %v1202
    %1204 = vset.pattern.permute.xlu0 17
    %1205 = vperm.xlu0 %1204, %v1044
    %v1206 = vpop.permute.xlu0 %1205
    %v1208 = vmul.f32 %v756, %v1206
    %1210 = vrot.lane.b32.xlu0 %v1208, 112
    %v1211 = vpop.permute.xlu0 %1210
    %v1213 = vadd.f32 %v1203, %v1211
    %1214 = vset.pattern.permute.xlu0 18
    %1215 = vperm.xlu0 %1214, %v1044
    %v1216 = vpop.permute.xlu0 %1215
    %v1218 = vmul.f32 %v756, %v1216
    %1220 = vrot.lane.b32.xlu0 %v1218, 96
    %v1221 = vpop.permute.xlu0 %1220
    %v1223 = vadd.f32 %v1213, %v1221
    %1224 = vset.pattern.permute.xlu0 19
    %1225 = vperm.xlu0 %1224, %v1044
    %v1226 = vpop.permute.xlu0 %1225
    %v1228 = vmul.f32 %v756, %v1226
    %1230 = vrot.lane.b32.xlu0 %v1228, 80
    %v1231 = vpop.permute.xlu0 %1230
    %v1233 = vadd.f32 %v1223, %v1231
    %1234 = vset.pattern.permute.xlu0 20
    %1235 = vperm.xlu0 %1234, %v1044
    %v1236 = vpop.permute.xlu0 %1235
    %v1238 = vmul.f32 %v756, %v1236
    %1240 = vrot.lane.b32.xlu0 %v1238, 64
    %v1241 = vpop.permute.xlu0 %1240
    %v1243 = vadd.f32 %v1233, %v1241
    %1244 = vset.pattern.permute.xlu0 21
    %1245 = vperm.xlu0 %1244, %v1044
    %v1246 = vpop.permute.xlu0 %1245
    %v1248 = vmul.f32 %v756, %v1246
    %1250 = vrot.lane.b32.xlu0 %v1248, 48
    %v1251 = vpop.permute.xlu0 %1250
    %v1253 = vadd.f32 %v1243, %v1251
    %1254 = vset.pattern.permute.xlu0 22
    %1255 = vperm.xlu0 %1254, %v1044
    %v1256 = vpop.permute.xlu0 %1255
    %v1258 = vmul.f32 %v756, %v1256
    %1260 = vrot.lane.b32.xlu0 %v1258, 32
    %v1261 = vpop.permute.xlu0 %1260
    %v1263 = vadd.f32 %v1253, %v1261
    %1264 = vset.pattern.permute.xlu0 23
    %1265 = vperm.xlu0 %1264, %v1044
    %v1266 = vpop.permute.xlu0 %1265
    %v1268 = vmul.f32 %v756, %v1266
    %1270 = vrot.lane.b32.xlu0 %v1268, 16
    %v1271 = vpop.permute.xlu0 %1270
    %v1273 = vadd.f32 %v1263, %v1271
    %1274 = vset.pattern.permute.xlu0 24
    %1275 = vperm.xlu0 %1274, %v1044
    %v1276 = vpop.permute.xlu0 %1275
    %v1278 = vmul.f32 %v825, %v1276
    %v1279 = vadd.f32 %v1273, %v1278
    %1280 = vset.pattern.permute.xlu0 25
    %1281 = vperm.xlu0 %1280, %v1044
    %v1282 = vpop.permute.xlu0 %1281
    %v1284 = vmul.f32 %v825, %v1282
    %1286 = vrot.lane.b32.xlu0 %v1284, 112
    %v1287 = vpop.permute.xlu0 %1286
    %v1289 = vadd.f32 %v1279, %v1287
    %1290 = vset.pattern.permute.xlu0 26
    %1291 = vperm.xlu0 %1290, %v1044
    %v1292 = vpop.permute.xlu0 %1291
    %v1294 = vmul.f32 %v825, %v1292
    %1296 = vrot.lane.b32.xlu0 %v1294, 96
    %v1297 = vpop.permute.xlu0 %1296
    %v1299 = vadd.f32 %v1289, %v1297
    %1300 = vset.pattern.permute.xlu0 27
    %1301 = vperm.xlu0 %1300, %v1044
    %v1302 = vpop.permute.xlu0 %1301
    %v1304 = vmul.f32 %v825, %v1302
    %1306 = vrot.lane.b32.xlu0 %v1304, 80
    %v1307 = vpop.permute.xlu0 %1306
    %v1309 = vadd.f32 %v1299, %v1307
    %1310 = vset.pattern.permute.xlu0 28
    %1311 = vperm.xlu0 %1310, %v1044
    %v1312 = vpop.permute.xlu0 %1311
    %v1314 = vmul.f32 %v825, %v1312
    %1316 = vrot.lane.b32.xlu0 %v1314, 64
    %v1317 = vpop.permute.xlu0 %1316
    %v1319 = vadd.f32 %v1309, %v1317
    %1320 = vset.pattern.permute.xlu0 29
    %1321 = vperm.xlu0 %1320, %v1044
    %v1322 = vpop.permute.xlu0 %1321
    %v1324 = vmul.f32 %v825, %v1322
    %1326 = vrot.lane.b32.xlu0 %v1324, 48
    %v1327 = vpop.permute.xlu0 %1326
    %v1329 = vadd.f32 %v1319, %v1327
    %1330 = vset.pattern.permute.xlu0 30
    %1331 = vperm.xlu0 %1330, %v1044
    %v1332 = vpop.permute.xlu0 %1331
    %v1334 = vmul.f32 %v825, %v1332
    %1336 = vrot.lane.b32.xlu0 %v1334, 32
    %v1337 = vpop.permute.xlu0 %1336
    %v1339 = vadd.f32 %v1329, %v1337
    %1340 = vset.pattern.permute.xlu0 31
    %1341 = vperm.xlu0 %1340, %v1044
    %v1342 = vpop.permute.xlu0 %1341
    %v1344 = vmul.f32 %v825, %v1342
    %1346 = vrot.lane.b32.xlu0 %v1344, 16
    %v1347 = vpop.permute.xlu0 %1346
    %v1349 = vadd.f32 %v1339, %v1347
    %v1350 = vtanh.pop %v1349
    %1352 = vset.pattern.permute.xlu0 0
    %1353 = vperm.xlu0 %1352, %v1350
    %v1354 = vpop.permute.xlu0 %1353
    %v1356 = vmul.f32 %v896, %v1354
    %v1357 = vadd.f32 %v898, %v1356
    %1358 = vset.pattern.permute.xlu0 1
    %1359 = vperm.xlu0 %1358, %v1350
    %v1360 = vpop.permute.xlu0 %1359
    %v1362 = vmul.f32 %v896, %v1360
    %1364 = vrot.lane.b32.xlu0 %v1362, 120
    %v1365 = vpop.permute.xlu0 %1364
    %v1367 = vadd.f32 %v1357, %v1365
    %1368 = vset.pattern.permute.xlu0 2
    %1369 = vperm.xlu0 %1368, %v1350
    %v1370 = vpop.permute.xlu0 %1369
    %v1372 = vmul.f32 %v896, %v1370
    %1374 = vrot.lane.b32.xlu0 %v1372, 112
    %v1375 = vpop.permute.xlu0 %1374
    %v1377 = vadd.f32 %v1367, %v1375
    %1378 = vset.pattern.permute.xlu0 3
    %1379 = vperm.xlu0 %1378, %v1350
    %v1380 = vpop.permute.xlu0 %1379
    %v1382 = vmul.f32 %v896, %v1380
    %1384 = vrot.lane.b32.xlu0 %v1382, 104
    %v1385 = vpop.permute.xlu0 %1384
    %v1387 = vadd.f32 %v1377, %v1385
    %1388 = vset.pattern.permute.xlu0 4
    %1389 = vperm.xlu0 %1388, %v1350
    %v1390 = vpop.permute.xlu0 %1389
    %v1392 = vmul.f32 %v896, %v1390
    %1394 = vrot.lane.b32.xlu0 %v1392, 96
    %v1395 = vpop.permute.xlu0 %1394
    %v1397 = vadd.f32 %v1387, %v1395
    %1398 = vset.pattern.permute.xlu0 5
    %1399 = vperm.xlu0 %1398, %v1350
    %v1400 = vpop.permute.xlu0 %1399
    %v1402 = vmul.f32 %v896, %v1400
    %1404 = vrot.lane.b32.xlu0 %v1402, 88
    %v1405 = vpop.permute.xlu0 %1404
    %v1407 = vadd.f32 %v1397, %v1405
    %1408 = vset.pattern.permute.xlu0 6
    %1409 = vperm.xlu0 %1408, %v1350
    %v1410 = vpop.permute.xlu0 %1409
    %v1412 = vmul.f32 %v896, %v1410
    %1414 = vrot.lane.b32.xlu0 %v1412, 80
    %v1415 = vpop.permute.xlu0 %1414
    %v1417 = vadd.f32 %v1407, %v1415
    %1418 = vset.pattern.permute.xlu0 7
    %1419 = vperm.xlu0 %1418, %v1350
    %v1420 = vpop.permute.xlu0 %1419
    %v1422 = vmul.f32 %v896, %v1420
    %1424 = vrot.lane.b32.xlu0 %v1422, 72
    %v1425 = vpop.permute.xlu0 %1424
    %v1427 = vadd.f32 %v1417, %v1425
    %1428 = vset.pattern.permute.xlu0 8
    %1429 = vperm.xlu0 %1428, %v1350
    %v1430 = vpop.permute.xlu0 %1429
    %v1432 = vmul.f32 %v896, %v1430
    %1434 = vrot.lane.b32.xlu0 %v1432, 64
    %v1435 = vpop.permute.xlu0 %1434
    %v1437 = vadd.f32 %v1427, %v1435
    %1438 = vset.pattern.permute.xlu0 9
    %1439 = vperm.xlu0 %1438, %v1350
    %v1440 = vpop.permute.xlu0 %1439
    %v1442 = vmul.f32 %v896, %v1440
    %1444 = vrot.lane.b32.xlu0 %v1442, 56
    %v1445 = vpop.permute.xlu0 %1444
    %v1447 = vadd.f32 %v1437, %v1445
    %1448 = vset.pattern.permute.xlu0 10
    %1449 = vperm.xlu0 %1448, %v1350
    %v1450 = vpop.permute.xlu0 %1449
    %v1452 = vmul.f32 %v896, %v1450
    %1454 = vrot.lane.b32.xlu0 %v1452, 48
    %v1455 = vpop.permute.xlu0 %1454
    %v1457 = vadd.f32 %v1447, %v1455
    %1458 = vset.pattern.permute.xlu0 11
    %1459 = vperm.xlu0 %1458, %v1350
    %v1460 = vpop.permute.xlu0 %1459
    %v1462 = vmul.f32 %v896, %v1460
    %1464 = vrot.lane.b32.xlu0 %v1462, 40
    %v1465 = vpop.permute.xlu0 %1464
    %v1467 = vadd.f32 %v1457, %v1465
    %1468 = vset.pattern.permute.xlu0 12
    %1469 = vperm.xlu0 %1468, %v1350
    %v1470 = vpop.permute.xlu0 %1469
    %v1472 = vmul.f32 %v896, %v1470
    %1474 = vrot.lane.b32.xlu0 %v1472, 32
    %v1475 = vpop.permute.xlu0 %1474
    %v1477 = vadd.f32 %v1467, %v1475
    %1478 = vset.pattern.permute.xlu0 13
    %1479 = vperm.xlu0 %1478, %v1350
    %v1480 = vpop.permute.xlu0 %1479
    %v1482 = vmul.f32 %v896, %v1480
    %1484 = vrot.lane.b32.xlu0 %v1482, 24
    %v1485 = vpop.permute.xlu0 %1484
    %v1487 = vadd.f32 %v1477, %v1485
    %1488 = vset.pattern.permute.xlu0 14
    %1489 = vperm.xlu0 %1488, %v1350
    %v1490 = vpop.permute.xlu0 %1489
    %v1492 = vmul.f32 %v896, %v1490
    %1494 = vrot.lane.b32.xlu0 %v1492, 16
    %v1495 = vpop.permute.xlu0 %1494
    %v1497 = vadd.f32 %v1487, %v1495
    %1498 = vset.pattern.permute.xlu0 15
    %1499 = vperm.xlu0 %1498, %v1350
    %v1500 = vpop.permute.xlu0 %1499
    %v1502 = vmul.f32 %v896, %v1500
    %1504 = vrot.lane.b32.xlu0 %v1502, 8
    %v1505 = vpop.permute.xlu0 %1504
    %v1507 = vadd.f32 %v1497, %v1505
    %vm1508 = vcmask 58368
    %1509 = vst.msk [vmem:[#allocation20] sm:$0x3] %vm1508, %v1507
    %v1510 = vld [vmem:[#allocation14] sm:$0xf]
    %v1511 = vld [vmem:[#allocation16] sm:$0x1]
    %v1513 = vlaneseq
    %v1514 = vshrl.u32 %v1513, 7
    %v1515 = vsub.s32 0, %v1514
    %v1516 = vrot.slane %v1511, %v1515
    %v1519 = vsel %vm198, %v1510, 0
    %1521 = vmatprep.subr.mxu0 0.0
    %1522 = vmatpush1.msra.mxu0 %v1519
    %1523 = vmatprep.subr.mxu0 0.0
    %1524 = vmatpush1.msra.mxu0 0.0
    %1525 = vmatprep.subr.mxu0 0.0
    %1526 = vmatpush1.msra.mxu0 0.0
    %1527 = vmatprep.subr.mxu0 0.0
    %1528 = vmatpush1.msra.mxu0 0.0
    %1529 = vmatprep.subr.mxu0 0.0
    %1530 = vmatpush1.msra.mxu0 0.0
    %1531 = vmatprep.subr.mxu0 0.0
    %1532 = vmatpush1.msra.mxu0 0.0
    %1533 = vmatprep.subr.mxu0 0.0
    %1534 = vmatpush1.msra.mxu0 0.0
    %1535 = vmatprep.subr.mxu0 0.0
    %1536 = vmatpush1.msra.mxu0 0.0
    %1537 = vmatprep.subr.mxu0 0.0
    %1538 = vmatpush1.msra.mxu0 0.0
    %1539 = vmatprep.subr.mxu0 0.0
    %1540 = vmatpush1.msra.mxu0 0.0
    %1541 = vmatprep.subr.mxu0 0.0
    %1542 = vmatpush1.msra.mxu0 0.0
    %1543 = vmatprep.subr.mxu0 0.0
    %1544 = vmatpush1.msra.mxu0 0.0
    %1545 = vmatprep.subr.mxu0 0.0
    %1546 = vmatpush1.msra.mxu0 0.0
    %1547 = vmatprep.subr.mxu0 0.0
    %1548 = vmatpush1.msra.mxu0 0.0
    %1549 = vmatprep.subr.mxu0 0.0
    %1550 = vmatpush1.msra.mxu0 0.0
    %1551 = vmatprep.subr.mxu0 0.0
    %1552 = vmatpush1.msra.mxu0 0.0
    %1553 = vmatprep.subr.mxu0 0.0
    %1554 = vmatpush1.msra.mxu0 0.0
    %1555 = vmatprep.subr.mxu0 0.0
    %1556 = vmatpush1.msra.mxu0 0.0
    %1557 = vmatprep.subr.mxu0 0.0
    %1558 = vmatpush1.msra.mxu0 0.0
    %1559 = vmatprep.subr.mxu0 0.0
    %1560 = vmatpush1.msra.mxu0 0.0
    %1561 = vmatprep.subr.mxu0 0.0
    %1562 = vmatpush1.msra.mxu0 0.0
    %1563 = vmatprep.subr.mxu0 0.0
    %1564 = vmatpush1.msra.mxu0 0.0
    %1565 = vmatprep.subr.mxu0 0.0
    %1566 = vmatpush1.msra.mxu0 0.0
    %1567 = vmatprep.subr.mxu0 0.0
    %1568 = vmatpush1.msra.mxu0 0.0
    %1569 = vmatprep.subr.mxu0 0.0
    %1570 = vmatpush1.msra.mxu0 0.0
    %1571 = vmatprep.subr.mxu0 0.0
    %1572 = vmatpush1.msra.mxu0 0.0
    %1573 = vmatprep.subr.mxu0 0.0
    %1574 = vmatpush1.msra.mxu0 0.0
    %1575 = vmatprep.subr.mxu0 0.0
    %1576 = vmatpush1.msra.mxu0 0.0
    %1577 = vmatprep.subr.mxu0 0.0
    %1578 = vmatpush1.msra.mxu0 0.0
    %1579 = vmatprep.subr.mxu0 0.0
    %1580 = vmatpush1.msra.mxu0 0.0
    %1581 = vmatprep.subr.mxu0 0.0
    %1582 = vmatpush1.msra.mxu0 0.0
    %1583 = vmatprep.subr.mxu0 0.0
    %1584 = vmatpush1.msra.mxu0 0.0
    %1585 = vmatprep.mubr.f32.mxu0 0.0
    %1586 = vmatmul.mubr.f32.gmra.mrb[0].mxu0 %v196
    %v1587 = vpop.f32.mrb[0].mxu0
    %v1588 = vadd.f32 %v1516, %v1587
    %v1589 = vpop.f32.mrb[0].mxu0
    %1590 = vdwg.mxu0
    %v1591 = vtanh.pop %v1588
    %v1592 = vld [vmem:[%s10] sm:$0xff]
    %v1593 = vld [vmem:[%s10 + $0x8] sm:$0xff]
    %v1594 = vld [vmem:[%s10 + $0x10] sm:$0xff]
    %v1595 = vld [vmem:[%s10 + $0x18] sm:$0xff]
    %v1596 = vld [vmem:[#allocation17] sm:$0x1]
    %v1598 = vlaneseq
    %v1599 = vshrl.u32 %v1598, 7
    %v1600 = vsub.s32 0, %v1599
    %v1601 = vrot.slane %v1596, %v1600
    %v1604 = vsel %vm284, %v1591, 0
    %1606 = vmatprep.subr.mxu0 0.0
    %1607 = vmatpush1.msra.mxu0 %v1592
    %1608 = vmatprep.subr.mxu0 0.0
    %1609 = vmatpush1.msra.mxu0 %v1593
    %1610 = vmatprep.subr.mxu0 0.0
    %1611 = vmatpush1.msra.mxu0 %v1594
    %1612 = vmatprep.subr.mxu0 0.0
    %1613 = vmatpush1.msra.mxu0 %v1595
    %1614 = vmatprep.subr.mxu0 0.0
    %1615 = vmatpush1.msra.mxu0 0.0
    %1616 = vmatprep.subr.mxu0 0.0
    %1617 = vmatpush1.msra.mxu0 0.0
    %1618 = vmatprep.subr.mxu0 0.0
    %1619 = vmatpush1.msra.mxu0 0.0
    %1620 = vmatprep.subr.mxu0 0.0
    %1621 = vmatpush1.msra.mxu0 0.0
    %1622 = vmatprep.subr.mxu0 0.0
    %1623 = vmatpush1.msra.mxu0 0.0
    %1624 = vmatprep.subr.mxu0 0.0
    %1625 = vmatpush1.msra.mxu0 0.0
    %1626 = vmatprep.subr.mxu0 0.0
    %1627 = vmatpush1.msra.mxu0 0.0
    %1628 = vmatprep.subr.mxu0 0.0
    %1629 = vmatpush1.msra.mxu0 0.0
    %1630 = vmatprep.subr.mxu0 0.0
    %1631 = vmatpush1.msra.mxu0 0.0
    %1632 = vmatprep.subr.mxu0 0.0
    %1633 = vmatpush1.msra.mxu0 0.0
    %1634 = vmatprep.subr.mxu0 0.0
    %1635 = vmatpush1.msra.mxu0 0.0
    %1636 = vmatprep.subr.mxu0 0.0
    %1637 = vmatpush1.msra.mxu0 0.0
    %1638 = vmatprep.subr.mxu0 0.0
    %1639 = vmatpush1.msra.mxu0 0.0
    %1640 = vmatprep.subr.mxu0 0.0
    %1641 = vmatpush1.msra.mxu0 0.0
    %1642 = vmatprep.subr.mxu0 0.0
    %1643 = vmatpush1.msra.mxu0 0.0
    %1644 = vmatprep.subr.mxu0 0.0
    %1645 = vmatpush1.msra.mxu0 0.0
    %1646 = vmatprep.subr.mxu0 0.0
    %1647 = vmatpush1.msra.mxu0 0.0
    %1648 = vmatprep.subr.mxu0 0.0
    %1649 = vmatpush1.msra.mxu0 0.0
    %1650 = vmatprep.subr.mxu0 0.0
    %1651 = vmatpush1.msra.mxu0 0.0
    %1652 = vmatprep.subr.mxu0 0.0
    %1653 = vmatpush1.msra.mxu0 0.0
    %1654 = vmatprep.subr.mxu0 0.0
    %1655 = vmatpush1.msra.mxu0 0.0
    %1656 = vmatprep.subr.mxu0 0.0
    %1657 = vmatpush1.msra.mxu0 0.0
    %1658 = vmatprep.subr.mxu0 0.0
    %1659 = vmatpush1.msra.mxu0 0.0
    %1660 = vmatprep.subr.mxu0 0.0
    %1661 = vmatpush1.msra.mxu0 0.0
    %1662 = vmatprep.subr.mxu0 0.0
    %1663 = vmatpush1.msra.mxu0 0.0
    %1664 = vmatprep.subr.mxu0 0.0
    %1665 = vmatpush1.msra.mxu0 0.0
    %1666 = vmatprep.subr.mxu0 0.0
    %1667 = vmatpush1.msra.mxu0 0.0
    %1668 = vmatprep.subr.mxu0 0.0
    %1669 = vmatpush1.msra.mxu0 0.0
    %1670 = vmatprep.mubr.f32.mxu0 0.0
    %1671 = vmatmul.mubr.f32.gmra.mrb[0].mxu0 %v1604
    %v1672 = vpop.f32.mrb[0].mxu0
    %v1673 = vadd.f32 %v1601, %v1672
    %v1674 = vpop.f32.mrb[0].mxu0
    %1675 = vdwg.mxu0
    %v1676 = vtanh.pop %v1673
    %v1677 = vld [vmem:[#allocation19] sm:$0xff]
    %v1678 = vld [vmem:[#allocation19 + $0x8] sm:$0xff]
    %v1679 = vld [vmem:[#allocation19 + $0x10] sm:$0xff]
    %v1680 = vld [vmem:[#allocation19 + $0x18] sm:$0xff]
    %v1681 = vld [vmem:[#allocation19 + $0x20] sm:$0xff]
    %v1682 = vld [vmem:[#allocation19 + $0x28] sm:$0xff]
    %v1683 = vld [vmem:[#allocation19 + $0x30] sm:$0xff]
    %v1684 = vld [vmem:[#allocation19 + $0x38] sm:$0xff]
    %v1685 = vld [vmem:[#allocation19 + $0x40] sm:$0xff]
    %v1686 = vld [vmem:[#allocation19 + $0x48] sm:$0xff]
    %v1687 = vld [vmem:[#allocation19 + $0x50] sm:$0xff]
    %v1688 = vld [vmem:[#allocation19 + $0x58] sm:$0xff]
    %v1689 = vld [vmem:[#allocation19 + $0x60] sm:$0xff]
    %v1690 = vld [vmem:[#allocation19 + $0x68] sm:$0xff]
    %v1691 = vld [vmem:[#allocation19 + $0x70] sm:$0xff]
    %v1692 = vld [vmem:[#allocation19 + $0x78] sm:$0xff]
    %v1693 = vld [vmem:[#allocation19 + $0x80] sm:$0xff]
    %v1694 = vld [vmem:[#allocation19 + $0x88] sm:$0xff]
    %v1695 = vld [vmem:[#allocation19 + $0x90] sm:$0xff]
    %v1696 = vld [vmem:[#allocation19 + $0x98] sm:$0xff]
    %v1697 = vld [vmem:[#allocation19 + $0xa0] sm:$0xff]
    %v1698 = vld [vmem:[#allocation19 + $0xa8] sm:$0xff]
    %v1699 = vld [vmem:[#allocation19 + $0xb0] sm:$0xff]
    %v1700 = vld [vmem:[#allocation19 + $0xb8] sm:$0xff]
    %v1701 = vld [vmem:[#allocation19 + $0xc0] sm:$0xff]
    %v1702 = vld [vmem:[#allocation19 + $0xc8] sm:$0xff]
    %v1703 = vld [vmem:[#allocation19 + $0xd0] sm:$0xff]
    %v1704 = vld [vmem:[#allocation19 + $0xd8] sm:$0xff]
    %v1705 = vld [vmem:[#allocation19 + $0xe0] sm:$0xff]
    %v1706 = vld [vmem:[#allocation19 + $0xe8] sm:$0xff]
    %v1707 = vld [vmem:[#allocation19 + $0xf0] sm:$0xff]
    %v1708 = vld [vmem:[#allocation19 + $0xf8] sm:$0xff]
    %v1709 = vld [vmem:[#allocation19 + $0x100] sm:$0xff]
    %v1710 = vld [vmem:[#allocation19 + $0x108] sm:$0xff]
    %v1711 = vld [vmem:[#allocation19 + $0x110] sm:$0xff]
    %v1712 = vld [vmem:[#allocation19 + $0x118] sm:$0xff]
    %v1713 = vld [vmem:[#allocation19 + $0x120] sm:$0xff]
    %v1714 = vld [vmem:[#allocation19 + $0x128] sm:$0xff]
    %v1715 = vld [vmem:[#allocation19 + $0x130] sm:$0xff]
    %v1716 = vld [vmem:[#allocation19 + $0x138] sm:$0xff]
    %v1717 = vld [vmem:[#allocation19 + $0x140] sm:$0xff]
    %v1718 = vld [vmem:[#allocation19 + $0x148] sm:$0xff]
    %v1719 = vld [vmem:[#allocation19 + $0x150] sm:$0xff]
    %v1720 = vld [vmem:[#allocation19 + $0x158] sm:$0xff]
    %v1721 = vld [vmem:[#allocation19 + $0x160] sm:$0xff]
    %v1722 = vld [vmem:[#allocation19 + $0x168] sm:$0xff]
    %v1723 = vld [vmem:[#allocation19 + $0x170] sm:$0xff]
    %v1724 = vld [vmem:[#allocation19 + $0x178] sm:$0xff]
    %v1725 = vld [vmem:[%s13] sm:$0xff]
    %v1726 = vld [vmem:[%s13 + $0x8] sm:$0xf]
    %v1729 = vlaneseq
    %v1730 = vshrl.u32 %v1729, 7
    %v1731 = vsub.s32 0, %v1730
    %v1732 = vrot.slane %v1725, %v1731
    %v1733 = vlaneseq
    %v1734 = vshrl.u32 %v1733, 7
    %v1735 = vsub.s32 1, %v1734
    %v1736 = vrot.slane %v1725, %v1735
    %v1737 = vlaneseq
    %v1738 = vshrl.u32 %v1737, 7
    %v1739 = vsub.s32 2, %v1738
    %v1740 = vrot.slane %v1725, %v1739
    %v1741 = vlaneseq
    %v1742 = vshrl.u32 %v1741, 7
    %v1743 = vsub.s32 3, %v1742
    %v1744 = vrot.slane %v1725, %v1743
    %v1745 = vlaneseq
    %v1746 = vshrl.u32 %v1745, 7
    %v1747 = vsub.s32 4, %v1746
    %v1748 = vrot.slane %v1725, %v1747
    %v1749 = vlaneseq
    %v1750 = vshrl.u32 %v1749, 7
    %v1751 = vsub.s32 5, %v1750
    %v1752 = vrot.slane %v1725, %v1751
    %v1753 = vlaneseq
    %v1754 = vshrl.u32 %v1753, 7
    %v1755 = vsub.s32 6, %v1754
    %v1756 = vrot.slane %v1725, %v1755
    %v1757 = vlaneseq
    %v1758 = vshrl.u32 %v1757, 7
    %v1759 = vsub.s32 7, %v1758
    %v1760 = vrot.slane %v1725, %v1759
    %v1761 = vlaneseq
    %v1762 = vshrl.u32 %v1761, 7
    %v1763 = vsub.s32 0, %v1762
    %v1764 = vrot.slane %v1726, %v1763
    %v1765 = vlaneseq
    %v1766 = vshrl.u32 %v1765, 7
    %v1767 = vsub.s32 1, %v1766
    %v1768 = vrot.slane %v1726, %v1767
    %v1769 = vlaneseq
    %v1770 = vshrl.u32 %v1769, 7
    %v1771 = vsub.s32 2, %v1770
    %v1772 = vrot.slane %v1726, %v1771
    %v1773 = vlaneseq
    %v1774 = vshrl.u32 %v1773, 7
    %v1775 = vsub.s32 3, %v1774
    %v1776 = vrot.slane %v1726, %v1775
    %v1790 = vsel %vm284, %v1676, 0
    %1792 = vmatprep.subr.mxu0 %v1678
    %1793 = vmatpush1.msra.mxu0 %v1677
    %1794 = vmatprep.subr.mxu0 %v1690
    %1795 = vmatpush1.msra.mxu0 %v1689
    %1796 = vmatprep.subr.mxu0 %v1702
    %1797 = vmatpush1.msra.mxu0 %v1701
    %1798 = vmatprep.subr.mxu0 %v1714
    %1799 = vmatpush1.msra.mxu0 %v1713
    %1800 = vmatprep.subr.mxu0 0.0
    %1801 = vmatpush1.msra.mxu0 0.0
    %1802 = vmatprep.subr.mxu0 0.0
    %1803 = vmatpush1.msra.mxu0 0.0
    %1804 = vmatprep.subr.mxu0 0.0
    %1805 = vmatpush1.msra.mxu0 0.0
    %1806 = vmatprep.subr.mxu0 0.0
    %1807 = vmatpush1.msra.mxu0 0.0
    %1808 = vmatprep.subr.mxu0 0.0
    %1809 = vmatpush1.msra.mxu0 0.0
    %1810 = vmatprep.subr.mxu0 0.0
    %1811 = vmatpush1.msra.mxu0 0.0
    %1812 = vmatprep.subr.mxu0 0.0
    %1813 = vmatpush1.msra.mxu0 0.0
    %1814 = vmatprep.subr.mxu0 0.0
    %1815 = vmatpush1.msra.mxu0 0.0
    %1816 = vmatprep.subr.mxu0 0.0
    %1817 = vmatpush1.msra.mxu0 0.0
    %1818 = vmatprep.subr.mxu0 0.0
    %1819 = vmatpush1.msra.mxu0 0.0
    %1820 = vmatprep.subr.mxu0 0.0
    %1821 = vmatpush1.msra.mxu0 0.0
    %1822 = vmatprep.subr.mxu0 0.0
    %1823 = vmatpush1.msra.mxu0 0.0
    %1824 = vmatprep.subr.mxu0 0.0
    %1825 = vmatpush1.msra.mxu0 0.0
    %1826 = vmatprep.subr.mxu0 0.0
    %1827 = vmatpush1.msra.mxu0 0.0
    %1828 = vmatprep.subr.mxu0 0.0
    %1829 = vmatpush1.msra.mxu0 0.0
    %1830 = vmatprep.subr.mxu0 0.0
    %1831 = vmatpush1.msra.mxu0 0.0
    %1832 = vmatprep.subr.mxu0 0.0
    %1833 = vmatpush1.msra.mxu0 0.0
    %1834 = vmatprep.subr.mxu0 0.0
    %1835 = vmatpush1.msra.mxu0 0.0
    %1836 = vmatprep.subr.mxu0 0.0
    %1837 = vmatpush1.msra.mxu0 0.0
    %1838 = vmatprep.subr.mxu0 0.0
    %1839 = vmatpush1.msra.mxu0 0.0
    %1840 = vmatprep.subr.mxu0 0.0
    %1841 = vmatpush1.msra.mxu0 0.0
    %1842 = vmatprep.subr.mxu0 0.0
    %1843 = vmatpush1.msra.mxu0 0.0
    %1844 = vmatprep.subr.mxu0 0.0
    %1845 = vmatpush1.msra.mxu0 0.0
    %1846 = vmatprep.subr.mxu0 0.0
    %1847 = vmatpush1.msra.mxu0 0.0
    %1848 = vmatprep.subr.mxu0 0.0
    %1849 = vmatpush1.msra.mxu0 0.0
    %1850 = vmatprep.subr.mxu0 0.0
    %1851 = vmatpush1.msra.mxu0 0.0
    %1852 = vmatprep.subr.mxu0 0.0
    %1853 = vmatpush1.msra.mxu0 0.0
    %1854 = vmatprep.subr.mxu0 0.0
    %1855 = vmatpush1.msra.mxu0 0.0
    %1856 = vmatprep.mubr.f32.mxu0 0.0
    %1857 = vmatmul.mubr.f32.gmra.mrb[0].mxu0 %v1790
    %v1858 = vpop.f32.mrb[0].mxu0
    %v1859 = vadd.f32 %v1732, %v1858
    %v1860 = vpop.f32.mrb[0].mxu0
    %v1861 = vadd.f32 %v1736, %v1860
    %1862 = vdwg.mxu0
    %1863 = vmatprep.subr.mxu0 %v1680
    %1864 = vmatpush1.msra.mxu0 %v1679
    %1865 = vmatprep.subr.mxu0 %v1692
    %1866 = vmatpush1.msra.mxu0 %v1691
    %1867 = vmatprep.subr.mxu0 %v1704
    %1868 = vmatpush1.msra.mxu0 %v1703
    %1869 = vmatprep.subr.mxu0 %v1716
    %1870 = vmatpush1.msra.mxu0 %v1715
    %1871 = vmatprep.subr.mxu0 0.0
    %1872 = vmatpush1.msra.mxu0 0.0
    %1873 = vmatprep.subr.mxu0 0.0
    %1874 = vmatpush1.msra.mxu0 0.0
    %1875 = vmatprep.subr.mxu0 0.0
    %1876 = vmatpush1.msra.mxu0 0.0
    %1877 = vmatprep.subr.mxu0 0.0
    %1878 = vmatpush1.msra.mxu0 0.0
    %1879 = vmatprep.subr.mxu0 0.0
    %1880 = vmatpush1.msra.mxu0 0.0
    %1881 = vmatprep.subr.mxu0 0.0
    %1882 = vmatpush1.msra.mxu0 0.0
    %1883 = vmatprep.subr.mxu0 0.0
    %1884 = vmatpush1.msra.mxu0 0.0
    %1885 = vmatprep.subr.mxu0 0.0
    %1886 = vmatpush1.msra.mxu0 0.0
    %1887 = vmatprep.subr.mxu0 0.0
    %1888 = vmatpush1.msra.mxu0 0.0
    %1889 = vmatprep.subr.mxu0 0.0
    %1890 = vmatpush1.msra.mxu0 0.0
    %1891 = vmatprep.subr.mxu0 0.0
    %1892 = vmatpush1.msra.mxu0 0.0
    %1893 = vmatprep.subr.mxu0 0.0
    %1894 = vmatpush1.msra.mxu0 0.0
    %1895 = vmatprep.subr.mxu0 0.0
    %1896 = vmatpush1.msra.mxu0 0.0
    %1897 = vmatprep.subr.mxu0 0.0
    %1898 = vmatpush1.msra.mxu0 0.0
    %1899 = vmatprep.subr.mxu0 0.0
    %1900 = vmatpush1.msra.mxu0 0.0
    %1901 = vmatprep.subr.mxu0 0.0
    %1902 = vmatpush1.msra.mxu0 0.0
    %1903 = vmatprep.subr.mxu0 0.0
    %1904 = vmatpush1.msra.mxu0 0.0
    %1905 = vmatprep.subr.mxu0 0.0
    %1906 = vmatpush1.msra.mxu0 0.0
    %1907 = vmatprep.subr.mxu0 0.0
    %1908 = vmatpush1.msra.mxu0 0.0
    %1909 = vmatprep.subr.mxu0 0.0
    %1910 = vmatpush1.msra.mxu0 0.0
    %1911 = vmatprep.subr.mxu0 0.0
    %1912 = vmatpush1.msra.mxu0 0.0
    %1913 = vmatprep.subr.mxu0 0.0
    %1914 = vmatpush1.msra.mxu0 0.0
    %1915 = vmatprep.subr.mxu0 0.0
    %1916 = vmatpush1.msra.mxu0 0.0
    %1917 = vmatprep.subr.mxu0 0.0
    %1918 = vmatpush1.msra.mxu0 0.0
    %1919 = vmatprep.subr.mxu0 0.0
    %1920 = vmatpush1.msra.mxu0 0.0
    %1921 = vmatprep.subr.mxu0 0.0
    %1922 = vmatpush1.msra.mxu0 0.0
    %1923 = vmatprep.subr.mxu0 0.0
    %1924 = vmatpush1.msra.mxu0 0.0
    %1925 = vmatprep.subr.mxu0 0.0
    %1926 = vmatpush1.msra.mxu0 0.0
    %1927 = vmatprep.mubr.f32.mxu0 0.0
    %1928 = vmatmul.mubr.f32.gmra.mrb[0].mxu0 %v1790
    %v1929 = vpop.f32.mrb[0].mxu0
    %v1930 = vadd.f32 %v1740, %v1929
    %v1931 = vpop.f32.mrb[0].mxu0
    %v1932 = vadd.f32 %v1744, %v1931
    %1933 = vdwg.mxu0
    %1934 = vmatprep.subr.mxu0 %v1682
    %1935 = vmatpush1.msra.mxu0 %v1681
    %1936 = vmatprep.subr.mxu0 %v1694
    %1937 = vmatpush1.msra.mxu0 %v1693
    %1938 = vmatprep.subr.mxu0 %v1706
    %1939 = vmatpush1.msra.mxu0 %v1705
    %1940 = vmatprep.subr.mxu0 %v1718
    %1941 = vmatpush1.msra.mxu0 %v1717
    %1942 = vmatprep.subr.mxu0 0.0
    %1943 = vmatpush1.msra.mxu0 0.0
    %1944 = vmatprep.subr.mxu0 0.0
    %1945 = vmatpush1.msra.mxu0 0.0
    %1946 = vmatprep.subr.mxu0 0.0
    %1947 = vmatpush1.msra.mxu0 0.0
    %1948 = vmatprep.subr.mxu0 0.0
    %1949 = vmatpush1.msra.mxu0 0.0
    %1950 = vmatprep.subr.mxu0 0.0
    %1951 = vmatpush1.msra.mxu0 0.0
    %1952 = vmatprep.subr.mxu0 0.0
    %1953 = vmatpush1.msra.mxu0 0.0
    %1954 = vmatprep.subr.mxu0 0.0
    %1955 = vmatpush1.msra.mxu0 0.0
    %1956 = vmatprep.subr.mxu0 0.0
    %1957 = vmatpush1.msra.mxu0 0.0
    %1958 = vmatprep.subr.mxu0 0.0
    %1959 = vmatpush1.msra.mxu0 0.0
    %1960 = vmatprep.subr.mxu0 0.0
    %1961 = vmatpush1.msra.mxu0 0.0
    %1962 = vmatprep.subr.mxu0 0.0
    %1963 = vmatpush1.msra.mxu0 0.0
    %1964 = vmatprep.subr.mxu0 0.0
    %1965 = vmatpush1.msra.mxu0 0.0
    %1966 = vmatprep.subr.mxu0 0.0
    %1967 = vmatpush1.msra.mxu0 0.0
    %1968 = vmatprep.subr.mxu0 0.0
    %1969 = vmatpush1.msra.mxu0 0.0
    %1970 = vmatprep.subr.mxu0 0.0
    %1971 = vmatpush1.msra.mxu0 0.0
    %1972 = vmatprep.subr.mxu0 0.0
    %1973 = vmatpush1.msra.mxu0 0.0
    %1974 = vmatprep.subr.mxu0 0.0
    %1975 = vmatpush1.msra.mxu0 0.0
    %1976 = vmatprep.subr.mxu0 0.0
    %1977 = vmatpush1.msra.mxu0 0.0
    %1978 = vmatprep.subr.mxu0 0.0
    %1979 = vmatpush1.msra.mxu0 0.0
    %1980 = vmatprep.subr.mxu0 0.0
    %1981 = vmatpush1.msra.mxu0 0.0
    %1982 = vmatprep.subr.mxu0 0.0
    %1983 = vmatpush1.msra.mxu0 0.0
    %1984 = vmatprep.subr.mxu0 0.0
    %1985 = vmatpush1.msra.mxu0 0.0
    %1986 = vmatprep.subr.mxu0 0.0
    %1987 = vmatpush1.msra.mxu0 0.0
    %1988 = vmatprep.subr.mxu0 0.0
    %1989 = vmatpush1.msra.mxu0 0.0
    %1990 = vmatprep.subr.mxu0 0.0
    %1991 = vmatpush1.msra.mxu0 0.0
    %1992 = vmatprep.subr.mxu0 0.0
    %1993 = vmatpush1.msra.mxu0 0.0
    %1994 = vmatprep.subr.mxu0 0.0
    %1995 = vmatpush1.msra.mxu0 0.0
    %1996 = vmatprep.subr.mxu0 0.0
    %1997 = vmatpush1.msra.mxu0 0.0
    %1998 = vmatprep.mubr.f32.mxu0 0.0
    %1999 = vmatmul.mubr.f32.gmra.mrb[0].mxu0 %v1790
    %v2000 = vpop.f32.mrb[0].mxu0
    %v2001 = vadd.f32 %v1748, %v2000
    %v2002 = vpop.f32.mrb[0].mxu0
    %v2003 = vadd.f32 %v1752, %v2002
    %2004 = vdwg.mxu0
    %2005 = vmatprep.subr.mxu0 %v1684
    %2006 = vmatpush1.msra.mxu0 %v1683
    %2007 = vmatprep.subr.mxu0 %v1696
    %2008 = vmatpush1.msra.mxu0 %v1695
    %2009 = vmatprep.subr.mxu0 %v1708
    %2010 = vmatpush1.msra.mxu0 %v1707
    %2011 = vmatprep.subr.mxu0 %v1720
    %2012 = vmatpush1.msra.mxu0 %v1719
    %2013 = vmatprep.subr.mxu0 0.0
    %2014 = vmatpush1.msra.mxu0 0.0
    %2015 = vmatprep.subr.mxu0 0.0
    %2016 = vmatpush1.msra.mxu0 0.0
    %2017 = vmatprep.subr.mxu0 0.0
    %2018 = vmatpush1.msra.mxu0 0.0
    %2019 = vmatprep.subr.mxu0 0.0
    %2020 = vmatpush1.msra.mxu0 0.0
    %2021 = vmatprep.subr.mxu0 0.0
    %2022 = vmatpush1.msra.mxu0 0.0
    %2023 = vmatprep.subr.mxu0 0.0
    %2024 = vmatpush1.msra.mxu0 0.0
    %2025 = vmatprep.subr.mxu0 0.0
    %2026 = vmatpush1.msra.mxu0 0.0
    %2027 = vmatprep.subr.mxu0 0.0
    %2028 = vmatpush1.msra.mxu0 0.0
    %2029 = vmatprep.subr.mxu0 0.0
    %2030 = vmatpush1.msra.mxu0 0.0
    %2031 = vmatprep.subr.mxu0 0.0
    %2032 = vmatpush1.msra.mxu0 0.0
    %2033 = vmatprep.subr.mxu0 0.0
    %2034 = vmatpush1.msra.mxu0 0.0
    %2035 = vmatprep.subr.mxu0 0.0
    %2036 = vmatpush1.msra.mxu0 0.0
    %2037 = vmatprep.subr.mxu0 0.0
    %2038 = vmatpush1.msra.mxu0 0.0
    %2039 = vmatprep.subr.mxu0 0.0
    %2040 = vmatpush1.msra.mxu0 0.0
    %2041 = vmatprep.subr.mxu0 0.0
    %2042 = vmatpush1.msra.mxu0 0.0
    %2043 = vmatprep.subr.mxu0 0.0
    %2044 = vmatpush1.msra.mxu0 0.0
    %2045 = vmatprep.subr.mxu0 0.0
    %2046 = vmatpush1.msra.mxu0 0.0
    %2047 = vmatprep.subr.mxu0 0.0
    %2048 = vmatpush1.msra.mxu0 0.0
    %2049 = vmatprep.subr.mxu0 0.0
    %2050 = vmatpush1.msra.mxu0 0.0
    %2051 = vmatprep.subr.mxu0 0.0
    %2052 = vmatpush1.msra.mxu0 0.0
    %2053 = vmatprep.subr.mxu0 0.0
    %2054 = vmatpush1.msra.mxu0 0.0
    %2055 = vmatprep.subr.mxu0 0.0
    %2056 = vmatpush1.msra.mxu0 0.0
    %2057 = vmatprep.subr.mxu0 0.0
    %2058 = vmatpush1.msra.mxu0 0.0
    %2059 = vmatprep.subr.mxu0 0.0
    %2060 = vmatpush1.msra.mxu0 0.0
    %2061 = vmatprep.subr.mxu0 0.0
    %2062 = vmatpush1.msra.mxu0 0.0
    %2063 = vmatprep.subr.mxu0 0.0
    %2064 = vmatpush1.msra.mxu0 0.0
    %2065 = vmatprep.subr.mxu0 0.0
    %2066 = vmatpush1.msra.mxu0 0.0
    %2067 = vmatprep.subr.mxu0 0.0
    %2068 = vmatpush1.msra.mxu0 0.0
    %2069 = vmatprep.mubr.f32.mxu0 0.0
    %2070 = vmatmul.mubr.f32.gmra.mrb[0].mxu0 %v1790
    %v2071 = vpop.f32.mrb[0].mxu0
    %v2072 = vadd.f32 %v1756, %v2071
    %v2073 = vpop.f32.mrb[0].mxu0
    %v2074 = vadd.f32 %v1760, %v2073
    %2075 = vdwg.mxu0
    %2076 = vmatprep.subr.mxu0 %v1686
    %2077 = vmatpush1.msra.mxu0 %v1685
    %2078 = vmatprep.subr.mxu0 %v1698
    %2079 = vmatpush1.msra.mxu0 %v1697
    %2080 = vmatprep.subr.mxu0 %v1710
    %2081 = vmatpush1.msra.mxu0 %v1709
    %2082 = vmatprep.subr.mxu0 %v1722
    %2083 = vmatpush1.msra.mxu0 %v1721
    %2084 = vmatprep.subr.mxu0 0.0
    %2085 = vmatpush1.msra.mxu0 0.0
    %2086 = vmatprep.subr.mxu0 0.0
    %2087 = vmatpush1.msra.mxu0 0.0
    %2088 = vmatprep.subr.mxu0 0.0
    %2089 = vmatpush1.msra.mxu0 0.0
    %2090 = vmatprep.subr.mxu0 0.0
    %2091 = vmatpush1.msra.mxu0 0.0
    %2092 = vmatprep.subr.mxu0 0.0
    %2093 = vmatpush1.msra.mxu0 0.0
    %2094 = vmatprep.subr.mxu0 0.0
    %2095 = vmatpush1.msra.mxu0 0.0
    %2096 = vmatprep.subr.mxu0 0.0
    %2097 = vmatpush1.msra.mxu0 0.0
    %2098 = vmatprep.subr.mxu0 0.0
    %2099 = vmatpush1.msra.mxu0 0.0
    %2100 = vmatprep.subr.mxu0 0.0
    %2101 = vmatpush1.msra.mxu0 0.0
    %2102 = vmatprep.subr.mxu0 0.0
    %2103 = vmatpush1.msra.mxu0 0.0
    %2104 = vmatprep.subr.mxu0 0.0
    %2105 = vmatpush1.msra.mxu0 0.0
    %2106 = vmatprep.subr.mxu0 0.0
    %2107 = vmatpush1.msra.mxu0 0.0
    %2108 = vmatprep.subr.mxu0 0.0
    %2109 = vmatpush1.msra.mxu0 0.0
    %2110 = vmatprep.subr.mxu0 0.0
    %2111 = vmatpush1.msra.mxu0 0.0
    %2112 = vmatprep.subr.mxu0 0.0
    %2113 = vmatpush1.msra.mxu0 0.0
    %2114 = vmatprep.subr.mxu0 0.0
    %2115 = vmatpush1.msra.mxu0 0.0
    %2116 = vmatprep.subr.mxu0 0.0
    %2117 = vmatpush1.msra.mxu0 0.0
    %2118 = vmatprep.subr.mxu0 0.0
    %2119 = vmatpush1.msra.mxu0 0.0
    %2120 = vmatprep.subr.mxu0 0.0
    %2121 = vmatpush1.msra.mxu0 0.0
    %2122 = vmatprep.subr.mxu0 0.0
    %2123 = vmatpush1.msra.mxu0 0.0
    %2124 = vmatprep.subr.mxu0 0.0
    %2125 = vmatpush1.msra.mxu0 0.0
    %2126 = vmatprep.subr.mxu0 0.0
    %2127 = vmatpush1.msra.mxu0 0.0
    %2128 = vmatprep.subr.mxu0 0.0
    %2129 = vmatpush1.msra.mxu0 0.0
    %2130 = vmatprep.subr.mxu0 0.0
    %2131 = vmatpush1.msra.mxu0 0.0
    %2132 = vmatprep.subr.mxu0 0.0
    %2133 = vmatpush1.msra.mxu0 0.0
    %2134 = vmatprep.subr.mxu0 0.0
    %2135 = vmatpush1.msra.mxu0 0.0
    %2136 = vmatprep.subr.mxu0 0.0
    %2137 = vmatpush1.msra.mxu0 0.0
    %2138 = vmatprep.subr.mxu0 0.0
    %2139 = vmatpush1.msra.mxu0 0.0
    %2140 = vmatprep.mubr.f32.mxu0 0.0
    %2141 = vmatmul.mubr.f32.gmra.mrb[0].mxu0 %v1790
    %v2142 = vpop.f32.mrb[0].mxu0
    %v2143 = vadd.f32 %v1764, %v2142
    %v2144 = vpop.f32.mrb[0].mxu0
    %v2145 = vadd.f32 %v1768, %v2144
    %2146 = vdwg.mxu0
    %2147 = vmatprep.subr.mxu0 %v1688
    %2148 = vmatpush1.msra.mxu0 %v1687
    %2149 = vmatprep.subr.mxu0 %v1700
    %2150 = vmatpush1.msra.mxu0 %v1699
    %2151 = vmatprep.subr.mxu0 %v1712
    %2152 = vmatpush1.msra.mxu0 %v1711
    %2153 = vmatprep.subr.mxu0 %v1724
    %2154 = vmatpush1.msra.mxu0 %v1723
    %2155 = vmatprep.subr.mxu0 0.0
    %2156 = vmatpush1.msra.mxu0 0.0
    %2157 = vmatprep.subr.mxu0 0.0
    %2158 = vmatpush1.msra.mxu0 0.0
    %2159 = vmatprep.subr.mxu0 0.0
    %2160 = vmatpush1.msra.mxu0 0.0
    %2161 = vmatprep.subr.mxu0 0.0
    %2162 = vmatpush1.msra.mxu0 0.0
    %2163 = vmatprep.subr.mxu0 0.0
    %2164 = vmatpush1.msra.mxu0 0.0
    %2165 = vmatprep.subr.mxu0 0.0
    %2166 = vmatpush1.msra.mxu0 0.0
    %2167 = vmatprep.subr.mxu0 0.0
    %2168 = vmatpush1.msra.mxu0 0.0
    %2169 = vmatprep.subr.mxu0 0.0
    %2170 = vmatpush1.msra.mxu0 0.0
    %2171 = vmatprep.subr.mxu0 0.0
    %2172 = vmatpush1.msra.mxu0 0.0
    %2173 = vmatprep.subr.mxu0 0.0
    %2174 = vmatpush1.msra.mxu0 0.0
    %2175 = vmatprep.subr.mxu0 0.0
    %2176 = vmatpush1.msra.mxu0 0.0
    %2177 = vmatprep.subr.mxu0 0.0
    %2178 = vmatpush1.msra.mxu0 0.0
    %2179 = vmatprep.subr.mxu0 0.0
    %2180 = vmatpush1.msra.mxu0 0.0
    %2181 = vmatprep.subr.mxu0 0.0
    %2182 = vmatpush1.msra.mxu0 0.0
    %2183 = vmatprep.subr.mxu0 0.0
    %2184 = vmatpush1.msra.mxu0 0.0
    %2185 = vmatprep.subr.mxu0 0.0
    %2186 = vmatpush1.msra.mxu0 0.0
    %2187 = vmatprep.subr.mxu0 0.0
    %2188 = vmatpush1.msra.mxu0 0.0
    %2189 = vmatprep.subr.mxu0 0.0
    %2190 = vmatpush1.msra.mxu0 0.0
    %2191 = vmatprep.subr.mxu0 0.0
    %2192 = vmatpush1.msra.mxu0 0.0
    %2193 = vmatprep.subr.mxu0 0.0
    %2194 = vmatpush1.msra.mxu0 0.0
    %2195 = vmatprep.subr.mxu0 0.0
    %2196 = vmatpush1.msra.mxu0 0.0
    %2197 = vmatprep.subr.mxu0 0.0
    %2198 = vmatpush1.msra.mxu0 0.0
    %2199 = vmatprep.subr.mxu0 0.0
    %2200 = vmatpush1.msra.mxu0 0.0
    %2201 = vmatprep.subr.mxu0 0.0
    %2202 = vmatpush1.msra.mxu0 0.0
    %2203 = vmatprep.subr.mxu0 0.0
    %2204 = vmatpush1.msra.mxu0 0.0
    %2205 = vmatprep.subr.mxu0 0.0
    %2206 = vmatpush1.msra.mxu0 0.0
    %2207 = vmatprep.subr.mxu0 0.0
    %2208 = vmatpush1.msra.mxu0 0.0
    %2209 = vmatprep.subr.mxu0 0.0
    %2210 = vmatpush1.msra.mxu0 0.0
    %2211 = vmatprep.mubr.f32.mxu0 0.0
    %2212 = vmatmul.mubr.f32.gmra.mrb[0].mxu0 %v1790
    %v2213 = vpop.f32.mrb[0].mxu0
    %v2214 = vadd.f32 %v1772, %v2213
    %v2215 = vpop.f32.mrb[0].mxu0
    %v2216 = vadd.f32 %v1776, %v2215
    %2217 = vdwg.mxu0
    %2219 = vset.pattern.permute.xlu0 0
    %2220 = vperm.xlu0 %2219, %v1507
    %v2221 = vpop.permute.xlu0 %2220
    %v2223 = vmul.f32 %v1859, %v2221
    %v2224 = vadd.f32 %v1861, %v2223
    %2225 = vset.pattern.permute.xlu0 1
    %2226 = vperm.xlu0 %2225, %v1507
    %v2227 = vpop.permute.xlu0 %2226
    %v2229 = vmul.f32 %v1859, %v2227
    %2231 = vrot.lane.b32.xlu0 %v2229, 112
    %v2232 = vpop.permute.xlu0 %2231
    %v2234 = vadd.f32 %v2224, %v2232
    %2235 = vset.pattern.permute.xlu0 2
    %2236 = vperm.xlu0 %2235, %v1507
    %v2237 = vpop.permute.xlu0 %2236
    %v2239 = vmul.f32 %v1859, %v2237
    %2241 = vrot.lane.b32.xlu0 %v2239, 96
    %v2242 = vpop.permute.xlu0 %2241
    %v2244 = vadd.f32 %v2234, %v2242
    %2245 = vset.pattern.permute.xlu0 3
    %2246 = vperm.xlu0 %2245, %v1507
    %v2247 = vpop.permute.xlu0 %2246
    %v2249 = vmul.f32 %v1859, %v2247
    %2251 = vrot.lane.b32.xlu0 %v2249, 80
    %v2252 = vpop.permute.xlu0 %2251
    %v2254 = vadd.f32 %v2244, %v2252
    %2255 = vset.pattern.permute.xlu0 4
    %2256 = vperm.xlu0 %2255, %v1507
    %v2257 = vpop.permute.xlu0 %2256
    %v2259 = vmul.f32 %v1859, %v2257
    %2261 = vrot.lane.b32.xlu0 %v2259, 64
    %v2262 = vpop.permute.xlu0 %2261
    %v2264 = vadd.f32 %v2254, %v2262
    %2265 = vset.pattern.permute.xlu0 5
    %2266 = vperm.xlu0 %2265, %v1507
    %v2267 = vpop.permute.xlu0 %2266
    %v2269 = vmul.f32 %v1859, %v2267
    %2271 = vrot.lane.b32.xlu0 %v2269, 48
    %v2272 = vpop.permute.xlu0 %2271
    %v2274 = vadd.f32 %v2264, %v2272
    %2275 = vset.pattern.permute.xlu0 6
    %2276 = vperm.xlu0 %2275, %v1507
    %v2277 = vpop.permute.xlu0 %2276
    %v2279 = vmul.f32 %v1859, %v2277
    %2281 = vrot.lane.b32.xlu0 %v2279, 32
    %v2282 = vpop.permute.xlu0 %2281
    %v2284 = vadd.f32 %v2274, %v2282
    %2285 = vset.pattern.permute.xlu0 7
    %2286 = vperm.xlu0 %2285, %v1507
    %v2287 = vpop.permute.xlu0 %2286
    %v2289 = vmul.f32 %v1859, %v2287
    %2291 = vrot.lane.b32.xlu0 %v2289, 16
    %v2292 = vpop.permute.xlu0 %2291
    %v2294 = vadd.f32 %v2284, %v2292
    %2296 = vset.pattern.permute.xlu0 0
    %2297 = vperm.xlu0 %2296, %v2294
    %v2298 = vpop.permute.xlu0 %2297
    %v2300 = vmul.f32 %v1930, %v2298
    %v2301 = vadd.f32 %v2072, %v2300
    %2302 = vset.pattern.permute.xlu0 1
    %2303 = vperm.xlu0 %2302, %v2294
    %v2304 = vpop.permute.xlu0 %2303
    %v2306 = vmul.f32 %v1930, %v2304
    %2308 = vrot.lane.b32.xlu0 %v2306, 96
    %v2309 = vpop.permute.xlu0 %2308
    %v2311 = vadd.f32 %v2301, %v2309
    %2312 = vset.pattern.permute.xlu0 2
    %2313 = vperm.xlu0 %2312, %v2294
    %v2314 = vpop.permute.xlu0 %2313
    %v2316 = vmul.f32 %v1930, %v2314
    %2318 = vrot.lane.b32.xlu0 %v2316, 64
    %v2319 = vpop.permute.xlu0 %2318
    %v2321 = vadd.f32 %v2311, %v2319
    %2322 = vset.pattern.permute.xlu0 3
    %2323 = vperm.xlu0 %2322, %v2294
    %v2324 = vpop.permute.xlu0 %2323
    %v2326 = vmul.f32 %v1930, %v2324
    %2328 = vrot.lane.b32.xlu0 %v2326, 32
    %v2329 = vpop.permute.xlu0 %2328
    %v2331 = vadd.f32 %v2321, %v2329
    %2332 = vset.pattern.permute.xlu0 4
    %2333 = vperm.xlu0 %2332, %v2294
    %v2334 = vpop.permute.xlu0 %2333
    %v2336 = vmul.f32 %v1932, %v2334
    %v2337 = vadd.f32 %v2331, %v2336
    %2338 = vset.pattern.permute.xlu0 5
    %2339 = vperm.xlu0 %2338, %v2294
    %v2340 = vpop.permute.xlu0 %2339
    %v2342 = vmul.f32 %v1932, %v2340
    %2344 = vrot.lane.b32.xlu0 %v2342, 96
    %v2345 = vpop.permute.xlu0 %2344
    %v2347 = vadd.f32 %v2337, %v2345
    %2348 = vset.pattern.permute.xlu0 6
    %2349 = vperm.xlu0 %2348, %v2294
    %v2350 = vpop.permute.xlu0 %2349
    %v2352 = vmul.f32 %v1932, %v2350
    %2354 = vrot.lane.b32.xlu0 %v2352, 64
    %v2355 = vpop.permute.xlu0 %2354
    %v2357 = vadd.f32 %v2347, %v2355
    %2358 = vset.pattern.permute.xlu0 7
    %2359 = vperm.xlu0 %2358, %v2294
    %v2360 = vpop.permute.xlu0 %2359
    %v2362 = vmul.f32 %v1932, %v2360
    %2364 = vrot.lane.b32.xlu0 %v2362, 32
    %v2365 = vpop.permute.xlu0 %2364
    %v2367 = vadd.f32 %v2357, %v2365
    %2368 = vset.pattern.permute.xlu0 8
    %2369 = vperm.xlu0 %2368, %v2294
    %v2370 = vpop.permute.xlu0 %2369
    %v2372 = vmul.f32 %v2001, %v2370
    %v2373 = vadd.f32 %v2367, %v2372
    %2374 = vset.pattern.permute.xlu0 9
    %2375 = vperm.xlu0 %2374, %v2294
    %v2376 = vpop.permute.xlu0 %2375
    %v2378 = vmul.f32 %v2001, %v2376
    %2380 = vrot.lane.b32.xlu0 %v2378, 96
    %v2381 = vpop.permute.xlu0 %2380
    %v2383 = vadd.f32 %v2373, %v2381
    %2384 = vset.pattern.permute.xlu0 10
    %2385 = vperm.xlu0 %2384, %v2294
    %v2386 = vpop.permute.xlu0 %2385
    %v2388 = vmul.f32 %v2001, %v2386
    %2390 = vrot.lane.b32.xlu0 %v2388, 64
    %v2391 = vpop.permute.xlu0 %2390
    %v2393 = vadd.f32 %v2383, %v2391
    %2394 = vset.pattern.permute.xlu0 11
    %2395 = vperm.xlu0 %2394, %v2294
    %v2396 = vpop.permute.xlu0 %2395
    %v2398 = vmul.f32 %v2001, %v2396
    %2400 = vrot.lane.b32.xlu0 %v2398, 32
    %v2401 = vpop.permute.xlu0 %2400
    %v2403 = vadd.f32 %v2393, %v2401
    %2404 = vset.pattern.permute.xlu0 12
    %2405 = vperm.xlu0 %2404, %v2294
    %v2406 = vpop.permute.xlu0 %2405
    %v2408 = vmul.f32 %v2003, %v2406
    %v2409 = vadd.f32 %v2403, %v2408
    %2410 = vset.pattern.permute.xlu0 13
    %2411 = vperm.xlu0 %2410, %v2294
    %v2412 = vpop.permute.xlu0 %2411
    %v2414 = vmul.f32 %v2003, %v2412
    %2416 = vrot.lane.b32.xlu0 %v2414, 96
    %v2417 = vpop.permute.xlu0 %2416
    %v2419 = vadd.f32 %v2409, %v2417
    %2420 = vset.pattern.permute.xlu0 14
    %2421 = vperm.xlu0 %2420, %v2294
    %v2422 = vpop.permute.xlu0 %2421
    %v2424 = vmul.f32 %v2003, %v2422
    %2426 = vrot.lane.b32.xlu0 %v2424, 64
    %v2427 = vpop.permute.xlu0 %2426
    %v2429 = vadd.f32 %v2419, %v2427
    %2430 = vset.pattern.permute.xlu0 15
    %2431 = vperm.xlu0 %2430, %v2294
    %v2432 = vpop.permute.xlu0 %2431
    %v2434 = vmul.f32 %v2003, %v2432
    %2436 = vrot.lane.b32.xlu0 %v2434, 32
    %v2437 = vpop.permute.xlu0 %2436
    %v2439 = vadd.f32 %v2429, %v2437
    %v2440 = vtanh.pop %v2439
    %2442 = vset.pattern.permute.xlu0 0
    %2443 = vperm.xlu0 %2442, %v2440
    %v2444 = vpop.permute.xlu0 %2443
    %v2446 = vmul.f32 %v2074, %v2444
    %v2447 = vadd.f32 %v2216, %v2446
    %2448 = vset.pattern.permute.xlu0 1
    %2449 = vperm.xlu0 %2448, %v2440
    %v2450 = vpop.permute.xlu0 %2449
    %v2452 = vmul.f32 %v2074, %v2450
    %2454 = vrot.lane.b32.xlu0 %v2452, 112
    %v2455 = vpop.permute.xlu0 %2454
    %v2457 = vadd.f32 %v2447, %v2455
    %2458 = vset.pattern.permute.xlu0 2
    %2459 = vperm.xlu0 %2458, %v2440
    %v2460 = vpop.permute.xlu0 %2459
    %v2462 = vmul.f32 %v2074, %v2460
    %2464 = vrot.lane.b32.xlu0 %v2462, 96
    %v2465 = vpop.permute.xlu0 %2464
    %v2467 = vadd.f32 %v2457, %v2465
    %2468 = vset.pattern.permute.xlu0 3
    %2469 = vperm.xlu0 %2468, %v2440
    %v2470 = vpop.permute.xlu0 %2469
    %v2472 = vmul.f32 %v2074, %v2470
    %2474 = vrot.lane.b32.xlu0 %v2472, 80
    %v2475 = vpop.permute.xlu0 %2474
    %v2477 = vadd.f32 %v2467, %v2475
    %2478 = vset.pattern.permute.xlu0 4
    %2479 = vperm.xlu0 %2478, %v2440
    %v2480 = vpop.permute.xlu0 %2479
    %v2482 = vmul.f32 %v2074, %v2480
    %2484 = vrot.lane.b32.xlu0 %v2482, 64
    %v2485 = vpop.permute.xlu0 %2484
    %v2487 = vadd.f32 %v2477, %v2485
    %2488 = vset.pattern.permute.xlu0 5
    %2489 = vperm.xlu0 %2488, %v2440
    %v2490 = vpop.permute.xlu0 %2489
    %v2492 = vmul.f32 %v2074, %v2490
    %2494 = vrot.lane.b32.xlu0 %v2492, 48
    %v2495 = vpop.permute.xlu0 %2494
    %v2497 = vadd.f32 %v2487, %v2495
    %2498 = vset.pattern.permute.xlu0 6
    %2499 = vperm.xlu0 %2498, %v2440
    %v2500 = vpop.permute.xlu0 %2499
    %v2502 = vmul.f32 %v2074, %v2500
    %2504 = vrot.lane.b32.xlu0 %v2502, 32
    %v2505 = vpop.permute.xlu0 %2504
    %v2507 = vadd.f32 %v2497, %v2505
    %2508 = vset.pattern.permute.xlu0 7
    %2509 = vperm.xlu0 %2508, %v2440
    %v2510 = vpop.permute.xlu0 %2509
    %v2512 = vmul.f32 %v2074, %v2510
    %2514 = vrot.lane.b32.xlu0 %v2512, 16
    %v2515 = vpop.permute.xlu0 %2514
    %v2517 = vadd.f32 %v2507, %v2515
    %2518 = vset.pattern.permute.xlu0 8
    %2519 = vperm.xlu0 %2518, %v2440
    %v2520 = vpop.permute.xlu0 %2519
    %v2522 = vmul.f32 %v2143, %v2520
    %v2523 = vadd.f32 %v2517, %v2522
    %2524 = vset.pattern.permute.xlu0 9
    %2525 = vperm.xlu0 %2524, %v2440
    %v2526 = vpop.permute.xlu0 %2525
    %v2528 = vmul.f32 %v2143, %v2526
    %2530 = vrot.lane.b32.xlu0 %v2528, 112
    %v2531 = vpop.permute.xlu0 %2530
    %v2533 = vadd.f32 %v2523, %v2531
    %2534 = vset.pattern.permute.xlu0 10
    %2535 = vperm.xlu0 %2534, %v2440
    %v2536 = vpop.permute.xlu0 %2535
    %v2538 = vmul.f32 %v2143, %v2536
    %2540 = vrot.lane.b32.xlu0 %v2538, 96
    %v2541 = vpop.permute.xlu0 %2540
    %v2543 = vadd.f32 %v2533, %v2541
    %2544 = vset.pattern.permute.xlu0 11
    %2545 = vperm.xlu0 %2544, %v2440
    %v2546 = vpop.permute.xlu0 %2545
    %v2548 = vmul.f32 %v2143, %v2546
    %2550 = vrot.lane.b32.xlu0 %v2548, 80
    %v2551 = vpop.permute.xlu0 %2550
    %v2553 = vadd.f32 %v2543, %v2551
    %2554 = vset.pattern.permute.xlu0 12
    %2555 = vperm.xlu0 %2554, %v2440
    %v2556 = vpop.permute.xlu0 %2555
    %v2558 = vmul.f32 %v2143, %v2556
    %2560 = vrot.lane.b32.xlu0 %v2558, 64
    %v2561 = vpop.permute.xlu0 %2560
    %v2563 = vadd.f32 %v2553, %v2561
    %2564 = vset.pattern.permute.xlu0 13
    %2565 = vperm.xlu0 %2564, %v2440
    %v2566 = vpop.permute.xlu0 %2565
    %v2568 = vmul.f32 %v2143, %v2566
    %2570 = vrot.lane.b32.xlu0 %v2568, 48
    %v2571 = vpop.permute.xlu0 %2570
    %v2573 = vadd.f32 %v2563, %v2571
    %2574 = vset.pattern.permute.xlu0 14
    %2575 = vperm.xlu0 %2574, %v2440
    %v2576 = vpop.permute.xlu0 %2575
    %v2578 = vmul.f32 %v2143, %v2576
    %2580 = vrot.lane.b32.xlu0 %v2578, 32
    %v2581 = vpop.permute.xlu0 %2580
    %v2583 = vadd.f32 %v2573, %v2581
    %2584 = vset.pattern.permute.xlu0 15
    %2585 = vperm.xlu0 %2584, %v2440
    %v2586 = vpop.permute.xlu0 %2585
    %v2588 = vmul.f32 %v2143, %v2586
    %2590 = vrot.lane.b32.xlu0 %v2588, 16
    %v2591 = vpop.permute.xlu0 %2590
    %v2593 = vadd.f32 %v2583, %v2591
    %2594 = vset.pattern.permute.xlu0 16
    %2595 = vperm.xlu0 %2594, %v2440
    %v2596 = vpop.permute.xlu0 %2595
    %v2598 = vmul.f32 %v2145, %v2596
    %v2599 = vadd.f32 %v2593, %v2598
    %2600 = vset.pattern.permute.xlu0 17
    %2601 = vperm.xlu0 %2600, %v2440
    %v2602 = vpop.permute.xlu0 %2601
    %v2604 = vmul.f32 %v2145, %v2602
    %2606 = vrot.lane.b32.xlu0 %v2604, 112
    %v2607 = vpop.permute.xlu0 %2606
    %v2609 = vadd.f32 %v2599, %v2607
    %2610 = vset.pattern.permute.xlu0 18
    %2611 = vperm.xlu0 %2610, %v2440
    %v2612 = vpop.permute.xlu0 %2611
    %v2614 = vmul.f32 %v2145, %v2612
    %2616 = vrot.lane.b32.xlu0 %v2614, 96
    %v2617 = vpop.permute.xlu0 %2616
    %v2619 = vadd.f32 %v2609, %v2617
    %2620 = vset.pattern.permute.xlu0 19
    %2621 = vperm.xlu0 %2620, %v2440
    %v2622 = vpop.permute.xlu0 %2621
    %v2624 = vmul.f32 %v2145, %v2622
    %2626 = vrot.lane.b32.xlu0 %v2624, 80
    %v2627 = vpop.permute.xlu0 %2626
    %v2629 = vadd.f32 %v2619, %v2627
    %2630 = vset.pattern.permute.xlu0 20
    %2631 = vperm.xlu0 %2630, %v2440
    %v2632 = vpop.permute.xlu0 %2631
    %v2634 = vmul.f32 %v2145, %v2632
    %2636 = vrot.lane.b32.xlu0 %v2634, 64
    %v2637 = vpop.permute.xlu0 %2636
    %v2639 = vadd.f32 %v2629, %v2637
    %2640 = vset.pattern.permute.xlu0 21
    %2641 = vperm.xlu0 %2640, %v2440
    %v2642 = vpop.permute.xlu0 %2641
    %v2644 = vmul.f32 %v2145, %v2642
    %2646 = vrot.lane.b32.xlu0 %v2644, 48
    %v2647 = vpop.permute.xlu0 %2646
    %v2649 = vadd.f32 %v2639, %v2647
    %2650 = vset.pattern.permute.xlu0 22
    %2651 = vperm.xlu0 %2650, %v2440
    %v2652 = vpop.permute.xlu0 %2651
    %v2654 = vmul.f32 %v2145, %v2652
    %2656 = vrot.lane.b32.xlu0 %v2654, 32
    %v2657 = vpop.permute.xlu0 %2656
    %v2659 = vadd.f32 %v2649, %v2657
    %2660 = vset.pattern.permute.xlu0 23
    %2661 = vperm.xlu0 %2660, %v2440
    %v2662 = vpop.permute.xlu0 %2661
    %v2664 = vmul.f32 %v2145, %v2662
    %2666 = vrot.lane.b32.xlu0 %v2664, 16
    %v2667 = vpop.permute.xlu0 %2666
    %v2669 = vadd.f32 %v2659, %v2667
    %2670 = vset.pattern.permute.xlu0 24
    %2671 = vperm.xlu0 %2670, %v2440
    %v2672 = vpop.permute.xlu0 %2671
    %v2674 = vmul.f32 %v2214, %v2672
    %v2675 = vadd.f32 %v2669, %v2674
    %2676 = vset.pattern.permute.xlu0 25
    %2677 = vperm.xlu0 %2676, %v2440
    %v2678 = vpop.permute.xlu0 %2677
    %v2680 = vmul.f32 %v2214, %v2678
    %2682 = vrot.lane.b32.xlu0 %v2680, 112
    %v2683 = vpop.permute.xlu0 %2682
    %v2685 = vadd.f32 %v2675, %v2683
    %2686 = vset.pattern.permute.xlu0 26
    %2687 = vperm.xlu0 %2686, %v2440
    %v2688 = vpop.permute.xlu0 %2687
    %v2690 = vmul.f32 %v2214, %v2688
    %2692 = vrot.lane.b32.xlu0 %v2690, 96
    %v2693 = vpop.permute.xlu0 %2692
    %v2695 = vadd.f32 %v2685, %v2693
    %2696 = vset.pattern.permute.xlu0 27
    %2697 = vperm.xlu0 %2696, %v2440
    %v2698 = vpop.permute.xlu0 %2697
    %v2700 = vmul.f32 %v2214, %v2698
    %2702 = vrot.lane.b32.xlu0 %v2700, 80
    %v2703 = vpop.permute.xlu0 %2702
    %v2705 = vadd.f32 %v2695, %v2703
    %2706 = vset.pattern.permute.xlu0 28
    %2707 = vperm.xlu0 %2706, %v2440
    %v2708 = vpop.permute.xlu0 %2707
    %v2710 = vmul.f32 %v2214, %v2708
    %2712 = vrot.lane.b32.xlu0 %v2710, 64
    %v2713 = vpop.permute.xlu0 %2712
    %v2715 = vadd.f32 %v2705, %v2713
    %2716 = vset.pattern.permute.xlu0 29
    %2717 = vperm.xlu0 %2716, %v2440
    %v2718 = vpop.permute.xlu0 %2717
    %v2720 = vmul.f32 %v2214, %v2718
    %2722 = vrot.lane.b32.xlu0 %v2720, 48
    %v2723 = vpop.permute.xlu0 %2722
    %v2725 = vadd.f32 %v2715, %v2723
    %2726 = vset.pattern.permute.xlu0 30
    %2727 = vperm.xlu0 %2726, %v2440
    %v2728 = vpop.permute.xlu0 %2727
    %v2730 = vmul.f32 %v2214, %v2728
    %2732 = vrot.lane.b32.xlu0 %v2730, 32
    %v2733 = vpop.permute.xlu0 %2732
    %v2735 = vadd.f32 %v2725, %v2733
    %2736 = vset.pattern.permute.xlu0 31
    %2737 = vperm.xlu0 %2736, %v2440
    %v2738 = vpop.permute.xlu0 %2737
    %v2740 = vmul.f32 %v2214, %v2738
    %2742 = vrot.lane.b32.xlu0 %v2740, 16
    %v2743 = vpop.permute.xlu0 %2742
    %v2745 = vadd.f32 %v2735, %v2743
    %vm2746 = vcmask 123904
    %2747 = vst.msk [vmem:[#allocation21] sm:$0x3] %vm2746, %v2745
    // Predicated region
    $region102: #{tpu_custom_call.1} parent=1 // pred_check
      _
    $region103: #{tpu_custom_call.1} parent=1 // pred_check_branch
      %2749 = sbr.rel (0) target = $region105
    $region104: #{tpu_custom_call.1} parent=1 // pred_region
      %s2751 = ssub.s32 32, 32
      %2752 = vsyncadd [#allocation4], %s2751
      %s2754 = sshll.u32 [#allocation20], 4
      %s2755 = int_to_ptr.vmem [resolvable:$true] %s2754
      %2757 = dma.vmem_to_hbm [thread:$0]  %s2755, 32, %s14, [#allocation4]
    $region105: #{tpu_custom_call.1} parent=1 // pred_fallthru
      _
    // Predicated region
    $region106: #{tpu_custom_call.1} parent=1 // pred_check
      _
    $region107: #{tpu_custom_call.1} parent=1 // pred_check_branch
      %2759 = sbr.rel (0) target = $region109
    $region108: #{tpu_custom_call.1} parent=1 // pred_region
      %s2761 = ssub.s32 32, 32
      %2762 = vsyncadd [#allocation22], %s2761
      %s2764 = sshll.u32 [#allocation21], 4
      %s2765 = int_to_ptr.vmem [resolvable:$true] %s2764
      %2767 = dma.vmem_to_hbm [thread:$0]  %s2765, 32, %s15, [#allocation22]
    $region109: #{tpu_custom_call.1} parent=1 // pred_fallthru
      _
    // Predicated region
    $region110: #{tpu_custom_call.1} parent=1 // pred_check
      _
    $region111: #{tpu_custom_call.1} parent=1 // pred_check_branch
      %2769 = sbr.rel (0) target = $region113
    $region112: #{tpu_custom_call.1} parent=1 // pred_region
      %2770 = dma.done [#allocation4], 32
    $region113: #{tpu_custom_call.1} parent=1 // pred_fallthru
      _
    // Predicated region
    $region114: #{tpu_custom_call.1} parent=1 // pred_check
      _
    $region115: #{tpu_custom_call.1} parent=1 // pred_check_branch
      %2772 = sbr.rel (0) target = $region117
    $region116: #{tpu_custom_call.1} parent=1 // pred_region
      %2773 = dma.done [#allocation22], 32
    $region117: #{tpu_custom_call.1} parent=1 // pred_fallthru
      _
    %2774 = vsyncpa [#allocation3], 1
    %2775 = vsyncpa [#allocation6], 1
    %2776 = vsyncpa [#allocation9], 1
    %2777 = vsyncpa [#allocation12], 1
    %2778 = vsyncpa [#allocation15], 1
    %2779 = vsyncpa [#allocation18], 1
    %2780 = vsyncpa [#allocation4], 1
    %2781 = vsyncpa [#allocation22], 1

</llo_original>
